<compile_context>
chip_gen: v7x
topology: tpu7x:2x2x1
jax: 0.10.0
libtpu: 0.0.40
codegen_flags: <defaults>
</compile_context>

<pallas_src>
import functools

import jax
import jax.numpy as jnp
from jax.experimental import pallas as pl
from jax.experimental.pallas import tpu as pltpu


# ----------------------------------------------------------------------------
# Fused Pallas kernel: first -> shrink -> m x resnet -> PReLU -> expand -> deconv
# ----------------------------------------------------------------------------
def _net_kernel(col0_ref, masks_ref, wf_ref, bf_ref, ws_ref, bs_ref, rw_ref,
                rsc_ref, rsh_ref, we_ref, be_ref, wd_ref, bd_ref, alpha_ref,
                o_ref):
    """One batch-block per grid step; all activations stay in registers/VMEM.

    col0_ref : (1, KCp, lanes)  first-conv im2col (hoisted to the wrapper),
                                lanes = B_blk * Lseg, valid cols [0, L1) / segment
    masks_ref: (3, lanes)       [left-tap mask, right-tap mask, valid-col mask]
    wf_ref   : (d, KCp)         bf_ref : (d, 1)
    ws_ref   : (sp, d)          bs_ref : (sp, 1)
    rw_ref   : (m*2*3, sp, sp)  per-tap res-conv matrices, (block, conv, tap) order
    rsc_ref  : (m, sp, 1)       folded inference-BN scale (shared per block)
    rsh_ref  : (m*2, sp, 1)     folded BN shift (+conv bias) per conv
    we_ref   : (d, sp)          be_ref : (d, 1)
    wd_ref   : (j0, rows_p, d)  deconv phase weights grouped by lane shift j
    bd_ref   : (rows_p, 1)      deconv bias per (c_out, phase) output row
    alpha_ref: (m+4,)  SMEM     PReLU alphas
    o_ref    : (1, rows_p, lanes)  per-phase deconv output (register accumulated)
    """
    lanes = col0_ref.shape[2]
    m = rsc_ref.shape[0]
    k_res = rw_ref.shape[0] // (2 * m)          # == 3

    mask_l = masks_ref[0:1, :]                  # 0 at per-segment position 0
    mask_r = masks_ref[1:2, :]                  # 0 at per-segment position L1-1
    mask_v = masks_ref[2:3, :]                  # 1 on valid columns, 0 on pad

    def act(v, idx):
        a = alpha_ref[idx]                      # scalar PReLU alpha from SMEM
        return jnp.where(v >= 0.0, v, a * v)

    def mm(a, b):
        return jnp.dot(a, b, preferred_element_type=jnp.float32)

    # ---- first_part: Conv1d(C_in->d, K1, pad=0) + PReLU (one MXU matmul) -----
    h = act(mm(wf_ref[...], col0_ref[0]) + bf_ref[...], 0)

    # ---- shrink 1x1 conv + PReLU ----------------------------------------------
    h = act(mm(ws_ref[...], h) + bs_ref[...], 1)

    # ---- m x ResnetBlock: conv-BN-PReLU-conv-BN-(+residual) -------------------
    # "same" K=3 conv: neighbour taps via lane rolls (XLU) + segment-border masks
    def res_conv(v, base):
        left = pltpu.roll(v, shift=1, axis=1) * mask_l            # v[:, l-1]
        right = pltpu.roll(v, shift=lanes - 1, axis=1) * mask_r   # v[:, l+1]
        return (mm(rw_ref[base + 0], left)
                + mm(rw_ref[base + 1], v)
                + mm(rw_ref[base + 2], right))

    for i in range(m):
        scale = rsc_ref[i]                      # shared BN of this block
        residual = h
        t = act(res_conv(h, (2 * i) * k_res) * scale + rsh_ref[2 * i], 2 + i)
        h = (res_conv(t, (2 * i + 1) * k_res) * scale + rsh_ref[2 * i + 1]
             + residual)

    # ---- standalone nn.PReLU (fused) ------------------------------------------
    h = act(h, 2 + m)

    # ---- expand 1x1 conv + PReLU ----------------------------------------------
    h = act(mm(we_ref[...], h) + be_ref[...], 3 + m)

    # ---- last_part: ConvTranspose1d(d->C_out, Kl, stride) ---------------------
    # Polyphase overlap-add, accumulated entirely in registers:
    #   acc[co*stride+p, t'] = bias[co] + sum_j W[ci,co,stride*j+p] * h[ci, t'-j]
    # The per-segment shifts are whole-array lane rolls; wrapped columns are
    # guaranteed zero because hv is zeroed on pad columns and Lseg >= m0.
    hv = h * mask_v
    acc = mm(wd_ref[0], hv) + bd_ref[...]
    for j in range(1, wd_ref.shape[0]):
        acc = acc + mm(wd_ref[j], pltpu.roll(hv, shift=j, axis=1))
    o_ref[...] = acc[None]                      # single aligned store per step


# ----------------------------------------------------------------------------
# One-time parameter preprocessing (layout, padding, BN folding, deconv reorder)
# ----------------------------------------------------------------------------
def prepare_params(params, *, scale_factor):
    f32 = jnp.float32
    stride = int(scale_factor)

    first_w = jnp.asarray(params["first_w"], f32)          # (d, c_in, k1)
    d, c_in, k1 = first_w.shape
    shrink_w = jnp.asarray(params["shrink_w"], f32)[:, :, 0]  # (s, d)
    s = shrink_w.shape[0]
    sp = ((s + 7) // 8) * 8                                 # channel pad (12->16)
    m = len(params["res"])
    k_res = params["res"][0]["w1"].shape[2]
    assert k_res == 3, "ResnetBlock kernel size 3 expected"
    last_w = jnp.asarray(params["last_w"], f32)             # (d, c_out, k_last)
    _, c_out, k_last = last_w.shape

    kc = k1 * c_in
    kc_p = ((kc + 7) // 8) * 8

    # first conv: flat (tap, ci) ordering, contraction padded to kc_p
    w_first = jnp.transpose(first_w, (0, 2, 1)).reshape(d, kc)
    w_first = jnp.pad(w_first, ((0, 0), (0, kc_p - kc)))
    b_first = jnp.asarray(params["first_b"], f32).reshape(d, 1)

    # shrink / expand 1x1, channel-padded to sp
    w_shrink = jnp.pad(shrink_w, ((0, sp - s), (0, 0)))
    b_shrink = jnp.pad(jnp.asarray(params["shrink_b"], f32),
                       (0, sp - s)).reshape(sp, 1)
    expand_w = jnp.asarray(params["expand_w"], f32)[:, :, 0]   # (d, s)
    w_expand = jnp.pad(expand_w, ((0, 0), (0, sp - s)))
    b_expand = jnp.asarray(params["expand_b"], f32).reshape(d, 1)

    # resnet blocks: per-tap (sp, sp) matrices + folded inference BN
    eps = 1e-5
    res_w, res_scale, res_shift = [], [], []
    for rp in params["res"]:
        sc = jnp.asarray(rp["gamma"], f32) / jnp.sqrt(
            jnp.asarray(rp["rvar"], f32) + eps)
        sh = jnp.asarray(rp["beta"], f32) - sc * jnp.asarray(rp["rmean"], f32)
        for w, b in ((rp["w1"], rp["b1"]), (rp["w2"], rp["b2"])):
            w = jnp.asarray(w, f32)
            for q in range(k_res):
                res_w.append(jnp.pad(w[:, :, q], ((0, sp - s), (0, sp - s))))
            # BN(conv + b) = sc*conv + (sc*b + sh); padded channels get 0 shift
            res_shift.append(jnp.pad(sc * jnp.asarray(b, f32) + sh,
                                     (0, sp - s)).reshape(sp, 1))
        res_scale.append(jnp.pad(sc, (0, sp - s)).reshape(sp, 1))

    # deconv: polyphase weights grouped by lane shift j; rows co*stride+p, pad to 8
    j0 = (k_last - 1) // stride + 1
    rows = c_out * stride
    rows_p = ((rows + 7) // 8) * 8
    wl = jnp.pad(last_w, ((0, 0), (0, 0), (0, stride * j0 - k_last)))
    wl = wl.reshape(d, c_out, j0, stride)                   # tap k = stride*j + p
    w_deconv = jnp.transpose(wl, (2, 1, 3, 0)).reshape(j0, rows, d)
    w_deconv = jnp.pad(w_deconv, ((0, 0), (0, rows_p - rows), (0, 0)))
    b_deconv = jnp.pad(jnp.repeat(jnp.asarray(params["last_b"], f32), stride),
                       (0, rows_p - rows)).reshape(rows_p, 1)

    alphas = jnp.concatenate([
        jnp.asarray([params["first_alpha"], params["shrink_alpha"]], f32),
        jnp.asarray([rp["alpha"] for rp in params["res"]], f32),
        jnp.asarray([params["mid_alpha"], params["expand_alpha"]], f32)])
    assert alphas.shape[0] == m + 4

    prep = dict(w_first=w_first, b_first=b_first,
                w_shrink=w_shrink, b_shrink=b_shrink,
                res_w=jnp.stack(res_w),            # (m*2*3, sp, sp)
                res_scale=jnp.stack(res_scale),    # (m, sp, 1)
                res_shift=jnp.stack(res_shift),    # (m*2, sp, 1)
                w_expand=w_expand, b_expand=b_expand,
                w_deconv=w_deconv, b_deconv=b_deconv,
                alphas=alphas)
    cfg = dict(stride=stride, k_first=k1, k_last=k_last, c_out=c_out,
               kc_p=kc_p, j0=j0, rows_p=rows_p)
    return prep, cfg


# ----------------------------------------------------------------------------
# Forward pass (single fused pallas_call)
# ----------------------------------------------------------------------------
def net_forward(prep, x, *, cfg):
    f32 = jnp.float32
    x = x.astype(f32)
    n, c_in, l_in = x.shape
    stride, k1 = cfg["stride"], cfg["k_first"]
    k_last, c_out = cfg["k_last"], cfg["c_out"]
    kc_p, j0, rows_p = cfg["kc_p"], cfg["j0"], cfg["rows_p"]

    l1 = l_in - (k1 - 1)                 # length after first conv (kept by mid)
    m0 = l1 + j0 - 1                     # per-phase deconv output length
    l_out = (l1 - 1) * stride + k_last

    # per-sample lane segment: >= m0, chosen so B_blk * Lseg == 128
    if m0 <= 128:
        lseg = next(c for c in (8, 16, 32, 64, 128) if c >= m0)
        b_blk = max(1, 128 // lseg)
    else:
        lseg = ((m0 + 127) // 128) * 128
        b_blk = 1
    n_blocks = -(-n // b_blk)
    n_pad = n_blocks * b_blk
    lanes = b_blk * lseg

    # hoisted first-conv im2col, per-segment zero padding to Lseg (cheap XLA)
    xp = jnp.pad(x, ((0, n_pad - n), (0, 0), (0, 0)))
    cols = jnp.concatenate([xp[:, :, q:q + l1] for q in range(k1)], axis=1)
    cols = jnp.pad(cols, ((0, 0), (0, kc_p - k1 * c_in), (0, lseg - l1)))
    col0 = cols.reshape(n_blocks, b_blk, kc_p, lseg).transpose(0, 2, 1, 3)
    col0 = col0.reshape(n_blocks, kc_p, lanes)

    # segment-border masks (left tap / right tap / valid columns)
    pos = jnp.arange(lanes, dtype=jnp.int32) % lseg
    masks = jnp.stack([(pos != 0), (pos != l1 - 1), (pos < l1)]).astype(f32)

    def wspec(a):
        return pl.BlockSpec(a.shape, lambda nb, _nd=a.ndim: (0,) * _nd)

    weights = (masks, prep["w_first"], prep["b_first"], prep["w_shrink"],
               prep["b_shrink"], prep["res_w"], prep["res_scale"],
               prep["res_shift"], prep["w_expand"], prep["b_expand"],
               prep["w_deconv"], prep["b_deconv"])

    out = pl.pallas_call(
        _net_kernel,
        out_shape=jax.ShapeDtypeStruct((n_blocks, rows_p, lanes), f32),
        grid=(n_blocks,),
        in_specs=([pl.BlockSpec((1, kc_p, lanes), lambda nb: (nb, 0, 0))]
                  + [wspec(a) for a in weights]
                  + [pl.BlockSpec(memory_space=pltpu.MemorySpace.SMEM)]),
        out_specs=pl.BlockSpec((1, rows_p, lanes), lambda nb: (nb, 0, 0)),
        compiler_params=pltpu.CompilerParams(
            dimension_semantics=("parallel",)),
    )(col0, *weights, prep["alphas"])

    # de-interleave phases: row co*stride+p, lane b*lseg+mm  ->  t = stride*mm+p
    out = out[:, :c_out * stride, :].reshape(n_blocks, c_out, stride, b_blk, lseg)
    out = out.transpose(0, 3, 1, 4, 2).reshape(n_pad, c_out, lseg * stride)
    return out[:n, :, :l_out]


# ----------------------------------------------------------------------------
# Pure-JAX reference (for correctness check)
# ----------------------------------------------------------------------------
def _conv1d_ref(x, w, b, padding):
    y = jax.lax.conv_general_dilated(
        x, w, window_strides=(1,), padding=[(padding, padding)],
        dimension_numbers=("NCH", "OIH", "NCH"),
        precision=jax.lax.Precision.HIGHEST)
    return y + b[None, :, None]


def _conv_transpose1d_ref(x, w, b, stride):
    k = w.shape[2]
    w_t = jnp.transpose(w[:, :, ::-1], (1, 0, 2))
    y = jax.lax.conv_general_dilated(
        x, w_t, window_strides=(1,), padding=[(k - 1, k - 1)],
        lhs_dilation=(stride,), dimension_numbers=("NCH", "OIH", "NCH"),
        precision=jax.lax.Precision.HIGHEST)
    return y + b[None, :, None]


def net_forward_reference(params, x, *, scale_factor):
    def prelu(v, a):
        return jnp.where(v >= 0.0, v, a * v)

    out = prelu(_conv1d_ref(x, params["first_w"], params["first_b"], 0),
                params["first_alpha"])
    out = prelu(_conv1d_ref(out, params["shrink_w"], params["shrink_b"], 0),
                params["shrink_alpha"])
    for rp in params["res"]:
        sc = rp["gamma"] / jnp.sqrt(rp["rvar"] + 1e-5)
        sh = rp["beta"] - sc * rp["rmean"]

        def bn(v, sc=sc, sh=sh):
            return v * sc[None, :, None] + sh[None, :, None]

        residual = out
        h = prelu(bn(_conv1d_ref(out, rp["w1"], rp["b1"], 1)), rp["alpha"])
        out = bn(_conv1d_ref(h, rp["w2"], rp["b2"], 1)) + residual
    out = prelu(out, params["mid_alpha"])
    out = prelu(_conv1d_ref(out, params["expand_w"], params["expand_b"], 0),
                params["expand_alpha"])
    return _conv_transpose1d_ref(out, params["last_w"], params["last_b"],
                                 scale_factor)


# ----------------------------------------------------------------------------
# Deterministic parameter construction (shapes from Net.__init__: d=56, s=12, m=4)
# ----------------------------------------------------------------------------
def init_params(key, num_channels=1, d=56, s=12, m=4, k_last=25):
    keys = iter(jax.random.split(key, 80))

    def conv_p(c_out, c_in, k, std=0.02):
        w = std * jax.random.normal(next(keys), (c_out, c_in, k), jnp.float32)
        b = 0.01 * jax.random.normal(next(keys), (c_out,), jnp.float32)
        return w, b

    p = {}
    p["first_w"], p["first_b"] = conv_p(d, num_channels, 5)
    p["first_alpha"] = 0.25
    p["shrink_w"], p["shrink_b"] = conv_p(s, d, 1)
    p["shrink_alpha"] = 0.25
    p["res"] = []
    for _ in range(m):
        w1, b1 = conv_p(s, s, 3)
        w2, b2 = conv_p(s, s, 3)
        p["res"].append(dict(
            w1=w1, b1=b1, w2=w2, b2=b2,
            gamma=1.0 + 0.1 * jax.random.normal(next(keys), (s,), jnp.float32),
            beta=0.1 * jax.random.normal(next(keys), (s,), jnp.float32),
            rmean=0.1 * jax.random.normal(next(keys), (s,), jnp.float32),
            rvar=1.0 + 0.1 * jnp.abs(jax.random.normal(next(keys), (s,),
                                                       jnp.float32)),
            alpha=0.25))
    p["mid_alpha"] = 0.25
    p["expand_w"], p["expand_b"] = conv_p(d, s, 1)
    p["expand_alpha"] = 0.25
    # ConvTranspose1d weight (C_in, C_out, K)
    p["last_w"] = 0.02 * jax.random.normal(next(keys),
                                           (d, num_channels, k_last), jnp.float32)
    p["last_b"] = 0.01 * jax.random.normal(next(keys), (num_channels,),
                                           jnp.float32)
    return p


# ----------------------------------------------------------------------------
if __name__ == "__main__":
    key = jax.random.PRNGKey(0)
    pkey, xkey = jax.random.split(key)

    num_channels = 1        # config.num_channels
    scale_factor = 2        # config.scale_factor
    N, L = 2, 32

    params = init_params(pkey, num_channels=num_channels)
    prep, cfg = prepare_params(params, scale_factor=scale_factor)
    x = jax.random.normal(xkey, (N, num_channels, L), jnp.float32)

    fwd = jax.jit(functools.partial(net_forward, cfg=cfg))
    out = jax.block_until_ready(fwd(prep, x))

    # expected length: first conv (K=5, pad=0) -> L-4; mid keeps length;
    # convtranspose: (L-4-1)*scale + 25
    expected_L = ((L - 4) - 1) * scale_factor + 25
    assert out.shape == (N, num_channels, expected_L), out.shape
    assert out.dtype == jnp.float32
    assert bool(jnp.all(jnp.isfinite(out)))

    ref = net_forward_reference(params, x, scale_factor=scale_factor)
    assert ref.shape == out.shape
    max_err = float(jnp.max(jnp.abs(out - ref)))
    assert bool(jnp.allclose(out, ref, rtol=2e-2, atol=1e-4)), max_err

    print("KERNEL_OK")
</pallas_src>

<mosaic_0001>
module attributes {stable_mosaic.version = 11 : i64} {
  func.func @_net_kernel(%arg0: i32, %arg1: memref<1x8x128xf32, #tpu.memory_space<vmem>>, %arg2: memref<3x128xf32, #tpu.memory_space<vmem>>, %arg3: memref<56x8xf32, #tpu.memory_space<vmem>>, %arg4: memref<56x1xf32, #tpu.memory_space<vmem>>, %arg5: memref<16x56xf32, #tpu.memory_space<vmem>>, %arg6: memref<16x1xf32, #tpu.memory_space<vmem>>, %arg7: memref<24x16x16xf32, #tpu.memory_space<vmem>>, %arg8: memref<4x16x1xf32, #tpu.memory_space<vmem>>, %arg9: memref<8x16x1xf32, #tpu.memory_space<vmem>>, %arg10: memref<56x16xf32, #tpu.memory_space<vmem>>, %arg11: memref<56x1xf32, #tpu.memory_space<vmem>>, %arg12: memref<13x8x56xf32, #tpu.memory_space<vmem>>, %arg13: memref<8x1xf32, #tpu.memory_space<vmem>>, %arg14: memref<8xf32, #tpu.memory_space<smem>>, %arg15: memref<1x8x128xf32, #tpu.memory_space<vmem>>) attributes {dimension_semantics = [#tpu.dimension_semantics<parallel>], iteration_bounds = array<i64: 1>, scalar_prefetch = 0 : i64, scratch_operands = 0 : i64, tpu.core_type = #tpu.core_type<tc>, window_params = [{transform_indices = @transform_0, window_bounds = array<i64: 1, 8, 128>}, {pipeline_mode = #tpu.pipeline_mode<synchronous>, transform_indices = @transform_1, window_bounds = array<i64: 3, 128>}, {pipeline_mode = #tpu.pipeline_mode<synchronous>, transform_indices = @transform_2, window_bounds = array<i64: 56, 8>}, {pipeline_mode = #tpu.pipeline_mode<synchronous>, transform_indices = @transform_3, window_bounds = array<i64: 56, 1>}, {pipeline_mode = #tpu.pipeline_mode<synchronous>, transform_indices = @transform_4, window_bounds = array<i64: 16, 56>}, {pipeline_mode = #tpu.pipeline_mode<synchronous>, transform_indices = @transform_5, window_bounds = array<i64: 16, 1>}, {pipeline_mode = #tpu.pipeline_mode<synchronous>, transform_indices = @transform_6, window_bounds = array<i64: 24, 16, 16>}, {pipeline_mode = #tpu.pipeline_mode<synchronous>, transform_indices = @transform_7, window_bounds = array<i64: 4, 16, 1>}, {pipeline_mode = #tpu.pipeline_mode<synchronous>, transform_indices = @transform_8, window_bounds = array<i64: 8, 16, 1>}, {pipeline_mode = #tpu.pipeline_mode<synchronous>, transform_indices = @transform_9, window_bounds = array<i64: 56, 16>}, {pipeline_mode = #tpu.pipeline_mode<synchronous>, transform_indices = @transform_10, window_bounds = array<i64: 56, 1>}, {pipeline_mode = #tpu.pipeline_mode<synchronous>, transform_indices = @transform_11, window_bounds = array<i64: 13, 8, 56>}, {pipeline_mode = #tpu.pipeline_mode<synchronous>, transform_indices = @transform_12, window_bounds = array<i64: 8, 1>}, {transform_indices = @transform_13, window_bounds = array<i64: 8>}, {transform_indices = @transform_14, window_bounds = array<i64: 1, 8, 128>}]} {
    %c0 = arith.constant 0 : index
    %c0_0 = arith.constant 0 : index
    %0 = vector.load %arg2[%c0, %c0_0] : memref<3x128xf32, #tpu.memory_space<vmem>>, vector<1x128xf32>
    %c1 = arith.constant 1 : index
    %c0_1 = arith.constant 0 : index
    %1 = vector.load %arg2[%c1, %c0_1] : memref<3x128xf32, #tpu.memory_space<vmem>>, vector<1x128xf32>
    %c2 = arith.constant 2 : index
    %c0_2 = arith.constant 0 : index
    %2 = vector.load %arg2[%c2, %c0_2] : memref<3x128xf32, #tpu.memory_space<vmem>>, vector<1x128xf32>
    %c0_3 = arith.constant 0 : index
    %c0_4 = arith.constant 0 : index
    %3 = vector.load %arg3[%c0_3, %c0_4] : memref<56x8xf32, #tpu.memory_space<vmem>>, vector<56x8xf32>
    %c0_5 = arith.constant 0 : index
    %c0_6 = arith.constant 0 : index
    %c0_7 = arith.constant 0 : index
    %4 = vector.load %arg1[%c0_5, %c0_6, %c0_7] : memref<1x8x128xf32, #tpu.memory_space<vmem>>, vector<1x8x128xf32>
    %5 = vector.shape_cast %4 : vector<1x8x128xf32> to vector<8x128xf32>
    %cst = arith.constant dense<0.000000e+00> : vector<56x128xf32>
    %6 = tpu.matmul %3, %5, %cst {dimension_numbers = #tpu.dot_dimension_numbers<[1], [0], [0], [1], [0, 0, 1, 1], [], []>} : vector<56x8xf32>, vector<8x128xf32>, vector<56x128xf32> -> vector<56x128xf32>
    %c0_8 = arith.constant 0 : index
    %c0_9 = arith.constant 0 : index
    %7 = vector.load %arg4[%c0_8, %c0_9] : memref<56x1xf32, #tpu.memory_space<vmem>>, vector<56x1xf32>
    %8 = vector.broadcast %7 : vector<56x1xf32> to vector<56x128xf32>
    %9 = arith.addf %6, %8 : vector<56x128xf32>
    %c0_10 = arith.constant 0 : index
    %10 = memref.load %arg14[%c0_10] : memref<8xf32, #tpu.memory_space<smem>>
    %cst_11 = arith.constant 0.000000e+00 : f32
    %11 = vector.broadcast %cst_11 : f32 to vector<56x128xf32>
    %12 = arith.cmpf oge, %9, %11 : vector<56x128xf32>
    %13 = vector.broadcast %10 : f32 to vector<56x128xf32>
    %14 = arith.mulf %13, %9 : vector<56x128xf32>
    %15 = arith.select %12, %9, %14 : vector<56x128xi1>, vector<56x128xf32>
    %c0_12 = arith.constant 0 : index
    %c0_13 = arith.constant 0 : index
    %16 = vector.load %arg5[%c0_12, %c0_13] : memref<16x56xf32, #tpu.memory_space<vmem>>, vector<16x56xf32>
    %cst_14 = arith.constant dense<0.000000e+00> : vector<16x128xf32>
    %17 = tpu.matmul %16, %15, %cst_14 {dimension_numbers = #tpu.dot_dimension_numbers<[1], [0], [0], [1], [0, 0, 1, 1], [], []>} : vector<16x56xf32>, vector<56x128xf32>, vector<16x128xf32> -> vector<16x128xf32>
    %c0_15 = arith.constant 0 : index
    %c0_16 = arith.constant 0 : index
    %18 = vector.load %arg6[%c0_15, %c0_16] : memref<16x1xf32, #tpu.memory_space<vmem>>, vector<16x1xf32>
    %19 = vector.broadcast %18 : vector<16x1xf32> to vector<16x128xf32>
    %20 = arith.addf %17, %19 : vector<16x128xf32>
    %c1_17 = arith.constant 1 : index
    %21 = memref.load %arg14[%c1_17] : memref<8xf32, #tpu.memory_space<smem>>
    %cst_18 = arith.constant 0.000000e+00 : f32
    %22 = vector.broadcast %cst_18 : f32 to vector<16x128xf32>
    %23 = arith.cmpf oge, %20, %22 : vector<16x128xf32>
    %24 = vector.broadcast %21 : f32 to vector<16x128xf32>
    %25 = arith.mulf %24, %20 : vector<16x128xf32>
    %26 = arith.select %23, %20, %25 : vector<16x128xi1>, vector<16x128xf32>
    %c0_19 = arith.constant 0 : index
    %c0_20 = arith.constant 0 : index
    %c0_21 = arith.constant 0 : index
    %27 = vector.load %arg8[%c0_19, %c0_20, %c0_21] : memref<4x16x1xf32, #tpu.memory_space<vmem>>, vector<1x16x1xf32>
    %28 = vector.shape_cast %27 : vector<1x16x1xf32> to vector<16x1xf32>
    %c1_i32 = arith.constant 1 : i32
    %29 = tpu.dynamic_rotate %26 by %c1_i32 dim 1 : vector<16x128xf32>, i32 -> vector<16x128xf32>
    %30 = vector.broadcast %0 : vector<1x128xf32> to vector<16x128xf32>
    %31 = arith.mulf %29, %30 : vector<16x128xf32>
    %c127_i32 = arith.constant 127 : i32
    %32 = tpu.dynamic_rotate %26 by %c127_i32 dim 1 : vector<16x128xf32>, i32 -> vector<16x128xf32>
    %33 = vector.broadcast %1 : vector<1x128xf32> to vector<16x128xf32>
    %34 = arith.mulf %32, %33 : vector<16x128xf32>
    %c0_22 = arith.constant 0 : index
    %c0_23 = arith.constant 0 : index
    %c0_24 = arith.constant 0 : index
    %35 = vector.load %arg7[%c0_22, %c0_23, %c0_24] : memref<24x16x16xf32, #tpu.memory_space<vmem>>, vector<1x16x16xf32>
    %36 = vector.shape_cast %35 : vector<1x16x16xf32> to vector<16x16xf32>
    %cst_25 = arith.constant dense<0.000000e+00> : vector<16x128xf32>
    %37 = tpu.matmul %36, %31, %cst_25 {dimension_numbers = #tpu.dot_dimension_numbers<[1], [0], [0], [1], [0, 0, 1, 1], [], []>} : vector<16x16xf32>, vector<16x128xf32>, vector<16x128xf32> -> vector<16x128xf32>
    %c1_26 = arith.constant 1 : index
    %c0_27 = arith.constant 0 : index
    %c0_28 = arith.constant 0 : index
    %38 = vector.load %arg7[%c1_26, %c0_27, %c0_28] : memref<24x16x16xf32, #tpu.memory_space<vmem>>, vector<1x16x16xf32>
    %39 = vector.shape_cast %38 : vector<1x16x16xf32> to vector<16x16xf32>
    %cst_29 = arith.constant dense<0.000000e+00> : vector<16x128xf32>
    %40 = tpu.matmul %39, %26, %cst_29 {dimension_numbers = #tpu.dot_dimension_numbers<[1], [0], [0], [1], [0, 0, 1, 1], [], []>} : vector<16x16xf32>, vector<16x128xf32>, vector<16x128xf32> -> vector<16x128xf32>
    %41 = arith.addf %37, %40 : vector<16x128xf32>
    %c2_30 = arith.constant 2 : index
    %c0_31 = arith.constant 0 : index
    %c0_32 = arith.constant 0 : index
    %42 = vector.load %arg7[%c2_30, %c0_31, %c0_32] : memref<24x16x16xf32, #tpu.memory_space<vmem>>, vector<1x16x16xf32>
    %43 = vector.shape_cast %42 : vector<1x16x16xf32> to vector<16x16xf32>
    %cst_33 = arith.constant dense<0.000000e+00> : vector<16x128xf32>
    %44 = tpu.matmul %43, %34, %cst_33 {dimension_numbers = #tpu.dot_dimension_numbers<[1], [0], [0], [1], [0, 0, 1, 1], [], []>} : vector<16x16xf32>, vector<16x128xf32>, vector<16x128xf32> -> vector<16x128xf32>
    %45 = arith.addf %41, %44 : vector<16x128xf32>
    %46 = vector.broadcast %28 : vector<16x1xf32> to vector<16x128xf32>
    %47 = arith.mulf %45, %46 : vector<16x128xf32>
    %c0_34 = arith.constant 0 : index
    %c0_35 = arith.constant 0 : index
    %c0_36 = arith.constant 0 : index
    %48 = vector.load %arg9[%c0_34, %c0_35, %c0_36] : memref<8x16x1xf32, #tpu.memory_space<vmem>>, vector<1x16x1xf32>
    %49 = vector.shape_cast %48 : vector<1x16x1xf32> to vector<16x1xf32>
    %50 = vector.broadcast %49 : vector<16x1xf32> to vector<16x128xf32>
    %51 = arith.addf %47, %50 : vector<16x128xf32>
    %c2_37 = arith.constant 2 : index
    %52 = memref.load %arg14[%c2_37] : memref<8xf32, #tpu.memory_space<smem>>
    %cst_38 = arith.constant 0.000000e+00 : f32
    %53 = vector.broadcast %cst_38 : f32 to vector<16x128xf32>
    %54 = arith.cmpf oge, %51, %53 : vector<16x128xf32>
    %55 = vector.broadcast %52 : f32 to vector<16x128xf32>
    %56 = arith.mulf %55, %51 : vector<16x128xf32>
    %57 = arith.select %54, %51, %56 : vector<16x128xi1>, vector<16x128xf32>
    %c1_i32_39 = arith.constant 1 : i32
    %58 = tpu.dynamic_rotate %57 by %c1_i32_39 dim 1 : vector<16x128xf32>, i32 -> vector<16x128xf32>
    %59 = vector.broadcast %0 : vector<1x128xf32> to vector<16x128xf32>
    %60 = arith.mulf %58, %59 : vector<16x128xf32>
    %c127_i32_40 = arith.constant 127 : i32
    %61 = tpu.dynamic_rotate %57 by %c127_i32_40 dim 1 : vector<16x128xf32>, i32 -> vector<16x128xf32>
    %62 = vector.broadcast %1 : vector<1x128xf32> to vector<16x128xf32>
    %63 = arith.mulf %61, %62 : vector<16x128xf32>
    %c3 = arith.constant 3 : index
    %c0_41 = arith.constant 0 : index
    %c0_42 = arith.constant 0 : index
    %64 = vector.load %arg7[%c3, %c0_41, %c0_42] : memref<24x16x16xf32, #tpu.memory_space<vmem>>, vector<1x16x16xf32>
    %65 = vector.shape_cast %64 : vector<1x16x16xf32> to vector<16x16xf32>
    %cst_43 = arith.constant dense<0.000000e+00> : vector<16x128xf32>
    %66 = tpu.matmul %65, %60, %cst_43 {dimension_numbers = #tpu.dot_dimension_numbers<[1], [0], [0], [1], [0, 0, 1, 1], [], []>} : vector<16x16xf32>, vector<16x128xf32>, vector<16x128xf32> -> vector<16x128xf32>
    %c4 = arith.constant 4 : index
    %c0_44 = arith.constant 0 : index
    %c0_45 = arith.constant 0 : index
    %67 = vector.load %arg7[%c4, %c0_44, %c0_45] : memref<24x16x16xf32, #tpu.memory_space<vmem>>, vector<1x16x16xf32>
    %68 = vector.shape_cast %67 : vector<1x16x16xf32> to vector<16x16xf32>
    %cst_46 = arith.constant dense<0.000000e+00> : vector<16x128xf32>
    %69 = tpu.matmul %68, %57, %cst_46 {dimension_numbers = #tpu.dot_dimension_numbers<[1], [0], [0], [1], [0, 0, 1, 1], [], []>} : vector<16x16xf32>, vector<16x128xf32>, vector<16x128xf32> -> vector<16x128xf32>
    %70 = arith.addf %66, %69 : vector<16x128xf32>
    %c5 = arith.constant 5 : index
    %c0_47 = arith.constant 0 : index
    %c0_48 = arith.constant 0 : index
    %71 = vector.load %arg7[%c5, %c0_47, %c0_48] : memref<24x16x16xf32, #tpu.memory_space<vmem>>, vector<1x16x16xf32>
    %72 = vector.shape_cast %71 : vector<1x16x16xf32> to vector<16x16xf32>
    %cst_49 = arith.constant dense<0.000000e+00> : vector<16x128xf32>
    %73 = tpu.matmul %72, %63, %cst_49 {dimension_numbers = #tpu.dot_dimension_numbers<[1], [0], [0], [1], [0, 0, 1, 1], [], []>} : vector<16x16xf32>, vector<16x128xf32>, vector<16x128xf32> -> vector<16x128xf32>
    %74 = arith.addf %70, %73 : vector<16x128xf32>
    %75 = vector.broadcast %28 : vector<16x1xf32> to vector<16x128xf32>
    %76 = arith.mulf %74, %75 : vector<16x128xf32>
    %c1_50 = arith.constant 1 : index
    %c0_51 = arith.constant 0 : index
    %c0_52 = arith.constant 0 : index
    %77 = vector.load %arg9[%c1_50, %c0_51, %c0_52] : memref<8x16x1xf32, #tpu.memory_space<vmem>>, vector<1x16x1xf32>
    %78 = vector.shape_cast %77 : vector<1x16x1xf32> to vector<16x1xf32>
    %79 = vector.broadcast %78 : vector<16x1xf32> to vector<16x128xf32>
    %80 = arith.addf %76, %79 : vector<16x128xf32>
    %81 = arith.addf %80, %26 : vector<16x128xf32>
    %c1_53 = arith.constant 1 : index
    %c0_54 = arith.constant 0 : index
    %c0_55 = arith.constant 0 : index
    %82 = vector.load %arg8[%c1_53, %c0_54, %c0_55] : memref<4x16x1xf32, #tpu.memory_space<vmem>>, vector<1x16x1xf32>
    %83 = vector.shape_cast %82 : vector<1x16x1xf32> to vector<16x1xf32>
    %c1_i32_56 = arith.constant 1 : i32
    %84 = tpu.dynamic_rotate %81 by %c1_i32_56 dim 1 : vector<16x128xf32>, i32 -> vector<16x128xf32>
    %85 = vector.broadcast %0 : vector<1x128xf32> to vector<16x128xf32>
    %86 = arith.mulf %84, %85 : vector<16x128xf32>
    %c127_i32_57 = arith.constant 127 : i32
    %87 = tpu.dynamic_rotate %81 by %c127_i32_57 dim 1 : vector<16x128xf32>, i32 -> vector<16x128xf32>
    %88 = vector.broadcast %1 : vector<1x128xf32> to vector<16x128xf32>
    %89 = arith.mulf %87, %88 : vector<16x128xf32>
    %c6 = arith.constant 6 : index
    %c0_58 = arith.constant 0 : index
    %c0_59 = arith.constant 0 : index
    %90 = vector.load %arg7[%c6, %c0_58, %c0_59] : memref<24x16x16xf32, #tpu.memory_space<vmem>>, vector<1x16x16xf32>
    %91 = vector.shape_cast %90 : vector<1x16x16xf32> to vector<16x16xf32>
    %cst_60 = arith.constant dense<0.000000e+00> : vector<16x128xf32>
    %92 = tpu.matmul %91, %86, %cst_60 {dimension_numbers = #tpu.dot_dimension_numbers<[1], [0], [0], [1], [0, 0, 1, 1], [], []>} : vector<16x16xf32>, vector<16x128xf32>, vector<16x128xf32> -> vector<16x128xf32>
    %c7 = arith.constant 7 : index
    %c0_61 = arith.constant 0 : index
    %c0_62 = arith.constant 0 : index
    %93 = vector.load %arg7[%c7, %c0_61, %c0_62] : memref<24x16x16xf32, #tpu.memory_space<vmem>>, vector<1x16x16xf32>
    %94 = vector.shape_cast %93 : vector<1x16x16xf32> to vector<16x16xf32>
    %cst_63 = arith.constant dense<0.000000e+00> : vector<16x128xf32>
    %95 = tpu.matmul %94, %81, %cst_63 {dimension_numbers = #tpu.dot_dimension_numbers<[1], [0], [0], [1], [0, 0, 1, 1], [], []>} : vector<16x16xf32>, vector<16x128xf32>, vector<16x128xf32> -> vector<16x128xf32>
    %96 = arith.addf %92, %95 : vector<16x128xf32>
    %c8 = arith.constant 8 : index
    %c0_64 = arith.constant 0 : index
    %c0_65 = arith.constant 0 : index
    %97 = vector.load %arg7[%c8, %c0_64, %c0_65] : memref<24x16x16xf32, #tpu.memory_space<vmem>>, vector<1x16x16xf32>
    %98 = vector.shape_cast %97 : vector<1x16x16xf32> to vector<16x16xf32>
    %cst_66 = arith.constant dense<0.000000e+00> : vector<16x128xf32>
    %99 = tpu.matmul %98, %89, %cst_66 {dimension_numbers = #tpu.dot_dimension_numbers<[1], [0], [0], [1], [0, 0, 1, 1], [], []>} : vector<16x16xf32>, vector<16x128xf32>, vector<16x128xf32> -> vector<16x128xf32>
    %100 = arith.addf %96, %99 : vector<16x128xf32>
    %101 = vector.broadcast %83 : vector<16x1xf32> to vector<16x128xf32>
    %102 = arith.mulf %100, %101 : vector<16x128xf32>
    %c2_67 = arith.constant 2 : index
    %c0_68 = arith.constant 0 : index
    %c0_69 = arith.constant 0 : index
    %103 = vector.load %arg9[%c2_67, %c0_68, %c0_69] : memref<8x16x1xf32, #tpu.memory_space<vmem>>, vector<1x16x1xf32>
    %104 = vector.shape_cast %103 : vector<1x16x1xf32> to vector<16x1xf32>
    %105 = vector.broadcast %104 : vector<16x1xf32> to vector<16x128xf32>
    %106 = arith.addf %102, %105 : vector<16x128xf32>
    %c3_70 = arith.constant 3 : index
    %107 = memref.load %arg14[%c3_70] : memref<8xf32, #tpu.memory_space<smem>>
    %cst_71 = arith.constant 0.000000e+00 : f32
    %108 = vector.broadcast %cst_71 : f32 to vector<16x128xf32>
    %109 = arith.cmpf oge, %106, %108 : vector<16x128xf32>
    %110 = vector.broadcast %107 : f32 to vector<16x128xf32>
    %111 = arith.mulf %110, %106 : vector<16x128xf32>
    %112 = arith.select %109, %106, %111 : vector<16x128xi1>, vector<16x128xf32>
    %c1_i32_72 = arith.constant 1 : i32
    %113 = tpu.dynamic_rotate %112 by %c1_i32_72 dim 1 : vector<16x128xf32>, i32 -> vector<16x128xf32>
    %114 = vector.broadcast %0 : vector<1x128xf32> to vector<16x128xf32>
    %115 = arith.mulf %113, %114 : vector<16x128xf32>
    %c127_i32_73 = arith.constant 127 : i32
    %116 = tpu.dynamic_rotate %112 by %c127_i32_73 dim 1 : vector<16x128xf32>, i32 -> vector<16x128xf32>
    %117 = vector.broadcast %1 : vector<1x128xf32> to vector<16x128xf32>
    %118 = arith.mulf %116, %117 : vector<16x128xf32>
    %c9 = arith.constant 9 : index
    %c0_74 = arith.constant 0 : index
    %c0_75 = arith.constant 0 : index
    %119 = vector.load %arg7[%c9, %c0_74, %c0_75] : memref<24x16x16xf32, #tpu.memory_space<vmem>>, vector<1x16x16xf32>
    %120 = vector.shape_cast %119 : vector<1x16x16xf32> to vector<16x16xf32>
    %cst_76 = arith.constant dense<0.000000e+00> : vector<16x128xf32>
    %121 = tpu.matmul %120, %115, %cst_76 {dimension_numbers = #tpu.dot_dimension_numbers<[1], [0], [0], [1], [0, 0, 1, 1], [], []>} : vector<16x16xf32>, vector<16x128xf32>, vector<16x128xf32> -> vector<16x128xf32>
    %c10 = arith.constant 10 : index
    %c0_77 = arith.constant 0 : index
    %c0_78 = arith.constant 0 : index
    %122 = vector.load %arg7[%c10, %c0_77, %c0_78] : memref<24x16x16xf32, #tpu.memory_space<vmem>>, vector<1x16x16xf32>
    %123 = vector.shape_cast %122 : vector<1x16x16xf32> to vector<16x16xf32>
    %cst_79 = arith.constant dense<0.000000e+00> : vector<16x128xf32>
    %124 = tpu.matmul %123, %112, %cst_79 {dimension_numbers = #tpu.dot_dimension_numbers<[1], [0], [0], [1], [0, 0, 1, 1], [], []>} : vector<16x16xf32>, vector<16x128xf32>, vector<16x128xf32> -> vector<16x128xf32>
    %125 = arith.addf %121, %124 : vector<16x128xf32>
    %c11 = arith.constant 11 : index
    %c0_80 = arith.constant 0 : index
    %c0_81 = arith.constant 0 : index
    %126 = vector.load %arg7[%c11, %c0_80, %c0_81] : memref<24x16x16xf32, #tpu.memory_space<vmem>>, vector<1x16x16xf32>
    %127 = vector.shape_cast %126 : vector<1x16x16xf32> to vector<16x16xf32>
    %cst_82 = arith.constant dense<0.000000e+00> : vector<16x128xf32>
    %128 = tpu.matmul %127, %118, %cst_82 {dimension_numbers = #tpu.dot_dimension_numbers<[1], [0], [0], [1], [0, 0, 1, 1], [], []>} : vector<16x16xf32>, vector<16x128xf32>, vector<16x128xf32> -> vector<16x128xf32>
    %129 = arith.addf %125, %128 : vector<16x128xf32>
    %130 = vector.broadcast %83 : vector<16x1xf32> to vector<16x128xf32>
    %131 = arith.mulf %129, %130 : vector<16x128xf32>
    %c3_83 = arith.constant 3 : index
    %c0_84 = arith.constant 0 : index
    %c0_85 = arith.constant 0 : index
    %132 = vector.load %arg9[%c3_83, %c0_84, %c0_85] : memref<8x16x1xf32, #tpu.memory_space<vmem>>, vector<1x16x1xf32>
    %133 = vector.shape_cast %132 : vector<1x16x1xf32> to vector<16x1xf32>
    %134 = vector.broadcast %133 : vector<16x1xf32> to vector<16x128xf32>
    %135 = arith.addf %131, %134 : vector<16x128xf32>
    %136 = arith.addf %135, %81 : vector<16x128xf32>
    %c2_86 = arith.constant 2 : index
    %c0_87 = arith.constant 0 : index
    %c0_88 = arith.constant 0 : index
    %137 = vector.load %arg8[%c2_86, %c0_87, %c0_88] : memref<4x16x1xf32, #tpu.memory_space<vmem>>, vector<1x16x1xf32>
    %138 = vector.shape_cast %137 : vector<1x16x1xf32> to vector<16x1xf32>
    %c1_i32_89 = arith.constant 1 : i32
    %139 = tpu.dynamic_rotate %136 by %c1_i32_89 dim 1 : vector<16x128xf32>, i32 -> vector<16x128xf32>
    %140 = vector.broadcast %0 : vector<1x128xf32> to vector<16x128xf32>
    %141 = arith.mulf %139, %140 : vector<16x128xf32>
    %c127_i32_90 = arith.constant 127 : i32
    %142 = tpu.dynamic_rotate %136 by %c127_i32_90 dim 1 : vector<16x128xf32>, i32 -> vector<16x128xf32>
    %143 = vector.broadcast %1 : vector<1x128xf32> to vector<16x128xf32>
    %144 = arith.mulf %142, %143 : vector<16x128xf32>
    %c12 = arith.constant 12 : index
    %c0_91 = arith.constant 0 : index
    %c0_92 = arith.constant 0 : index
    %145 = vector.load %arg7[%c12, %c0_91, %c0_92] : memref<24x16x16xf32, #tpu.memory_space<vmem>>, vector<1x16x16xf32>
    %146 = vector.shape_cast %145 : vector<1x16x16xf32> to vector<16x16xf32>
    %cst_93 = arith.constant dense<0.000000e+00> : vector<16x128xf32>
    %147 = tpu.matmul %146, %141, %cst_93 {dimension_numbers = #tpu.dot_dimension_numbers<[1], [0], [0], [1], [0, 0, 1, 1], [], []>} : vector<16x16xf32>, vector<16x128xf32>, vector<16x128xf32> -> vector<16x128xf32>
    %c13 = arith.constant 13 : index
    %c0_94 = arith.constant 0 : index
    %c0_95 = arith.constant 0 : index
    %148 = vector.load %arg7[%c13, %c0_94, %c0_95] : memref<24x16x16xf32, #tpu.memory_space<vmem>>, vector<1x16x16xf32>
    %149 = vector.shape_cast %148 : vector<1x16x16xf32> to vector<16x16xf32>
    %cst_96 = arith.constant dense<0.000000e+00> : vector<16x128xf32>
    %150 = tpu.matmul %149, %136, %cst_96 {dimension_numbers = #tpu.dot_dimension_numbers<[1], [0], [0], [1], [0, 0, 1, 1], [], []>} : vector<16x16xf32>, vector<16x128xf32>, vector<16x128xf32> -> vector<16x128xf32>
    %151 = arith.addf %147, %150 : vector<16x128xf32>
    %c14 = arith.constant 14 : index
    %c0_97 = arith.constant 0 : index
    %c0_98 = arith.constant 0 : index
    %152 = vector.load %arg7[%c14, %c0_97, %c0_98] : memref<24x16x16xf32, #tpu.memory_space<vmem>>, vector<1x16x16xf32>
    %153 = vector.shape_cast %152 : vector<1x16x16xf32> to vector<16x16xf32>
    %cst_99 = arith.constant dense<0.000000e+00> : vector<16x128xf32>
    %154 = tpu.matmul %153, %144, %cst_99 {dimension_numbers = #tpu.dot_dimension_numbers<[1], [0], [0], [1], [0, 0, 1, 1], [], []>} : vector<16x16xf32>, vector<16x128xf32>, vector<16x128xf32> -> vector<16x128xf32>
    %155 = arith.addf %151, %154 : vector<16x128xf32>
    %156 = vector.broadcast %138 : vector<16x1xf32> to vector<16x128xf32>
    %157 = arith.mulf %155, %156 : vector<16x128xf32>
    %c4_100 = arith.constant 4 : index
    %c0_101 = arith.constant 0 : index
    %c0_102 = arith.constant 0 : index
    %158 = vector.load %arg9[%c4_100, %c0_101, %c0_102] : memref<8x16x1xf32, #tpu.memory_space<vmem>>, vector<1x16x1xf32>
    %159 = vector.shape_cast %158 : vector<1x16x1xf32> to vector<16x1xf32>
    %160 = vector.broadcast %159 : vector<16x1xf32> to vector<16x128xf32>
    %161 = arith.addf %157, %160 : vector<16x128xf32>
    %c4_103 = arith.constant 4 : index
    %162 = memref.load %arg14[%c4_103] : memref<8xf32, #tpu.memory_space<smem>>
    %cst_104 = arith.constant 0.000000e+00 : f32
    %163 = vector.broadcast %cst_104 : f32 to vector<16x128xf32>
    %164 = arith.cmpf oge, %161, %163 : vector<16x128xf32>
    %165 = vector.broadcast %162 : f32 to vector<16x128xf32>
    %166 = arith.mulf %165, %161 : vector<16x128xf32>
    %167 = arith.select %164, %161, %166 : vector<16x128xi1>, vector<16x128xf32>
    %c1_i32_105 = arith.constant 1 : i32
    %168 = tpu.dynamic_rotate %167 by %c1_i32_105 dim 1 : vector<16x128xf32>, i32 -> vector<16x128xf32>
    %169 = vector.broadcast %0 : vector<1x128xf32> to vector<16x128xf32>
    %170 = arith.mulf %168, %169 : vector<16x128xf32>
    %c127_i32_106 = arith.constant 127 : i32
    %171 = tpu.dynamic_rotate %167 by %c127_i32_106 dim 1 : vector<16x128xf32>, i32 -> vector<16x128xf32>
    %172 = vector.broadcast %1 : vector<1x128xf32> to vector<16x128xf32>
    %173 = arith.mulf %171, %172 : vector<16x128xf32>
    %c15 = arith.constant 15 : index
    %c0_107 = arith.constant 0 : index
    %c0_108 = arith.constant 0 : index
    %174 = vector.load %arg7[%c15, %c0_107, %c0_108] : memref<24x16x16xf32, #tpu.memory_space<vmem>>, vector<1x16x16xf32>
    %175 = vector.shape_cast %174 : vector<1x16x16xf32> to vector<16x16xf32>
    %cst_109 = arith.constant dense<0.000000e+00> : vector<16x128xf32>
    %176 = tpu.matmul %175, %170, %cst_109 {dimension_numbers = #tpu.dot_dimension_numbers<[1], [0], [0], [1], [0, 0, 1, 1], [], []>} : vector<16x16xf32>, vector<16x128xf32>, vector<16x128xf32> -> vector<16x128xf32>
    %c16 = arith.constant 16 : index
    %c0_110 = arith.constant 0 : index
    %c0_111 = arith.constant 0 : index
    %177 = vector.load %arg7[%c16, %c0_110, %c0_111] : memref<24x16x16xf32, #tpu.memory_space<vmem>>, vector<1x16x16xf32>
    %178 = vector.shape_cast %177 : vector<1x16x16xf32> to vector<16x16xf32>
    %cst_112 = arith.constant dense<0.000000e+00> : vector<16x128xf32>
    %179 = tpu.matmul %178, %167, %cst_112 {dimension_numbers = #tpu.dot_dimension_numbers<[1], [0], [0], [1], [0, 0, 1, 1], [], []>} : vector<16x16xf32>, vector<16x128xf32>, vector<16x128xf32> -> vector<16x128xf32>
    %180 = arith.addf %176, %179 : vector<16x128xf32>
    %c17 = arith.constant 17 : index
    %c0_113 = arith.constant 0 : index
    %c0_114 = arith.constant 0 : index
    %181 = vector.load %arg7[%c17, %c0_113, %c0_114] : memref<24x16x16xf32, #tpu.memory_space<vmem>>, vector<1x16x16xf32>
    %182 = vector.shape_cast %181 : vector<1x16x16xf32> to vector<16x16xf32>
    %cst_115 = arith.constant dense<0.000000e+00> : vector<16x128xf32>
    %183 = tpu.matmul %182, %173, %cst_115 {dimension_numbers = #tpu.dot_dimension_numbers<[1], [0], [0], [1], [0, 0, 1, 1], [], []>} : vector<16x16xf32>, vector<16x128xf32>, vector<16x128xf32> -> vector<16x128xf32>
    %184 = arith.addf %180, %183 : vector<16x128xf32>
    %185 = vector.broadcast %138 : vector<16x1xf32> to vector<16x128xf32>
    %186 = arith.mulf %184, %185 : vector<16x128xf32>
    %c5_116 = arith.constant 5 : index
    %c0_117 = arith.constant 0 : index
    %c0_118 = arith.constant 0 : index
    %187 = vector.load %arg9[%c5_116, %c0_117, %c0_118] : memref<8x16x1xf32, #tpu.memory_space<vmem>>, vector<1x16x1xf32>
    %188 = vector.shape_cast %187 : vector<1x16x1xf32> to vector<16x1xf32>
    %189 = vector.broadcast %188 : vector<16x1xf32> to vector<16x128xf32>
    %190 = arith.addf %186, %189 : vector<16x128xf32>
    %191 = arith.addf %190, %136 : vector<16x128xf32>
    %c3_119 = arith.constant 3 : index
    %c0_120 = arith.constant 0 : index
    %c0_121 = arith.constant 0 : index
    %192 = vector.load %arg8[%c3_119, %c0_120, %c0_121] : memref<4x16x1xf32, #tpu.memory_space<vmem>>, vector<1x16x1xf32>
    %193 = vector.shape_cast %192 : vector<1x16x1xf32> to vector<16x1xf32>
    %c1_i32_122 = arith.constant 1 : i32
    %194 = tpu.dynamic_rotate %191 by %c1_i32_122 dim 1 : vector<16x128xf32>, i32 -> vector<16x128xf32>
    %195 = vector.broadcast %0 : vector<1x128xf32> to vector<16x128xf32>
    %196 = arith.mulf %194, %195 : vector<16x128xf32>
    %c127_i32_123 = arith.constant 127 : i32
    %197 = tpu.dynamic_rotate %191 by %c127_i32_123 dim 1 : vector<16x128xf32>, i32 -> vector<16x128xf32>
    %198 = vector.broadcast %1 : vector<1x128xf32> to vector<16x128xf32>
    %199 = arith.mulf %197, %198 : vector<16x128xf32>
    %c18 = arith.constant 18 : index
    %c0_124 = arith.constant 0 : index
    %c0_125 = arith.constant 0 : index
    %200 = vector.load %arg7[%c18, %c0_124, %c0_125] : memref<24x16x16xf32, #tpu.memory_space<vmem>>, vector<1x16x16xf32>
    %201 = vector.shape_cast %200 : vector<1x16x16xf32> to vector<16x16xf32>
    %cst_126 = arith.constant dense<0.000000e+00> : vector<16x128xf32>
    %202 = tpu.matmul %201, %196, %cst_126 {dimension_numbers = #tpu.dot_dimension_numbers<[1], [0], [0], [1], [0, 0, 1, 1], [], []>} : vector<16x16xf32>, vector<16x128xf32>, vector<16x128xf32> -> vector<16x128xf32>
    %c19 = arith.constant 19 : index
    %c0_127 = arith.constant 0 : index
    %c0_128 = arith.constant 0 : index
    %203 = vector.load %arg7[%c19, %c0_127, %c0_128] : memref<24x16x16xf32, #tpu.memory_space<vmem>>, vector<1x16x16xf32>
    %204 = vector.shape_cast %203 : vector<1x16x16xf32> to vector<16x16xf32>
    %cst_129 = arith.constant dense<0.000000e+00> : vector<16x128xf32>
    %205 = tpu.matmul %204, %191, %cst_129 {dimension_numbers = #tpu.dot_dimension_numbers<[1], [0], [0], [1], [0, 0, 1, 1], [], []>} : vector<16x16xf32>, vector<16x128xf32>, vector<16x128xf32> -> vector<16x128xf32>
    %206 = arith.addf %202, %205 : vector<16x128xf32>
    %c20 = arith.constant 20 : index
    %c0_130 = arith.constant 0 : index
    %c0_131 = arith.constant 0 : index
    %207 = vector.load %arg7[%c20, %c0_130, %c0_131] : memref<24x16x16xf32, #tpu.memory_space<vmem>>, vector<1x16x16xf32>
    %208 = vector.shape_cast %207 : vector<1x16x16xf32> to vector<16x16xf32>
    %cst_132 = arith.constant dense<0.000000e+00> : vector<16x128xf32>
    %209 = tpu.matmul %208, %199, %cst_132 {dimension_numbers = #tpu.dot_dimension_numbers<[1], [0], [0], [1], [0, 0, 1, 1], [], []>} : vector<16x16xf32>, vector<16x128xf32>, vector<16x128xf32> -> vector<16x128xf32>
    %210 = arith.addf %206, %209 : vector<16x128xf32>
    %211 = vector.broadcast %193 : vector<16x1xf32> to vector<16x128xf32>
    %212 = arith.mulf %210, %211 : vector<16x128xf32>
    %c6_133 = arith.constant 6 : index
    %c0_134 = arith.constant 0 : index
    %c0_135 = arith.constant 0 : index
    %213 = vector.load %arg9[%c6_133, %c0_134, %c0_135] : memref<8x16x1xf32, #tpu.memory_space<vmem>>, vector<1x16x1xf32>
    %214 = vector.shape_cast %213 : vector<1x16x1xf32> to vector<16x1xf32>
    %215 = vector.broadcast %214 : vector<16x1xf32> to vector<16x128xf32>
    %216 = arith.addf %212, %215 : vector<16x128xf32>
    %c5_136 = arith.constant 5 : index
    %217 = memref.load %arg14[%c5_136] : memref<8xf32, #tpu.memory_space<smem>>
    %cst_137 = arith.constant 0.000000e+00 : f32
    %218 = vector.broadcast %cst_137 : f32 to vector<16x128xf32>
    %219 = arith.cmpf oge, %216, %218 : vector<16x128xf32>
    %220 = vector.broadcast %217 : f32 to vector<16x128xf32>
    %221 = arith.mulf %220, %216 : vector<16x128xf32>
    %222 = arith.select %219, %216, %221 : vector<16x128xi1>, vector<16x128xf32>
    %c1_i32_138 = arith.constant 1 : i32
    %223 = tpu.dynamic_rotate %222 by %c1_i32_138 dim 1 : vector<16x128xf32>, i32 -> vector<16x128xf32>
    %224 = vector.broadcast %0 : vector<1x128xf32> to vector<16x128xf32>
    %225 = arith.mulf %223, %224 : vector<16x128xf32>
    %c127_i32_139 = arith.constant 127 : i32
    %226 = tpu.dynamic_rotate %222 by %c127_i32_139 dim 1 : vector<16x128xf32>, i32 -> vector<16x128xf32>
    %227 = vector.broadcast %1 : vector<1x128xf32> to vector<16x128xf32>
    %228 = arith.mulf %226, %227 : vector<16x128xf32>
    %c21 = arith.constant 21 : index
    %c0_140 = arith.constant 0 : index
    %c0_141 = arith.constant 0 : index
    %229 = vector.load %arg7[%c21, %c0_140, %c0_141] : memref<24x16x16xf32, #tpu.memory_space<vmem>>, vector<1x16x16xf32>
    %230 = vector.shape_cast %229 : vector<1x16x16xf32> to vector<16x16xf32>
    %cst_142 = arith.constant dense<0.000000e+00> : vector<16x128xf32>
    %231 = tpu.matmul %230, %225, %cst_142 {dimension_numbers = #tpu.dot_dimension_numbers<[1], [0], [0], [1], [0, 0, 1, 1], [], []>} : vector<16x16xf32>, vector<16x128xf32>, vector<16x128xf32> -> vector<16x128xf32>
    %c22 = arith.constant 22 : index
    %c0_143 = arith.constant 0 : index
    %c0_144 = arith.constant 0 : index
    %232 = vector.load %arg7[%c22, %c0_143, %c0_144] : memref<24x16x16xf32, #tpu.memory_space<vmem>>, vector<1x16x16xf32>
    %233 = vector.shape_cast %232 : vector<1x16x16xf32> to vector<16x16xf32>
    %cst_145 = arith.constant dense<0.000000e+00> : vector<16x128xf32>
    %234 = tpu.matmul %233, %222, %cst_145 {dimension_numbers = #tpu.dot_dimension_numbers<[1], [0], [0], [1], [0, 0, 1, 1], [], []>} : vector<16x16xf32>, vector<16x128xf32>, vector<16x128xf32> -> vector<16x128xf32>
    %235 = arith.addf %231, %234 : vector<16x128xf32>
    %c23 = arith.constant 23 : index
    %c0_146 = arith.constant 0 : index
    %c0_147 = arith.constant 0 : index
    %236 = vector.load %arg7[%c23, %c0_146, %c0_147] : memref<24x16x16xf32, #tpu.memory_space<vmem>>, vector<1x16x16xf32>
    %237 = vector.shape_cast %236 : vector<1x16x16xf32> to vector<16x16xf32>
    %cst_148 = arith.constant dense<0.000000e+00> : vector<16x128xf32>
    %238 = tpu.matmul %237, %228, %cst_148 {dimension_numbers = #tpu.dot_dimension_numbers<[1], [0], [0], [1], [0, 0, 1, 1], [], []>} : vector<16x16xf32>, vector<16x128xf32>, vector<16x128xf32> -> vector<16x128xf32>
    %239 = arith.addf %235, %238 : vector<16x128xf32>
    %240 = vector.broadcast %193 : vector<16x1xf32> to vector<16x128xf32>
    %241 = arith.mulf %239, %240 : vector<16x128xf32>
    %c7_149 = arith.constant 7 : index
    %c0_150 = arith.constant 0 : index
    %c0_151 = arith.constant 0 : index
    %242 = vector.load %arg9[%c7_149, %c0_150, %c0_151] : memref<8x16x1xf32, #tpu.memory_space<vmem>>, vector<1x16x1xf32>
    %243 = vector.shape_cast %242 : vector<1x16x1xf32> to vector<16x1xf32>
    %244 = vector.broadcast %243 : vector<16x1xf32> to vector<16x128xf32>
    %245 = arith.addf %241, %244 : vector<16x128xf32>
    %246 = arith.addf %245, %191 : vector<16x128xf32>
    %c6_152 = arith.constant 6 : index
    %247 = memref.load %arg14[%c6_152] : memref<8xf32, #tpu.memory_space<smem>>
    %cst_153 = arith.constant 0.000000e+00 : f32
    %248 = vector.broadcast %cst_153 : f32 to vector<16x128xf32>
    %249 = arith.cmpf oge, %246, %248 : vector<16x128xf32>
    %250 = vector.broadcast %247 : f32 to vector<16x128xf32>
    %251 = arith.mulf %250, %246 : vector<16x128xf32>
    %252 = arith.select %249, %246, %251 : vector<16x128xi1>, vector<16x128xf32>
    %c0_154 = arith.constant 0 : index
    %c0_155 = arith.constant 0 : index
    %253 = vector.load %arg10[%c0_154, %c0_155] : memref<56x16xf32, #tpu.memory_space<vmem>>, vector<56x16xf32>
    %cst_156 = arith.constant dense<0.000000e+00> : vector<56x128xf32>
    %254 = tpu.matmul %253, %252, %cst_156 {dimension_numbers = #tpu.dot_dimension_numbers<[1], [0], [0], [1], [0, 0, 1, 1], [], []>} : vector<56x16xf32>, vector<16x128xf32>, vector<56x128xf32> -> vector<56x128xf32>
    %c0_157 = arith.constant 0 : index
    %c0_158 = arith.constant 0 : index
    %255 = vector.load %arg11[%c0_157, %c0_158] : memref<56x1xf32, #tpu.memory_space<vmem>>, vector<56x1xf32>
    %256 = vector.broadcast %255 : vector<56x1xf32> to vector<56x128xf32>
    %257 = arith.addf %254, %256 : vector<56x128xf32>
    %c7_159 = arith.constant 7 : index
    %258 = memref.load %arg14[%c7_159] : memref<8xf32, #tpu.memory_space<smem>>
    %cst_160 = arith.constant 0.000000e+00 : f32
    %259 = vector.broadcast %cst_160 : f32 to vector<56x128xf32>
    %260 = arith.cmpf oge, %257, %259 : vector<56x128xf32>
    %261 = vector.broadcast %258 : f32 to vector<56x128xf32>
    %262 = arith.mulf %261, %257 : vector<56x128xf32>
    %263 = arith.select %260, %257, %262 : vector<56x128xi1>, vector<56x128xf32>
    %264 = vector.broadcast %2 : vector<1x128xf32> to vector<56x128xf32>
    %265 = arith.mulf %263, %264 : vector<56x128xf32>
    %c0_161 = arith.constant 0 : index
    %c0_162 = arith.constant 0 : index
    %c0_163 = arith.constant 0 : index
    %266 = vector.load %arg12[%c0_161, %c0_162, %c0_163] : memref<13x8x56xf32, #tpu.memory_space<vmem>>, vector<1x8x56xf32>
    %267 = vector.shape_cast %266 : vector<1x8x56xf32> to vector<8x56xf32>
    %cst_164 = arith.constant dense<0.000000e+00> : vector<8x128xf32>
    %268 = tpu.matmul %267, %265, %cst_164 {dimension_numbers = #tpu.dot_dimension_numbers<[1], [0], [0], [1], [0, 0, 1, 1], [], []>} : vector<8x56xf32>, vector<56x128xf32>, vector<8x128xf32> -> vector<8x128xf32>
    %c0_165 = arith.constant 0 : index
    %c0_166 = arith.constant 0 : index
    %269 = vector.load %arg13[%c0_165, %c0_166] : memref<8x1xf32, #tpu.memory_space<vmem>>, vector<8x1xf32>
    %270 = vector.broadcast %269 : vector<8x1xf32> to vector<8x128xf32>
    %271 = arith.addf %268, %270 : vector<8x128xf32>
    %c1_167 = arith.constant 1 : index
    %c0_168 = arith.constant 0 : index
    %c0_169 = arith.constant 0 : index
    %272 = vector.load %arg12[%c1_167, %c0_168, %c0_169] : memref<13x8x56xf32, #tpu.memory_space<vmem>>, vector<1x8x56xf32>
    %273 = vector.shape_cast %272 : vector<1x8x56xf32> to vector<8x56xf32>
    %c1_i32_170 = arith.constant 1 : i32
    %274 = tpu.dynamic_rotate %265 by %c1_i32_170 dim 1 : vector<56x128xf32>, i32 -> vector<56x128xf32>
    %cst_171 = arith.constant dense<0.000000e+00> : vector<8x128xf32>
    %275 = tpu.matmul %273, %274, %cst_171 {dimension_numbers = #tpu.dot_dimension_numbers<[1], [0], [0], [1], [0, 0, 1, 1], [], []>} : vector<8x56xf32>, vector<56x128xf32>, vector<8x128xf32> -> vector<8x128xf32>
    %276 = arith.addf %271, %275 : vector<8x128xf32>
    %c2_172 = arith.constant 2 : index
    %c0_173 = arith.constant 0 : index
    %c0_174 = arith.constant 0 : index
    %277 = vector.load %arg12[%c2_172, %c0_173, %c0_174] : memref<13x8x56xf32, #tpu.memory_space<vmem>>, vector<1x8x56xf32>
    %278 = vector.shape_cast %277 : vector<1x8x56xf32> to vector<8x56xf32>
    %c2_i32 = arith.constant 2 : i32
    %279 = tpu.dynamic_rotate %265 by %c2_i32 dim 1 : vector<56x128xf32>, i32 -> vector<56x128xf32>
    %cst_175 = arith.constant dense<0.000000e+00> : vector<8x128xf32>
    %280 = tpu.matmul %278, %279, %cst_175 {dimension_numbers = #tpu.dot_dimension_numbers<[1], [0], [0], [1], [0, 0, 1, 1], [], []>} : vector<8x56xf32>, vector<56x128xf32>, vector<8x128xf32> -> vector<8x128xf32>
    %281 = arith.addf %276, %280 : vector<8x128xf32>
    %c3_176 = arith.constant 3 : index
    %c0_177 = arith.constant 0 : index
    %c0_178 = arith.constant 0 : index
    %282 = vector.load %arg12[%c3_176, %c0_177, %c0_178] : memref<13x8x56xf32, #tpu.memory_space<vmem>>, vector<1x8x56xf32>
    %283 = vector.shape_cast %282 : vector<1x8x56xf32> to vector<8x56xf32>
    %c3_i32 = arith.constant 3 : i32
    %284 = tpu.dynamic_rotate %265 by %c3_i32 dim 1 : vector<56x128xf32>, i32 -> vector<56x128xf32>
    %cst_179 = arith.constant dense<0.000000e+00> : vector<8x128xf32>
    %285 = tpu.matmul %283, %284, %cst_179 {dimension_numbers = #tpu.dot_dimension_numbers<[1], [0], [0], [1], [0, 0, 1, 1], [], []>} : vector<8x56xf32>, vector<56x128xf32>, vector<8x128xf32> -> vector<8x128xf32>
    %286 = arith.addf %281, %285 : vector<8x128xf32>
    %c4_180 = arith.constant 4 : index
    %c0_181 = arith.constant 0 : index
    %c0_182 = arith.constant 0 : index
    %287 = vector.load %arg12[%c4_180, %c0_181, %c0_182] : memref<13x8x56xf32, #tpu.memory_space<vmem>>, vector<1x8x56xf32>
    %288 = vector.shape_cast %287 : vector<1x8x56xf32> to vector<8x56xf32>
    %c4_i32 = arith.constant 4 : i32
    %289 = tpu.dynamic_rotate %265 by %c4_i32 dim 1 : vector<56x128xf32>, i32 -> vector<56x128xf32>
    %cst_183 = arith.constant dense<0.000000e+00> : vector<8x128xf32>
    %290 = tpu.matmul %288, %289, %cst_183 {dimension_numbers = #tpu.dot_dimension_numbers<[1], [0], [0], [1], [0, 0, 1, 1], [], []>} : vector<8x56xf32>, vector<56x128xf32>, vector<8x128xf32> -> vector<8x128xf32>
    %291 = arith.addf %286, %290 : vector<8x128xf32>
    %c5_184 = arith.constant 5 : index
    %c0_185 = arith.constant 0 : index
    %c0_186 = arith.constant 0 : index
    %292 = vector.load %arg12[%c5_184, %c0_185, %c0_186] : memref<13x8x56xf32, #tpu.memory_space<vmem>>, vector<1x8x56xf32>
    %293 = vector.shape_cast %292 : vector<1x8x56xf32> to vector<8x56xf32>
    %c5_i32 = arith.constant 5 : i32
    %294 = tpu.dynamic_rotate %265 by %c5_i32 dim 1 : vector<56x128xf32>, i32 -> vector<56x128xf32>
    %cst_187 = arith.constant dense<0.000000e+00> : vector<8x128xf32>
    %295 = tpu.matmul %293, %294, %cst_187 {dimension_numbers = #tpu.dot_dimension_numbers<[1], [0], [0], [1], [0, 0, 1, 1], [], []>} : vector<8x56xf32>, vector<56x128xf32>, vector<8x128xf32> -> vector<8x128xf32>
    %296 = arith.addf %291, %295 : vector<8x128xf32>
    %c6_188 = arith.constant 6 : index
    %c0_189 = arith.constant 0 : index
    %c0_190 = arith.constant 0 : index
    %297 = vector.load %arg12[%c6_188, %c0_189, %c0_190] : memref<13x8x56xf32, #tpu.memory_space<vmem>>, vector<1x8x56xf32>
    %298 = vector.shape_cast %297 : vector<1x8x56xf32> to vector<8x56xf32>
    %c6_i32 = arith.constant 6 : i32
    %299 = tpu.dynamic_rotate %265 by %c6_i32 dim 1 : vector<56x128xf32>, i32 -> vector<56x128xf32>
    %cst_191 = arith.constant dense<0.000000e+00> : vector<8x128xf32>
    %300 = tpu.matmul %298, %299, %cst_191 {dimension_numbers = #tpu.dot_dimension_numbers<[1], [0], [0], [1], [0, 0, 1, 1], [], []>} : vector<8x56xf32>, vector<56x128xf32>, vector<8x128xf32> -> vector<8x128xf32>
    %301 = arith.addf %296, %300 : vector<8x128xf32>
    %c7_192 = arith.constant 7 : index
    %c0_193 = arith.constant 0 : index
    %c0_194 = arith.constant 0 : index
    %302 = vector.load %arg12[%c7_192, %c0_193, %c0_194] : memref<13x8x56xf32, #tpu.memory_space<vmem>>, vector<1x8x56xf32>
    %303 = vector.shape_cast %302 : vector<1x8x56xf32> to vector<8x56xf32>
    %c7_i32 = arith.constant 7 : i32
    %304 = tpu.dynamic_rotate %265 by %c7_i32 dim 1 : vector<56x128xf32>, i32 -> vector<56x128xf32>
    %cst_195 = arith.constant dense<0.000000e+00> : vector<8x128xf32>
    %305 = tpu.matmul %303, %304, %cst_195 {dimension_numbers = #tpu.dot_dimension_numbers<[1], [0], [0], [1], [0, 0, 1, 1], [], []>} : vector<8x56xf32>, vector<56x128xf32>, vector<8x128xf32> -> vector<8x128xf32>
    %306 = arith.addf %301, %305 : vector<8x128xf32>
    %c8_196 = arith.constant 8 : index
    %c0_197 = arith.constant 0 : index
    %c0_198 = arith.constant 0 : index
    %307 = vector.load %arg12[%c8_196, %c0_197, %c0_198] : memref<13x8x56xf32, #tpu.memory_space<vmem>>, vector<1x8x56xf32>
    %308 = vector.shape_cast %307 : vector<1x8x56xf32> to vector<8x56xf32>
    %c8_i32 = arith.constant 8 : i32
    %309 = tpu.dynamic_rotate %265 by %c8_i32 dim 1 : vector<56x128xf32>, i32 -> vector<56x128xf32>
    %cst_199 = arith.constant dense<0.000000e+00> : vector<8x128xf32>
    %310 = tpu.matmul %308, %309, %cst_199 {dimension_numbers = #tpu.dot_dimension_numbers<[1], [0], [0], [1], [0, 0, 1, 1], [], []>} : vector<8x56xf32>, vector<56x128xf32>, vector<8x128xf32> -> vector<8x128xf32>
    %311 = arith.addf %306, %310 : vector<8x128xf32>
    %c9_200 = arith.constant 9 : index
    %c0_201 = arith.constant 0 : index
    %c0_202 = arith.constant 0 : index
    %312 = vector.load %arg12[%c9_200, %c0_201, %c0_202] : memref<13x8x56xf32, #tpu.memory_space<vmem>>, vector<1x8x56xf32>
    %313 = vector.shape_cast %312 : vector<1x8x56xf32> to vector<8x56xf32>
    %c9_i32 = arith.constant 9 : i32
    %314 = tpu.dynamic_rotate %265 by %c9_i32 dim 1 : vector<56x128xf32>, i32 -> vector<56x128xf32>
    %cst_203 = arith.constant dense<0.000000e+00> : vector<8x128xf32>
    %315 = tpu.matmul %313, %314, %cst_203 {dimension_numbers = #tpu.dot_dimension_numbers<[1], [0], [0], [1], [0, 0, 1, 1], [], []>} : vector<8x56xf32>, vector<56x128xf32>, vector<8x128xf32> -> vector<8x128xf32>
    %316 = arith.addf %311, %315 : vector<8x128xf32>
    %c10_204 = arith.constant 10 : index
    %c0_205 = arith.constant 0 : index
    %c0_206 = arith.constant 0 : index
    %317 = vector.load %arg12[%c10_204, %c0_205, %c0_206] : memref<13x8x56xf32, #tpu.memory_space<vmem>>, vector<1x8x56xf32>
    %318 = vector.shape_cast %317 : vector<1x8x56xf32> to vector<8x56xf32>
    %c10_i32 = arith.constant 10 : i32
    %319 = tpu.dynamic_rotate %265 by %c10_i32 dim 1 : vector<56x128xf32>, i32 -> vector<56x128xf32>
    %cst_207 = arith.constant dense<0.000000e+00> : vector<8x128xf32>
    %320 = tpu.matmul %318, %319, %cst_207 {dimension_numbers = #tpu.dot_dimension_numbers<[1], [0], [0], [1], [0, 0, 1, 1], [], []>} : vector<8x56xf32>, vector<56x128xf32>, vector<8x128xf32> -> vector<8x128xf32>
    %321 = arith.addf %316, %320 : vector<8x128xf32>
    %c11_208 = arith.constant 11 : index
    %c0_209 = arith.constant 0 : index
    %c0_210 = arith.constant 0 : index
    %322 = vector.load %arg12[%c11_208, %c0_209, %c0_210] : memref<13x8x56xf32, #tpu.memory_space<vmem>>, vector<1x8x56xf32>
    %323 = vector.shape_cast %322 : vector<1x8x56xf32> to vector<8x56xf32>
    %c11_i32 = arith.constant 11 : i32
    %324 = tpu.dynamic_rotate %265 by %c11_i32 dim 1 : vector<56x128xf32>, i32 -> vector<56x128xf32>
    %cst_211 = arith.constant dense<0.000000e+00> : vector<8x128xf32>
    %325 = tpu.matmul %323, %324, %cst_211 {dimension_numbers = #tpu.dot_dimension_numbers<[1], [0], [0], [1], [0, 0, 1, 1], [], []>} : vector<8x56xf32>, vector<56x128xf32>, vector<8x128xf32> -> vector<8x128xf32>
    %326 = arith.addf %321, %325 : vector<8x128xf32>
    %c12_212 = arith.constant 12 : index
    %c0_213 = arith.constant 0 : index
    %c0_214 = arith.constant 0 : index
    %327 = vector.load %arg12[%c12_212, %c0_213, %c0_214] : memref<13x8x56xf32, #tpu.memory_space<vmem>>, vector<1x8x56xf32>
    %328 = vector.shape_cast %327 : vector<1x8x56xf32> to vector<8x56xf32>
    %c12_i32 = arith.constant 12 : i32
    %329 = tpu.dynamic_rotate %265 by %c12_i32 dim 1 : vector<56x128xf32>, i32 -> vector<56x128xf32>
    %cst_215 = arith.constant dense<0.000000e+00> : vector<8x128xf32>
    %330 = tpu.matmul %328, %329, %cst_215 {dimension_numbers = #tpu.dot_dimension_numbers<[1], [0], [0], [1], [0, 0, 1, 1], [], []>} : vector<8x56xf32>, vector<56x128xf32>, vector<8x128xf32> -> vector<8x128xf32>
    %331 = arith.addf %326, %330 : vector<8x128xf32>
    %332 = vector.shape_cast %331 : vector<8x128xf32> to vector<1x8x128xf32>
    %c0_216 = arith.constant 0 : index
    %c0_217 = arith.constant 0 : index
    %c0_218 = arith.constant 0 : index
    %333 = vector.load %arg15[%c0_216, %c0_217, %c0_218] : memref<1x8x128xf32, #tpu.memory_space<vmem>>, vector<1x8x128xf32>
    tpu.vector_store %arg15[%c0_216, %c0_217, %c0_218], %332 {strides = array<i32>} : memref<1x8x128xf32, #tpu.memory_space<vmem>>, vector<1x8x128xf32>,
    return
  }
  func.func @transform_0(%arg0: i32) -> (i32, i32, i32) {
    %c0_i32 = arith.constant 0 : i32
    %c0_i32_0 = arith.constant 0 : i32
    %c0_i32_1 = arith.constant 0 : i32
    return %arg0, %c0_i32, %c0_i32_0 : i32, i32, i32
  }
  func.func @transform_1(%arg0: i32) -> (i32, i32) {
    %c0_i32 = arith.constant 0 : i32
    %c0_i32_0 = arith.constant 0 : i32
    %c0_i32_1 = arith.constant 0 : i32
    return %c0_i32, %c0_i32_0 : i32, i32
  }
  func.func @transform_2(%arg0: i32) -> (i32, i32) {
    %c0_i32 = arith.constant 0 : i32
    %c0_i32_0 = arith.constant 0 : i32
    %c0_i32_1 = arith.constant 0 : i32
    return %c0_i32, %c0_i32_0 : i32, i32
  }
  func.func @transform_3(%arg0: i32) -> (i32, i32) {
    %c0_i32 = arith.constant 0 : i32
    %c0_i32_0 = arith.constant 0 : i32
    %c0_i32_1 = arith.constant 0 : i32
    return %c0_i32, %c0_i32_0 : i32, i32
  }
  func.func @transform_4(%arg0: i32) -> (i32, i32) {
    %c0_i32 = arith.constant 0 : i32
    %c0_i32_0 = arith.constant 0 : i32
    %c0_i32_1 = arith.constant 0 : i32
    return %c0_i32, %c0_i32_0 : i32, i32
  }
  func.func @transform_5(%arg0: i32) -> (i32, i32) {
    %c0_i32 = arith.constant 0 : i32
    %c0_i32_0 = arith.constant 0 : i32
    %c0_i32_1 = arith.constant 0 : i32
    return %c0_i32, %c0_i32_0 : i32, i32
  }
  func.func @transform_6(%arg0: i32) -> (i32, i32, i32) {
    %c0_i32 = arith.constant 0 : i32
    %c0_i32_0 = arith.constant 0 : i32
    %c0_i32_1 = arith.constant 0 : i32
    %c0_i32_2 = arith.constant 0 : i32
    return %c0_i32, %c0_i32_0, %c0_i32_1 : i32, i32, i32
  }
  func.func @transform_7(%arg0: i32) -> (i32, i32, i32) {
    %c0_i32 = arith.constant 0 : i32
    %c0_i32_0 = arith.constant 0 : i32
    %c0_i32_1 = arith.constant 0 : i32
    %c0_i32_2 = arith.constant 0 : i32
    return %c0_i32, %c0_i32_0, %c0_i32_1 : i32, i32, i32
  }
  func.func @transform_8(%arg0: i32) -> (i32, i32, i32) {
    %c0_i32 = arith.constant 0 : i32
    %c0_i32_0 = arith.constant 0 : i32
    %c0_i32_1 = arith.constant 0 : i32
    %c0_i32_2 = arith.constant 0 : i32
    return %c0_i32, %c0_i32_0, %c0_i32_1 : i32, i32, i32
  }
  func.func @transform_9(%arg0: i32) -> (i32, i32) {
    %c0_i32 = arith.constant 0 : i32
    %c0_i32_0 = arith.constant 0 : i32
    %c0_i32_1 = arith.constant 0 : i32
    return %c0_i32, %c0_i32_0 : i32, i32
  }
  func.func @transform_10(%arg0: i32) -> (i32, i32) {
    %c0_i32 = arith.constant 0 : i32
    %c0_i32_0 = arith.constant 0 : i32
    %c0_i32_1 = arith.constant 0 : i32
    return %c0_i32, %c0_i32_0 : i32, i32
  }
  func.func @transform_11(%arg0: i32) -> (i32, i32, i32) {
    %c0_i32 = arith.constant 0 : i32
    %c0_i32_0 = arith.constant 0 : i32
    %c0_i32_1 = arith.constant 0 : i32
    %c0_i32_2 = arith.constant 0 : i32
    return %c0_i32, %c0_i32_0, %c0_i32_1 : i32, i32, i32
  }
  func.func @transform_12(%arg0: i32) -> (i32, i32) {
    %c0_i32 = arith.constant 0 : i32
    %c0_i32_0 = arith.constant 0 : i32
    %c0_i32_1 = arith.constant 0 : i32
    return %c0_i32, %c0_i32_0 : i32, i32
  }
  func.func @transform_13(%arg0: i32) -> i32 {
    %c0_i32 = arith.constant 0 : i32
    %c0_i32_0 = arith.constant 0 : i32
    return %c0_i32 : i32
  }
  func.func @transform_14(%arg0: i32) -> (i32, i32, i32) {
    %c0_i32 = arith.constant 0 : i32
    %c0_i32_0 = arith.constant 0 : i32
    %c0_i32_1 = arith.constant 0 : i32
    return %arg0, %c0_i32, %c0_i32_0 : i32, i32, i32
  }
}

</mosaic_0001>

<llo_original>
// kernel: net_forward.1
$region0: #{net_forward.1}
  #allocation0 [shape = 'u32[]', space=smem, size = 0x4, offset = 0x4, fixed_abs, tag = 'smem constant byte address 0x4 - core index']
  #allocation1 [shape = 'u32[144,128]{1,0:T(1,128)}', space=vmem, size = 0x12000, scoped, tag = 'internal scratch']
  %s0 = inlined_call_operand.vmem [shape: f32[1,8,128], index: 0, kind: input, shape index: {}]
  %s1 = inlined_call_operand.vmem [shape: f32[3,128], index: 1, kind: input, shape index: {}]
  %s2 = inlined_call_operand.vmem [shape: f32[56,8], index: 2, kind: input, shape index: {}]
  %s3 = inlined_call_operand.vmem [shape: f32[56,1], index: 3, kind: input, shape index: {}]
  %s4 = inlined_call_operand.vmem [shape: f32[16,56], index: 4, kind: input, shape index: {}]
  %s5 = inlined_call_operand.vmem [shape: f32[16,1], index: 5, kind: input, shape index: {}]
  %s6 = inlined_call_operand.vmem [shape: f32[24,16,16], index: 6, kind: input, shape index: {}]
  %s7 = inlined_call_operand.vmem [shape: f32[4,16,1], index: 7, kind: input, shape index: {}]
  %s8 = inlined_call_operand.vmem [shape: f32[8,16,1], index: 8, kind: input, shape index: {}]
  %s9 = inlined_call_operand.vmem [shape: f32[56,16], index: 9, kind: input, shape index: {}]
  %s10 = inlined_call_operand.vmem [shape: f32[56,1], index: 10, kind: input, shape index: {}]
  %s11 = inlined_call_operand.vmem [shape: f32[13,8,56], index: 11, kind: input, shape index: {}]
  %s12 = inlined_call_operand.vmem [shape: f32[8,1], index: 12, kind: input, shape index: {}]
  %s13 = inlined_call_operand.vmem [shape: f32[8], index: 13, kind: input, shape index: {}]
  %s14 = inlined_call_operand.vmem [shape: f32[1,8,128], index: 14, kind: output, shape index: {}]
  %s15 = sld [smem:[#allocation0]]
  $region70: #{net_forward.1} parent=0
    _
  %s17 = ssub.s32 1, %s15
  %s18 = scalar_select 0, %s17, %s15
  $region1: #{net_forward.1} parent=0
    #allocation2 [shape = 'u8[512]{0}', space=smem, size = 0x200, scoped, tag = 'input window, operand 13, single buffered']
    #allocation3 [shape = 's32[1]{0}', space=sflag, size = 0x4, scoped, tag = 'scoped memory for net_forward.1']
    %19 = vsyncpa [#allocation3], 0
    // Predicated region
    $region2: #{net_forward.1} parent=1 // pred_check
      _
    $region3: #{net_forward.1} parent=1 // pred_check_branch
      %21 = sbr.rel (0) target = $region5
    $region4: #{net_forward.1} parent=1 // pred_region
      _
    $region5: #{net_forward.1} parent=1 // pred_fallthru
      _
    // Predicated region
    $region6: #{net_forward.1} parent=1 // pred_check
      _
    $region7: #{net_forward.1} parent=1 // pred_check_branch
      %23 = sbr.rel (0) target = $region9
    $region8: #{net_forward.1} parent=1 // pred_region
      _
    $region9: #{net_forward.1} parent=1 // pred_fallthru
      _
    // Predicated region
    $region10: #{net_forward.1} parent=1 // pred_check
      _
    $region11: #{net_forward.1} parent=1 // pred_check_branch
      %25 = sbr.rel (0) target = $region13
    $region12: #{net_forward.1} parent=1 // pred_region
      _
    $region13: #{net_forward.1} parent=1 // pred_fallthru
      _
    // Predicated region
    $region14: #{net_forward.1} parent=1 // pred_check
      _
    $region15: #{net_forward.1} parent=1 // pred_check_branch
      %27 = sbr.rel (0) target = $region17
    $region16: #{net_forward.1} parent=1 // pred_region
      _
    $region17: #{net_forward.1} parent=1 // pred_fallthru
      _
    // Predicated region
    $region18: #{net_forward.1} parent=1 // pred_check
      _
    $region19: #{net_forward.1} parent=1 // pred_check_branch
      %29 = sbr.rel (0) target = $region21
    $region20: #{net_forward.1} parent=1 // pred_region
      _
    $region21: #{net_forward.1} parent=1 // pred_fallthru
      _
    // Predicated region
    $region22: #{net_forward.1} parent=1 // pred_check
      _
    $region23: #{net_forward.1} parent=1 // pred_check_branch
      %31 = sbr.rel (0) target = $region25
    $region24: #{net_forward.1} parent=1 // pred_region
      _
    $region25: #{net_forward.1} parent=1 // pred_fallthru
      _
    // Predicated region
    $region26: #{net_forward.1} parent=1 // pred_check
      _
    $region27: #{net_forward.1} parent=1 // pred_check_branch
      %33 = sbr.rel (0) target = $region29
    $region28: #{net_forward.1} parent=1 // pred_region
      _
    $region29: #{net_forward.1} parent=1 // pred_fallthru
      _
    // Predicated region
    $region30: #{net_forward.1} parent=1 // pred_check
      _
    $region31: #{net_forward.1} parent=1 // pred_check_branch
      %35 = sbr.rel (0) target = $region33
    $region32: #{net_forward.1} parent=1 // pred_region
      _
    $region33: #{net_forward.1} parent=1 // pred_fallthru
      _
    // Predicated region
    $region34: #{net_forward.1} parent=1 // pred_check
      _
    $region35: #{net_forward.1} parent=1 // pred_check_branch
      %37 = sbr.rel (0) target = $region37
    $region36: #{net_forward.1} parent=1 // pred_region
      _
    $region37: #{net_forward.1} parent=1 // pred_fallthru
      _
    // Predicated region
    $region38: #{net_forward.1} parent=1 // pred_check
      _
    $region39: #{net_forward.1} parent=1 // pred_check_branch
      %39 = sbr.rel (0) target = $region41
    $region40: #{net_forward.1} parent=1 // pred_region
      _
    $region41: #{net_forward.1} parent=1 // pred_fallthru
      _
    // Predicated region
    $region42: #{net_forward.1} parent=1 // pred_check
      _
    $region43: #{net_forward.1} parent=1 // pred_check_branch
      %41 = sbr.rel (0) target = $region45
    $region44: #{net_forward.1} parent=1 // pred_region
      _
    $region45: #{net_forward.1} parent=1 // pred_fallthru
      _
    // Predicated region
    $region46: #{net_forward.1} parent=1 // pred_check
      _
    $region47: #{net_forward.1} parent=1 // pred_check_branch
      %43 = sbr.rel (0) target = $region49
    $region48: #{net_forward.1} parent=1 // pred_region
      _
    $region49: #{net_forward.1} parent=1 // pred_fallthru
      _
    // Predicated region
    $region50: #{net_forward.1} parent=1 // pred_check
      _
    $region51: #{net_forward.1} parent=1 // pred_check_branch
      %45 = sbr.rel (0) target = $region53
    $region52: #{net_forward.1} parent=1 // pred_region
      _
    $region53: #{net_forward.1} parent=1 // pred_fallthru
      _
    // Predicated region
    $region54: #{net_forward.1} parent=1 // pred_check
      _
    $region55: #{net_forward.1} parent=1 // pred_check_branch
      %47 = sbr.rel (0) target = $region57
    $region56: #{net_forward.1} parent=1 // pred_region
      %s49 = ssub.s32 16, 16
      %50 = vsyncadd [#allocation3], %s49
      %s52 = sshll.u32 %s13, 4
      %s53 = int_to_ptr.vmem [resolvable:$true] %s52
      %55 = dma.vmem_to_smem %s53, 16, [#allocation2], [#allocation3]
    $region57: #{net_forward.1} parent=1 // pred_fallthru
      _
    // Predicated region
    $region58: #{net_forward.1} parent=1 // pred_check
      _
    $region59: #{net_forward.1} parent=1 // pred_check_branch
      %57 = sbr.rel (0) target = $region61
    $region60: #{net_forward.1} parent=1 // pred_region
      %58 = dma.done [#allocation3], 16
    $region61: #{net_forward.1} parent=1 // pred_fallthru
      _
    %59 = sfence
    %v60 = vld [vmem:[%s1] sm:$0x1]
    %v61 = vld [vmem:[%s1 + $0x1] sm:$0x1]
    %v62 = vld [vmem:[%s1 + $0x2] sm:$0x1]
    %v63 = vld [vmem:[%s2] sm:$0xff]
    %v64 = vld [vmem:[%s2 + $0x8] sm:$0xff]
    %v65 = vld [vmem:[%s2 + $0x10] sm:$0xff]
    %v66 = vld [vmem:[%s2 + $0x18] sm:$0xff]
    %v67 = vld [vmem:[%s2 + $0x20] sm:$0xff]
    %v68 = vld [vmem:[%s2 + $0x28] sm:$0xff]
    %v69 = vld [vmem:[%s2 + $0x30] sm:$0xff]
    %v70 = vld [vmem:[%s0] sm:$0xff]
    %v71 = vld [vmem:[%s3] sm:$0xff]
    %v72 = vld [vmem:[%s3 + $0x8] sm:$0xff]
    %v73 = vld [vmem:[%s3 + $0x10] sm:$0xff]
    %v74 = vld [vmem:[%s3 + $0x18] sm:$0xff]
    %v75 = vld [vmem:[%s3 + $0x20] sm:$0xff]
    %v76 = vld [vmem:[%s3 + $0x28] sm:$0xff]
    %v77 = vld [vmem:[%s3 + $0x30] sm:$0xff]
    %79 = vset.pattern.permute.xlu0 0
    %80 = vperm.xlu0 %79, %v71
    %v81 = vpop.permute.xlu0 %80
    %84 = vset.pattern.permute.xlu0 0
    %85 = vperm.xlu0 %84, %v72
    %v86 = vpop.permute.xlu0 %85
    %89 = vset.pattern.permute.xlu0 0
    %90 = vperm.xlu0 %89, %v73
    %v91 = vpop.permute.xlu0 %90
    %94 = vset.pattern.permute.xlu0 0
    %95 = vperm.xlu0 %94, %v74
    %v96 = vpop.permute.xlu0 %95
    %99 = vset.pattern.permute.xlu0 0
    %100 = vperm.xlu0 %99, %v75
    %v101 = vpop.permute.xlu0 %100
    %104 = vset.pattern.permute.xlu0 0
    %105 = vperm.xlu0 %104, %v76
    %v106 = vpop.permute.xlu0 %105
    %109 = vset.pattern.permute.xlu0 0
    %110 = vperm.xlu0 %109, %v77
    %v111 = vpop.permute.xlu0 %110
    %vm113 = vcmask 64512
    %v115 = vsel %vm113, %v63, 0
    %v118 = vsel %vm113, %v64, 0
    %v121 = vsel %vm113, %v65, 0
    %v124 = vsel %vm113, %v66, 0
    %v127 = vsel %vm113, %v67, 0
    %v130 = vsel %vm113, %v68, 0
    %v133 = vsel %vm113, %v69, 0
    %135 = vmatprep.subr.mxu0 0.0
    %136 = vmatpush1.msra.mxu0 %v70
    %137 = vmatprep.subr.mxu0 0.0
    %138 = vmatpush1.msra.mxu0 0.0
    %139 = vmatprep.subr.mxu0 0.0
    %140 = vmatpush1.msra.mxu0 0.0
    %141 = vmatprep.subr.mxu0 0.0
    %142 = vmatpush1.msra.mxu0 0.0
    %143 = vmatprep.subr.mxu0 0.0
    %144 = vmatpush1.msra.mxu0 0.0
    %145 = vmatprep.subr.mxu0 0.0
    %146 = vmatpush1.msra.mxu0 0.0
    %147 = vmatprep.subr.mxu0 0.0
    %148 = vmatpush1.msra.mxu0 0.0
    %149 = vmatprep.subr.mxu0 0.0
    %150 = vmatpush1.msra.mxu0 0.0
    %151 = vmatprep.subr.mxu0 0.0
    %152 = vmatpush1.msra.mxu0 0.0
    %153 = vmatprep.subr.mxu0 0.0
    %154 = vmatpush1.msra.mxu0 0.0
    %155 = vmatprep.subr.mxu0 0.0
    %156 = vmatpush1.msra.mxu0 0.0
    %157 = vmatprep.subr.mxu0 0.0
    %158 = vmatpush1.msra.mxu0 0.0
    %159 = vmatprep.subr.mxu0 0.0
    %160 = vmatpush1.msra.mxu0 0.0
    %161 = vmatprep.subr.mxu0 0.0
    %162 = vmatpush1.msra.mxu0 0.0
    %163 = vmatprep.subr.mxu0 0.0
    %164 = vmatpush1.msra.mxu0 0.0
    %165 = vmatprep.subr.mxu0 0.0
    %166 = vmatpush1.msra.mxu0 0.0
    %167 = vmatprep.subr.mxu0 0.0
    %168 = vmatpush1.msra.mxu0 0.0
    %169 = vmatprep.subr.mxu0 0.0
    %170 = vmatpush1.msra.mxu0 0.0
    %171 = vmatprep.subr.mxu0 0.0
    %172 = vmatpush1.msra.mxu0 0.0
    %173 = vmatprep.subr.mxu0 0.0
    %174 = vmatpush1.msra.mxu0 0.0
    %175 = vmatprep.subr.mxu0 0.0
    %176 = vmatpush1.msra.mxu0 0.0
    %177 = vmatprep.subr.mxu0 0.0
    %178 = vmatpush1.msra.mxu0 0.0
    %179 = vmatprep.subr.mxu0 0.0
    %180 = vmatpush1.msra.mxu0 0.0
    %181 = vmatprep.subr.mxu0 0.0
    %182 = vmatpush1.msra.mxu0 0.0
    %183 = vmatprep.subr.mxu0 0.0
    %184 = vmatpush1.msra.mxu0 0.0
    %185 = vmatprep.subr.mxu0 0.0
    %186 = vmatpush1.msra.mxu0 0.0
    %187 = vmatprep.subr.mxu0 0.0
    %188 = vmatpush1.msra.mxu0 0.0
    %189 = vmatprep.subr.mxu0 0.0
    %190 = vmatpush1.msra.mxu0 0.0
    %191 = vmatprep.subr.mxu0 0.0
    %192 = vmatpush1.msra.mxu0 0.0
    %193 = vmatprep.subr.mxu0 0.0
    %194 = vmatpush1.msra.mxu0 0.0
    %195 = vmatprep.subr.mxu0 0.0
    %196 = vmatpush1.msra.mxu0 0.0
    %197 = vmatprep.subr.mxu0 0.0
    %198 = vmatpush1.msra.mxu0 0.0
    %199 = vmatprep.mubr.f32.mxu0 0.0
    %200 = vmatmul.mubr.f32.gmra.mrb[0].mxu0 %v115
    %v201 = vpop.f32.mrb[0].mxu0
    %v202 = vadd.f32 %v81, %v201
    %v203 = vpop.f32.mrb[0].mxu0
    %204 = vmatprep.mubr.f32.mxu0 0.0
    %205 = vmatmul.mubr.f32.gmra.mrb[0].mxu0 %v118
    %v206 = vpop.f32.mrb[0].mxu0
    %v207 = vadd.f32 %v86, %v206
    %v208 = vpop.f32.mrb[0].mxu0
    %209 = vmatprep.mubr.f32.mxu0 0.0
    %210 = vmatmul.mubr.f32.gmra.mrb[0].mxu0 %v121
    %v211 = vpop.f32.mrb[0].mxu0
    %v212 = vadd.f32 %v91, %v211
    %v213 = vpop.f32.mrb[0].mxu0
    %214 = vmatprep.mubr.f32.mxu0 0.0
    %215 = vmatmul.mubr.f32.gmra.mrb[0].mxu0 %v124
    %v216 = vpop.f32.mrb[0].mxu0
    %v217 = vadd.f32 %v96, %v216
    %v218 = vpop.f32.mrb[0].mxu0
    %219 = vmatprep.mubr.f32.mxu0 0.0
    %220 = vmatmul.mubr.f32.gmra.mrb[0].mxu0 %v127
    %v221 = vpop.f32.mrb[0].mxu0
    %v222 = vadd.f32 %v101, %v221
    %v223 = vpop.f32.mrb[0].mxu0
    %224 = vmatprep.mubr.f32.mxu0 0.0
    %225 = vmatmul.mubr.f32.gmra.mrb[0].mxu0 %v130
    %v226 = vpop.f32.mrb[0].mxu0
    %v227 = vadd.f32 %v106, %v226
    %v228 = vpop.f32.mrb[0].mxu0
    %229 = vmatprep.mubr.f32.mxu0 0.0
    %230 = vmatmul.mubr.f32.gmra.mrb[0].mxu0 %v133
    %v231 = vpop.f32.mrb[0].mxu0
    %v232 = vadd.f32 %v111, %v231
    %v233 = vpop.f32.mrb[0].mxu0
    %234 = vdwg.mxu0
    %s235 = sld [smem:[#allocation2]]
    %vm236 = vcmp.ge.f32.partialorder %v202, 0.0
    %vm237 = vcmp.ge.f32.partialorder %v207, 0.0
    %vm238 = vcmp.ge.f32.partialorder %v212, 0.0
    %vm239 = vcmp.ge.f32.partialorder %v217, 0.0
    %vm240 = vcmp.ge.f32.partialorder %v222, 0.0
    %vm241 = vcmp.ge.f32.partialorder %v227, 0.0
    %vm242 = vcmp.ge.f32.partialorder %v232, 0.0
    %v243 = vstv %s235
    %v244 = vmul.f32 %v243, %v202
    %v245 = vmul.f32 %v243, %v207
    %v246 = vmul.f32 %v243, %v212
    %v247 = vmul.f32 %v243, %v217
    %v248 = vmul.f32 %v243, %v222
    %v249 = vmul.f32 %v243, %v227
    %v250 = vmul.f32 %v243, %v232
    %v251 = vsel %vm236, %v202, %v244
    %v252 = vsel %vm237, %v207, %v245
    %v253 = vsel %vm238, %v212, %v246
    %v254 = vsel %vm239, %v217, %v247
    %v255 = vsel %vm240, %v222, %v248
    %v256 = vsel %vm241, %v227, %v249
    %v257 = vsel %vm242, %v232, %v250
    %v258 = vld [vmem:[%s4] sm:$0xff]
    %v259 = vld [vmem:[%s4 + $0x8] sm:$0xff]
    %v260 = vld [vmem:[%s5] sm:$0xff]
    %v261 = vld [vmem:[%s5 + $0x8] sm:$0xff]
    %263 = vset.pattern.permute.xlu0 0
    %264 = vperm.xlu0 %263, %v260
    %v265 = vpop.permute.xlu0 %264
    %268 = vset.pattern.permute.xlu0 0
    %269 = vperm.xlu0 %268, %v261
    %v270 = vpop.permute.xlu0 %269
    %vm272 = vcmask 457728
    %v274 = vsel %vm272, %v258, 0
    %v277 = vsel %vm272, %v259, 0
    %279 = vmatprep.subr.mxu0 0.0
    %280 = vmatpush1.msra.mxu0 %v251
    %281 = vmatprep.subr.mxu0 0.0
    %282 = vmatpush1.msra.mxu0 %v252
    %283 = vmatprep.subr.mxu0 0.0
    %284 = vmatpush1.msra.mxu0 %v253
    %285 = vmatprep.subr.mxu0 0.0
    %286 = vmatpush1.msra.mxu0 %v254
    %287 = vmatprep.subr.mxu0 0.0
    %288 = vmatpush1.msra.mxu0 %v255
    %289 = vmatprep.subr.mxu0 0.0
    %290 = vmatpush1.msra.mxu0 %v256
    %291 = vmatprep.subr.mxu0 0.0
    %292 = vmatpush1.msra.mxu0 %v257
    %293 = vmatprep.subr.mxu0 0.0
    %294 = vmatpush1.msra.mxu0 0.0
    %295 = vmatprep.subr.mxu0 0.0
    %296 = vmatpush1.msra.mxu0 0.0
    %297 = vmatprep.subr.mxu0 0.0
    %298 = vmatpush1.msra.mxu0 0.0
    %299 = vmatprep.subr.mxu0 0.0
    %300 = vmatpush1.msra.mxu0 0.0
    %301 = vmatprep.subr.mxu0 0.0
    %302 = vmatpush1.msra.mxu0 0.0
    %303 = vmatprep.subr.mxu0 0.0
    %304 = vmatpush1.msra.mxu0 0.0
    %305 = vmatprep.subr.mxu0 0.0
    %306 = vmatpush1.msra.mxu0 0.0
    %307 = vmatprep.subr.mxu0 0.0
    %308 = vmatpush1.msra.mxu0 0.0
    %309 = vmatprep.subr.mxu0 0.0
    %310 = vmatpush1.msra.mxu0 0.0
    %311 = vmatprep.subr.mxu0 0.0
    %312 = vmatpush1.msra.mxu0 0.0
    %313 = vmatprep.subr.mxu0 0.0
    %314 = vmatpush1.msra.mxu0 0.0
    %315 = vmatprep.subr.mxu0 0.0
    %316 = vmatpush1.msra.mxu0 0.0
    %317 = vmatprep.subr.mxu0 0.0
    %318 = vmatpush1.msra.mxu0 0.0
    %319 = vmatprep.subr.mxu0 0.0
    %320 = vmatpush1.msra.mxu0 0.0
    %321 = vmatprep.subr.mxu0 0.0
    %322 = vmatpush1.msra.mxu0 0.0
    %323 = vmatprep.subr.mxu0 0.0
    %324 = vmatpush1.msra.mxu0 0.0
    %325 = vmatprep.subr.mxu0 0.0
    %326 = vmatpush1.msra.mxu0 0.0
    %327 = vmatprep.subr.mxu0 0.0
    %328 = vmatpush1.msra.mxu0 0.0
    %329 = vmatprep.subr.mxu0 0.0
    %330 = vmatpush1.msra.mxu0 0.0
    %331 = vmatprep.subr.mxu0 0.0
    %332 = vmatpush1.msra.mxu0 0.0
    %333 = vmatprep.subr.mxu0 0.0
    %334 = vmatpush1.msra.mxu0 0.0
    %335 = vmatprep.subr.mxu0 0.0
    %336 = vmatpush1.msra.mxu0 0.0
    %337 = vmatprep.subr.mxu0 0.0
    %338 = vmatpush1.msra.mxu0 0.0
    %339 = vmatprep.subr.mxu0 0.0
    %340 = vmatpush1.msra.mxu0 0.0
    %341 = vmatprep.subr.mxu0 0.0
    %342 = vmatpush1.msra.mxu0 0.0
    %343 = vmatprep.mubr.f32.mxu0 0.0
    %344 = vmatmul.mubr.f32.gmra.mrb[0].mxu0 %v274
    %v345 = vpop.f32.mrb[0].mxu0
    %v346 = vadd.f32 %v265, %v345
    %v347 = vpop.f32.mrb[0].mxu0
    %348 = vmatprep.mubr.f32.mxu0 0.0
    %349 = vmatmul.mubr.f32.gmra.mrb[0].mxu0 %v277
    %v350 = vpop.f32.mrb[0].mxu0
    %v351 = vadd.f32 %v270, %v350
    %v352 = vpop.f32.mrb[0].mxu0
    %353 = vdwg.mxu0
    %s354 = sld [smem:[#allocation2 + $0x1]]
    %vm355 = vcmp.ge.f32.partialorder %v346, 0.0
    %vm356 = vcmp.ge.f32.partialorder %v351, 0.0
    %v357 = vstv %s354
    %v358 = vmul.f32 %v357, %v346
    %v359 = vmul.f32 %v357, %v351
    %v360 = vsel %vm355, %v346, %v358
    %v361 = vsel %vm356, %v351, %v359
    %v362 = vld [vmem:[%s7] sm:$0xff]
    %v363 = vld [vmem:[%s7 + $0x8] sm:$0xff]
    %364 = vrot.lane.b32.xlu0 %v360, 1
    %v365 = vpop.permute.xlu0 %364
    %366 = vrot.lane.b32.xlu0 %v361, 1
    %v367 = vpop.permute.xlu0 %366
    %v368 = vlaneseq
    %v369 = vshrl.u32 %v368, 7
    %v370 = vsub.s32 0, %v369
    %v371 = vrot.slane %v60, %v370
    %v372 = vmul.f32 %v365, %v371
    %v373 = vmul.f32 %v367, %v371
    %374 = vrot.lane.b32.xlu0 %v360, 127
    %v375 = vpop.permute.xlu0 %374
    %376 = vrot.lane.b32.xlu0 %v361, 127
    %v377 = vpop.permute.xlu0 %376
    %v378 = vlaneseq
    %v379 = vshrl.u32 %v378, 7
    %v380 = vsub.s32 0, %v379
    %v381 = vrot.slane %v61, %v380
    %v382 = vmul.f32 %v375, %v381
    %v383 = vmul.f32 %v377, %v381
    %v384 = vld [vmem:[%s6] sm:$0xff]
    %v385 = vld [vmem:[%s6 + $0x8] sm:$0xff]
    %s386 = scalar_lea.vmem %s6, 16
    %v387 = vld [vmem:[%s386] sm:$0xff]
    %v388 = vld [vmem:[%s386 + $0x8] sm:$0xff]
    %vm389 = vcmask 130048
    %v391 = vsel %vm389, %v387, 0
    %v394 = vsel %vm389, %v388, 0
    %396 = vmatprep.subr.mxu0 0.0
    %397 = vmatpush1.msra.mxu0 %v360
    %398 = vmatprep.subr.mxu0 0.0
    %399 = vmatpush1.msra.mxu0 %v361
    %400 = vmatprep.subr.mxu0 0.0
    %401 = vmatpush1.msra.mxu0 0.0
    %402 = vmatprep.subr.mxu0 0.0
    %403 = vmatpush1.msra.mxu0 0.0
    %404 = vmatprep.subr.mxu0 0.0
    %405 = vmatpush1.msra.mxu0 0.0
    %406 = vmatprep.subr.mxu0 0.0
    %407 = vmatpush1.msra.mxu0 0.0
    %408 = vmatprep.subr.mxu0 0.0
    %409 = vmatpush1.msra.mxu0 0.0
    %410 = vmatprep.subr.mxu0 0.0
    %411 = vmatpush1.msra.mxu0 0.0
    %412 = vmatprep.subr.mxu0 0.0
    %413 = vmatpush1.msra.mxu0 0.0
    %414 = vmatprep.subr.mxu0 0.0
    %415 = vmatpush1.msra.mxu0 0.0
    %416 = vmatprep.subr.mxu0 0.0
    %417 = vmatpush1.msra.mxu0 0.0
    %418 = vmatprep.subr.mxu0 0.0
    %419 = vmatpush1.msra.mxu0 0.0
    %420 = vmatprep.subr.mxu0 0.0
    %421 = vmatpush1.msra.mxu0 0.0
    %422 = vmatprep.subr.mxu0 0.0
    %423 = vmatpush1.msra.mxu0 0.0
    %424 = vmatprep.subr.mxu0 0.0
    %425 = vmatpush1.msra.mxu0 0.0
    %426 = vmatprep.subr.mxu0 0.0
    %427 = vmatpush1.msra.mxu0 0.0
    %428 = vmatprep.subr.mxu0 0.0
    %429 = vmatpush1.msra.mxu0 0.0
    %430 = vmatprep.subr.mxu0 0.0
    %431 = vmatpush1.msra.mxu0 0.0
    %432 = vmatprep.subr.mxu0 0.0
    %433 = vmatpush1.msra.mxu0 0.0
    %434 = vmatprep.subr.mxu0 0.0
    %435 = vmatpush1.msra.mxu0 0.0
    %436 = vmatprep.subr.mxu0 0.0
    %437 = vmatpush1.msra.mxu0 0.0
    %438 = vmatprep.subr.mxu0 0.0
    %439 = vmatpush1.msra.mxu0 0.0
    %440 = vmatprep.subr.mxu0 0.0
    %441 = vmatpush1.msra.mxu0 0.0
    %442 = vmatprep.subr.mxu0 0.0
    %443 = vmatpush1.msra.mxu0 0.0
    %444 = vmatprep.subr.mxu0 0.0
    %445 = vmatpush1.msra.mxu0 0.0
    %446 = vmatprep.subr.mxu0 0.0
    %447 = vmatpush1.msra.mxu0 0.0
    %448 = vmatprep.subr.mxu0 0.0
    %449 = vmatpush1.msra.mxu0 0.0
    %450 = vmatprep.subr.mxu0 0.0
    %451 = vmatpush1.msra.mxu0 0.0
    %452 = vmatprep.subr.mxu0 0.0
    %453 = vmatpush1.msra.mxu0 0.0
    %454 = vmatprep.subr.mxu0 0.0
    %455 = vmatpush1.msra.mxu0 0.0
    %456 = vmatprep.subr.mxu0 0.0
    %457 = vmatpush1.msra.mxu0 0.0
    %458 = vmatprep.subr.mxu0 0.0
    %459 = vmatpush1.msra.mxu0 0.0
    %460 = vmatprep.mubr.f32.mxu0 0.0
    %461 = vmatmul.mubr.f32.gmra.mrb[0].mxu0 %v391
    %v462 = vpop.f32.mrb[0].mxu0
    %v463 = vadd.f32 0.0, %v462
    %v464 = vpop.f32.mrb[0].mxu0
    %465 = vmatprep.mubr.f32.mxu0 0.0
    %466 = vmatmul.mubr.f32.gmra.mrb[0].mxu0 %v394
    %v467 = vpop.f32.mrb[0].mxu0
    %v468 = vadd.f32 0.0, %v467
    %v469 = vpop.f32.mrb[0].mxu0
    %470 = vdwg.mxu0
    %v472 = vsel %vm389, %v384, 0
    %v475 = vsel %vm389, %v385, 0
    %477 = vmatprep.subr.mxu0 0.0
    %478 = vmatpush1.msra.mxu0 %v372
    %479 = vmatprep.subr.mxu0 0.0
    %480 = vmatpush1.msra.mxu0 %v373
    %481 = vmatprep.subr.mxu0 0.0
    %482 = vmatpush1.msra.mxu0 0.0
    %483 = vmatprep.subr.mxu0 0.0
    %484 = vmatpush1.msra.mxu0 0.0
    %485 = vmatprep.subr.mxu0 0.0
    %486 = vmatpush1.msra.mxu0 0.0
    %487 = vmatprep.subr.mxu0 0.0
    %488 = vmatpush1.msra.mxu0 0.0
    %489 = vmatprep.subr.mxu0 0.0
    %490 = vmatpush1.msra.mxu0 0.0
    %491 = vmatprep.subr.mxu0 0.0
    %492 = vmatpush1.msra.mxu0 0.0
    %493 = vmatprep.subr.mxu0 0.0
    %494 = vmatpush1.msra.mxu0 0.0
    %495 = vmatprep.subr.mxu0 0.0
    %496 = vmatpush1.msra.mxu0 0.0
    %497 = vmatprep.subr.mxu0 0.0
    %498 = vmatpush1.msra.mxu0 0.0
    %499 = vmatprep.subr.mxu0 0.0
    %500 = vmatpush1.msra.mxu0 0.0
    %501 = vmatprep.subr.mxu0 0.0
    %502 = vmatpush1.msra.mxu0 0.0
    %503 = vmatprep.subr.mxu0 0.0
    %504 = vmatpush1.msra.mxu0 0.0
    %505 = vmatprep.subr.mxu0 0.0
    %506 = vmatpush1.msra.mxu0 0.0
    %507 = vmatprep.subr.mxu0 0.0
    %508 = vmatpush1.msra.mxu0 0.0
    %509 = vmatprep.subr.mxu0 0.0
    %510 = vmatpush1.msra.mxu0 0.0
    %511 = vmatprep.subr.mxu0 0.0
    %512 = vmatpush1.msra.mxu0 0.0
    %513 = vmatprep.subr.mxu0 0.0
    %514 = vmatpush1.msra.mxu0 0.0
    %515 = vmatprep.subr.mxu0 0.0
    %516 = vmatpush1.msra.mxu0 0.0
    %517 = vmatprep.subr.mxu0 0.0
    %518 = vmatpush1.msra.mxu0 0.0
    %519 = vmatprep.subr.mxu0 0.0
    %520 = vmatpush1.msra.mxu0 0.0
    %521 = vmatprep.subr.mxu0 0.0
    %522 = vmatpush1.msra.mxu0 0.0
    %523 = vmatprep.subr.mxu0 0.0
    %524 = vmatpush1.msra.mxu0 0.0
    %525 = vmatprep.subr.mxu0 0.0
    %526 = vmatpush1.msra.mxu0 0.0
    %527 = vmatprep.subr.mxu0 0.0
    %528 = vmatpush1.msra.mxu0 0.0
    %529 = vmatprep.subr.mxu0 0.0
    %530 = vmatpush1.msra.mxu0 0.0
    %531 = vmatprep.subr.mxu0 0.0
    %532 = vmatpush1.msra.mxu0 0.0
    %533 = vmatprep.subr.mxu0 0.0
    %534 = vmatpush1.msra.mxu0 0.0
    %535 = vmatprep.subr.mxu0 0.0
    %536 = vmatpush1.msra.mxu0 0.0
    %537 = vmatprep.subr.mxu0 0.0
    %538 = vmatpush1.msra.mxu0 0.0
    %539 = vmatprep.subr.mxu0 0.0
    %540 = vmatpush1.msra.mxu0 0.0
    %541 = vmatprep.mubr.f32.mxu0 0.0
    %542 = vmatmul.mubr.f32.gmra.mrb[0].mxu0 %v472
    %v543 = vpop.f32.mrb[0].mxu0
    %v544 = vadd.f32 %v463, %v543
    %v545 = vpop.f32.mrb[0].mxu0
    %546 = vmatprep.mubr.f32.mxu0 0.0
    %547 = vmatmul.mubr.f32.gmra.mrb[0].mxu0 %v475
    %v548 = vpop.f32.mrb[0].mxu0
    %v549 = vadd.f32 %v468, %v548
    %v550 = vpop.f32.mrb[0].mxu0
    %551 = vdwg.mxu0
    %s552 = scalar_lea.vmem %s6, 32
    %v553 = vld [vmem:[%s552] sm:$0xff]
    %v554 = vld [vmem:[%s552 + $0x8] sm:$0xff]
    %v556 = vsel %vm389, %v553, 0
    %v559 = vsel %vm389, %v554, 0
    %561 = vmatprep.subr.mxu0 0.0
    %562 = vmatpush1.msra.mxu0 %v382
    %563 = vmatprep.subr.mxu0 0.0
    %564 = vmatpush1.msra.mxu0 %v383
    %565 = vmatprep.subr.mxu0 0.0
    %566 = vmatpush1.msra.mxu0 0.0
    %567 = vmatprep.subr.mxu0 0.0
    %568 = vmatpush1.msra.mxu0 0.0
    %569 = vmatprep.subr.mxu0 0.0
    %570 = vmatpush1.msra.mxu0 0.0
    %571 = vmatprep.subr.mxu0 0.0
    %572 = vmatpush1.msra.mxu0 0.0
    %573 = vmatprep.subr.mxu0 0.0
    %574 = vmatpush1.msra.mxu0 0.0
    %575 = vmatprep.subr.mxu0 0.0
    %576 = vmatpush1.msra.mxu0 0.0
    %577 = vmatprep.subr.mxu0 0.0
    %578 = vmatpush1.msra.mxu0 0.0
    %579 = vmatprep.subr.mxu0 0.0
    %580 = vmatpush1.msra.mxu0 0.0
    %581 = vmatprep.subr.mxu0 0.0
    %582 = vmatpush1.msra.mxu0 0.0
    %583 = vmatprep.subr.mxu0 0.0
    %584 = vmatpush1.msra.mxu0 0.0
    %585 = vmatprep.subr.mxu0 0.0
    %586 = vmatpush1.msra.mxu0 0.0
    %587 = vmatprep.subr.mxu0 0.0
    %588 = vmatpush1.msra.mxu0 0.0
    %589 = vmatprep.subr.mxu0 0.0
    %590 = vmatpush1.msra.mxu0 0.0
    %591 = vmatprep.subr.mxu0 0.0
    %592 = vmatpush1.msra.mxu0 0.0
    %593 = vmatprep.subr.mxu0 0.0
    %594 = vmatpush1.msra.mxu0 0.0
    %595 = vmatprep.subr.mxu0 0.0
    %596 = vmatpush1.msra.mxu0 0.0
    %597 = vmatprep.subr.mxu0 0.0
    %598 = vmatpush1.msra.mxu0 0.0
    %599 = vmatprep.subr.mxu0 0.0
    %600 = vmatpush1.msra.mxu0 0.0
    %601 = vmatprep.subr.mxu0 0.0
    %602 = vmatpush1.msra.mxu0 0.0
    %603 = vmatprep.subr.mxu0 0.0
    %604 = vmatpush1.msra.mxu0 0.0
    %605 = vmatprep.subr.mxu0 0.0
    %606 = vmatpush1.msra.mxu0 0.0
    %607 = vmatprep.subr.mxu0 0.0
    %608 = vmatpush1.msra.mxu0 0.0
    %609 = vmatprep.subr.mxu0 0.0
    %610 = vmatpush1.msra.mxu0 0.0
    %611 = vmatprep.subr.mxu0 0.0
    %612 = vmatpush1.msra.mxu0 0.0
    %613 = vmatprep.subr.mxu0 0.0
    %614 = vmatpush1.msra.mxu0 0.0
    %615 = vmatprep.subr.mxu0 0.0
    %616 = vmatpush1.msra.mxu0 0.0
    %617 = vmatprep.subr.mxu0 0.0
    %618 = vmatpush1.msra.mxu0 0.0
    %619 = vmatprep.subr.mxu0 0.0
    %620 = vmatpush1.msra.mxu0 0.0
    %621 = vmatprep.subr.mxu0 0.0
    %622 = vmatpush1.msra.mxu0 0.0
    %623 = vmatprep.subr.mxu0 0.0
    %624 = vmatpush1.msra.mxu0 0.0
    %625 = vmatprep.mubr.f32.mxu0 0.0
    %626 = vmatmul.mubr.f32.gmra.mrb[0].mxu0 %v556
    %v627 = vpop.f32.mrb[0].mxu0
    %v628 = vadd.f32 0.0, %v627
    %v629 = vpop.f32.mrb[0].mxu0
    %630 = vmatprep.mubr.f32.mxu0 0.0
    %631 = vmatmul.mubr.f32.gmra.mrb[0].mxu0 %v559
    %v632 = vpop.f32.mrb[0].mxu0
    %v633 = vadd.f32 0.0, %v632
    %v634 = vpop.f32.mrb[0].mxu0
    %635 = vdwg.mxu0
    %v636 = vadd.f32 %v544, %v628
    %v637 = vadd.f32 %v549, %v633
    %639 = vset.pattern.permute.xlu0 0
    %640 = vperm.xlu0 %639, %v362
    %v641 = vpop.permute.xlu0 %640
    %644 = vset.pattern.permute.xlu0 0
    %645 = vperm.xlu0 %644, %v363
    %v646 = vpop.permute.xlu0 %645
    %v648 = vmul.f32 %v636, %v641
    %v649 = vmul.f32 %v637, %v646
    %v650 = vld [vmem:[%s8] sm:$0xff]
    %v651 = vld [vmem:[%s8 + $0x8] sm:$0xff]
    %653 = vset.pattern.permute.xlu0 0
    %654 = vperm.xlu0 %653, %v650
    %v655 = vpop.permute.xlu0 %654
    %658 = vset.pattern.permute.xlu0 0
    %659 = vperm.xlu0 %658, %v651
    %v660 = vpop.permute.xlu0 %659
    %v662 = vadd.f32 %v648, %v655
    %v663 = vadd.f32 %v649, %v660
    %s664 = sld [smem:[#allocation2 + $0x2]]
    %vm665 = vcmp.ge.f32.partialorder %v662, 0.0
    %vm666 = vcmp.ge.f32.partialorder %v663, 0.0
    %v667 = vstv %s664
    %v668 = vmul.f32 %v667, %v662
    %v669 = vmul.f32 %v667, %v663
    %v670 = vsel %vm665, %v662, %v668
    %v671 = vsel %vm666, %v663, %v669
    %672 = vrot.lane.b32.xlu0 %v670, 1
    %v673 = vpop.permute.xlu0 %672
    %674 = vrot.lane.b32.xlu0 %v671, 1
    %v675 = vpop.permute.xlu0 %674
    %v676 = vmul.f32 %v673, %v371
    %v677 = vmul.f32 %v675, %v371
    %678 = vrot.lane.b32.xlu0 %v670, 127
    %v679 = vpop.permute.xlu0 %678
    %680 = vrot.lane.b32.xlu0 %v671, 127
    %v681 = vpop.permute.xlu0 %680
    %v682 = vmul.f32 %v679, %v381
    %v683 = vmul.f32 %v681, %v381
    %s684 = scalar_lea.vmem %s6, 48
    %v685 = vld [vmem:[%s684] sm:$0xff]
    %v686 = vld [vmem:[%s684 + $0x8] sm:$0xff]
    %s687 = scalar_lea.vmem %s6, 64
    %v688 = vld [vmem:[%s687] sm:$0xff]
    %v689 = vld [vmem:[%s687 + $0x8] sm:$0xff]
    %v691 = vsel %vm389, %v688, 0
    %v694 = vsel %vm389, %v689, 0
    %696 = vmatprep.subr.mxu0 0.0
    %697 = vmatpush1.msra.mxu0 %v670
    %698 = vmatprep.subr.mxu0 0.0
    %699 = vmatpush1.msra.mxu0 %v671
    %700 = vmatprep.subr.mxu0 0.0
    %701 = vmatpush1.msra.mxu0 0.0
    %702 = vmatprep.subr.mxu0 0.0
    %703 = vmatpush1.msra.mxu0 0.0
    %704 = vmatprep.subr.mxu0 0.0
    %705 = vmatpush1.msra.mxu0 0.0
    %706 = vmatprep.subr.mxu0 0.0
    %707 = vmatpush1.msra.mxu0 0.0
    %708 = vmatprep.subr.mxu0 0.0
    %709 = vmatpush1.msra.mxu0 0.0
    %710 = vmatprep.subr.mxu0 0.0
    %711 = vmatpush1.msra.mxu0 0.0
    %712 = vmatprep.subr.mxu0 0.0
    %713 = vmatpush1.msra.mxu0 0.0
    %714 = vmatprep.subr.mxu0 0.0
    %715 = vmatpush1.msra.mxu0 0.0
    %716 = vmatprep.subr.mxu0 0.0
    %717 = vmatpush1.msra.mxu0 0.0
    %718 = vmatprep.subr.mxu0 0.0
    %719 = vmatpush1.msra.mxu0 0.0
    %720 = vmatprep.subr.mxu0 0.0
    %721 = vmatpush1.msra.mxu0 0.0
    %722 = vmatprep.subr.mxu0 0.0
    %723 = vmatpush1.msra.mxu0 0.0
    %724 = vmatprep.subr.mxu0 0.0
    %725 = vmatpush1.msra.mxu0 0.0
    %726 = vmatprep.subr.mxu0 0.0
    %727 = vmatpush1.msra.mxu0 0.0
    %728 = vmatprep.subr.mxu0 0.0
    %729 = vmatpush1.msra.mxu0 0.0
    %730 = vmatprep.subr.mxu0 0.0
    %731 = vmatpush1.msra.mxu0 0.0
    %732 = vmatprep.subr.mxu0 0.0
    %733 = vmatpush1.msra.mxu0 0.0
    %734 = vmatprep.subr.mxu0 0.0
    %735 = vmatpush1.msra.mxu0 0.0
    %736 = vmatprep.subr.mxu0 0.0
    %737 = vmatpush1.msra.mxu0 0.0
    %738 = vmatprep.subr.mxu0 0.0
    %739 = vmatpush1.msra.mxu0 0.0
    %740 = vmatprep.subr.mxu0 0.0
    %741 = vmatpush1.msra.mxu0 0.0
    %742 = vmatprep.subr.mxu0 0.0
    %743 = vmatpush1.msra.mxu0 0.0
    %744 = vmatprep.subr.mxu0 0.0
    %745 = vmatpush1.msra.mxu0 0.0
    %746 = vmatprep.subr.mxu0 0.0
    %747 = vmatpush1.msra.mxu0 0.0
    %748 = vmatprep.subr.mxu0 0.0
    %749 = vmatpush1.msra.mxu0 0.0
    %750 = vmatprep.subr.mxu0 0.0
    %751 = vmatpush1.msra.mxu0 0.0
    %752 = vmatprep.subr.mxu0 0.0
    %753 = vmatpush1.msra.mxu0 0.0
    %754 = vmatprep.subr.mxu0 0.0
    %755 = vmatpush1.msra.mxu0 0.0
    %756 = vmatprep.subr.mxu0 0.0
    %757 = vmatpush1.msra.mxu0 0.0
    %758 = vmatprep.subr.mxu0 0.0
    %759 = vmatpush1.msra.mxu0 0.0
    %760 = vmatprep.mubr.f32.mxu0 0.0
    %761 = vmatmul.mubr.f32.gmra.mrb[0].mxu0 %v691
    %v762 = vpop.f32.mrb[0].mxu0
    %v763 = vadd.f32 0.0, %v762
    %v764 = vpop.f32.mrb[0].mxu0
    %765 = vmatprep.mubr.f32.mxu0 0.0
    %766 = vmatmul.mubr.f32.gmra.mrb[0].mxu0 %v694
    %v767 = vpop.f32.mrb[0].mxu0
    %v768 = vadd.f32 0.0, %v767
    %v769 = vpop.f32.mrb[0].mxu0
    %770 = vdwg.mxu0
    %v772 = vsel %vm389, %v685, 0
    %v775 = vsel %vm389, %v686, 0
    %777 = vmatprep.subr.mxu0 0.0
    %778 = vmatpush1.msra.mxu0 %v676
    %779 = vmatprep.subr.mxu0 0.0
    %780 = vmatpush1.msra.mxu0 %v677
    %781 = vmatprep.subr.mxu0 0.0
    %782 = vmatpush1.msra.mxu0 0.0
    %783 = vmatprep.subr.mxu0 0.0
    %784 = vmatpush1.msra.mxu0 0.0
    %785 = vmatprep.subr.mxu0 0.0
    %786 = vmatpush1.msra.mxu0 0.0
    %787 = vmatprep.subr.mxu0 0.0
    %788 = vmatpush1.msra.mxu0 0.0
    %789 = vmatprep.subr.mxu0 0.0
    %790 = vmatpush1.msra.mxu0 0.0
    %791 = vmatprep.subr.mxu0 0.0
    %792 = vmatpush1.msra.mxu0 0.0
    %793 = vmatprep.subr.mxu0 0.0
    %794 = vmatpush1.msra.mxu0 0.0
    %795 = vmatprep.subr.mxu0 0.0
    %796 = vmatpush1.msra.mxu0 0.0
    %797 = vmatprep.subr.mxu0 0.0
    %798 = vmatpush1.msra.mxu0 0.0
    %799 = vmatprep.subr.mxu0 0.0
    %800 = vmatpush1.msra.mxu0 0.0
    %801 = vmatprep.subr.mxu0 0.0
    %802 = vmatpush1.msra.mxu0 0.0
    %803 = vmatprep.subr.mxu0 0.0
    %804 = vmatpush1.msra.mxu0 0.0
    %805 = vmatprep.subr.mxu0 0.0
    %806 = vmatpush1.msra.mxu0 0.0
    %807 = vmatprep.subr.mxu0 0.0
    %808 = vmatpush1.msra.mxu0 0.0
    %809 = vmatprep.subr.mxu0 0.0
    %810 = vmatpush1.msra.mxu0 0.0
    %811 = vmatprep.subr.mxu0 0.0
    %812 = vmatpush1.msra.mxu0 0.0
    %813 = vmatprep.subr.mxu0 0.0
    %814 = vmatpush1.msra.mxu0 0.0
    %815 = vmatprep.subr.mxu0 0.0
    %816 = vmatpush1.msra.mxu0 0.0
    %817 = vmatprep.subr.mxu0 0.0
    %818 = vmatpush1.msra.mxu0 0.0
    %819 = vmatprep.subr.mxu0 0.0
    %820 = vmatpush1.msra.mxu0 0.0
    %821 = vmatprep.subr.mxu0 0.0
    %822 = vmatpush1.msra.mxu0 0.0
    %823 = vmatprep.subr.mxu0 0.0
    %824 = vmatpush1.msra.mxu0 0.0
    %825 = vmatprep.subr.mxu0 0.0
    %826 = vmatpush1.msra.mxu0 0.0
    %827 = vmatprep.subr.mxu0 0.0
    %828 = vmatpush1.msra.mxu0 0.0
    %829 = vmatprep.subr.mxu0 0.0
    %830 = vmatpush1.msra.mxu0 0.0
    %831 = vmatprep.subr.mxu0 0.0
    %832 = vmatpush1.msra.mxu0 0.0
    %833 = vmatprep.subr.mxu0 0.0
    %834 = vmatpush1.msra.mxu0 0.0
    %835 = vmatprep.subr.mxu0 0.0
    %836 = vmatpush1.msra.mxu0 0.0
    %837 = vmatprep.subr.mxu0 0.0
    %838 = vmatpush1.msra.mxu0 0.0
    %839 = vmatprep.subr.mxu0 0.0
    %840 = vmatpush1.msra.mxu0 0.0
    %841 = vmatprep.mubr.f32.mxu0 0.0
    %842 = vmatmul.mubr.f32.gmra.mrb[0].mxu0 %v772
    %v843 = vpop.f32.mrb[0].mxu0
    %v844 = vadd.f32 %v763, %v843
    %v845 = vpop.f32.mrb[0].mxu0
    %846 = vmatprep.mubr.f32.mxu0 0.0
    %847 = vmatmul.mubr.f32.gmra.mrb[0].mxu0 %v775
    %v848 = vpop.f32.mrb[0].mxu0
    %v849 = vadd.f32 %v768, %v848
    %v850 = vpop.f32.mrb[0].mxu0
    %851 = vdwg.mxu0
    %s852 = scalar_lea.vmem %s6, 80
    %v853 = vld [vmem:[%s852] sm:$0xff]
    %v854 = vld [vmem:[%s852 + $0x8] sm:$0xff]
    %v856 = vsel %vm389, %v853, 0
    %v859 = vsel %vm389, %v854, 0
    %861 = vmatprep.subr.mxu0 0.0
    %862 = vmatpush1.msra.mxu0 %v682
    %863 = vmatprep.subr.mxu0 0.0
    %864 = vmatpush1.msra.mxu0 %v683
    %865 = vmatprep.subr.mxu0 0.0
    %866 = vmatpush1.msra.mxu0 0.0
    %867 = vmatprep.subr.mxu0 0.0
    %868 = vmatpush1.msra.mxu0 0.0
    %869 = vmatprep.subr.mxu0 0.0
    %870 = vmatpush1.msra.mxu0 0.0
    %871 = vmatprep.subr.mxu0 0.0
    %872 = vmatpush1.msra.mxu0 0.0
    %873 = vmatprep.subr.mxu0 0.0
    %874 = vmatpush1.msra.mxu0 0.0
    %875 = vmatprep.subr.mxu0 0.0
    %876 = vmatpush1.msra.mxu0 0.0
    %877 = vmatprep.subr.mxu0 0.0
    %878 = vmatpush1.msra.mxu0 0.0
    %879 = vmatprep.subr.mxu0 0.0
    %880 = vmatpush1.msra.mxu0 0.0
    %881 = vmatprep.subr.mxu0 0.0
    %882 = vmatpush1.msra.mxu0 0.0
    %883 = vmatprep.subr.mxu0 0.0
    %884 = vmatpush1.msra.mxu0 0.0
    %885 = vmatprep.subr.mxu0 0.0
    %886 = vmatpush1.msra.mxu0 0.0
    %887 = vmatprep.subr.mxu0 0.0
    %888 = vmatpush1.msra.mxu0 0.0
    %889 = vmatprep.subr.mxu0 0.0
    %890 = vmatpush1.msra.mxu0 0.0
    %891 = vmatprep.subr.mxu0 0.0
    %892 = vmatpush1.msra.mxu0 0.0
    %893 = vmatprep.subr.mxu0 0.0
    %894 = vmatpush1.msra.mxu0 0.0
    %895 = vmatprep.subr.mxu0 0.0
    %896 = vmatpush1.msra.mxu0 0.0
    %897 = vmatprep.subr.mxu0 0.0
    %898 = vmatpush1.msra.mxu0 0.0
    %899 = vmatprep.subr.mxu0 0.0
    %900 = vmatpush1.msra.mxu0 0.0
    %901 = vmatprep.subr.mxu0 0.0
    %902 = vmatpush1.msra.mxu0 0.0
    %903 = vmatprep.subr.mxu0 0.0
    %904 = vmatpush1.msra.mxu0 0.0
    %905 = vmatprep.subr.mxu0 0.0
    %906 = vmatpush1.msra.mxu0 0.0
    %907 = vmatprep.subr.mxu0 0.0
    %908 = vmatpush1.msra.mxu0 0.0
    %909 = vmatprep.subr.mxu0 0.0
    %910 = vmatpush1.msra.mxu0 0.0
    %911 = vmatprep.subr.mxu0 0.0
    %912 = vmatpush1.msra.mxu0 0.0
    %913 = vmatprep.subr.mxu0 0.0
    %914 = vmatpush1.msra.mxu0 0.0
    %915 = vmatprep.subr.mxu0 0.0
    %916 = vmatpush1.msra.mxu0 0.0
    %917 = vmatprep.subr.mxu0 0.0
    %918 = vmatpush1.msra.mxu0 0.0
    %919 = vmatprep.subr.mxu0 0.0
    %920 = vmatpush1.msra.mxu0 0.0
    %921 = vmatprep.subr.mxu0 0.0
    %922 = vmatpush1.msra.mxu0 0.0
    %923 = vmatprep.subr.mxu0 0.0
    %924 = vmatpush1.msra.mxu0 0.0
    %925 = vmatprep.mubr.f32.mxu0 0.0
    %926 = vmatmul.mubr.f32.gmra.mrb[0].mxu0 %v856
    %v927 = vpop.f32.mrb[0].mxu0
    %v928 = vadd.f32 0.0, %v927
    %v929 = vpop.f32.mrb[0].mxu0
    %930 = vmatprep.mubr.f32.mxu0 0.0
    %931 = vmatmul.mubr.f32.gmra.mrb[0].mxu0 %v859
    %v932 = vpop.f32.mrb[0].mxu0
    %v933 = vadd.f32 0.0, %v932
    %v934 = vpop.f32.mrb[0].mxu0
    %935 = vdwg.mxu0
    %v936 = vadd.f32 %v844, %v928
    %v937 = vadd.f32 %v849, %v933
    %v938 = vmul.f32 %v936, %v641
    %v939 = vmul.f32 %v937, %v646
    %s940 = scalar_lea.vmem %s8, 16
    %v941 = vld [vmem:[%s940] sm:$0xff]
    %v942 = vld [vmem:[%s940 + $0x8] sm:$0xff]
    %944 = vset.pattern.permute.xlu0 0
    %945 = vperm.xlu0 %944, %v941
    %v946 = vpop.permute.xlu0 %945
    %949 = vset.pattern.permute.xlu0 0
    %950 = vperm.xlu0 %949, %v942
    %v951 = vpop.permute.xlu0 %950
    %v953 = vadd.f32 %v938, %v946
    %v954 = vadd.f32 %v939, %v951
    %v955 = vadd.f32 %v953, %v360
    %v956 = vadd.f32 %v954, %v361
    %s957 = scalar_lea.vmem %s7, 16
    %v958 = vld [vmem:[%s957] sm:$0xff]
    %v959 = vld [vmem:[%s957 + $0x8] sm:$0xff]
    %960 = vrot.lane.b32.xlu0 %v955, 1
    %v961 = vpop.permute.xlu0 %960
    %962 = vrot.lane.b32.xlu0 %v956, 1
    %v963 = vpop.permute.xlu0 %962
    %v964 = vmul.f32 %v961, %v371
    %v965 = vmul.f32 %v963, %v371
    %966 = vrot.lane.b32.xlu0 %v955, 127
    %v967 = vpop.permute.xlu0 %966
    %968 = vrot.lane.b32.xlu0 %v956, 127
    %v969 = vpop.permute.xlu0 %968
    %v970 = vmul.f32 %v967, %v381
    %v971 = vmul.f32 %v969, %v381
    %s972 = scalar_lea.vmem %s6, 96
    %v973 = vld [vmem:[%s972] sm:$0xff]
    %v974 = vld [vmem:[%s972 + $0x8] sm:$0xff]
    %s975 = scalar_lea.vmem %s6, 112
    %v976 = vld [vmem:[%s975] sm:$0xff]
    %v977 = vld [vmem:[%s975 + $0x8] sm:$0xff]
    %v979 = vsel %vm389, %v976, 0
    %v982 = vsel %vm389, %v977, 0
    %984 = vmatprep.subr.mxu0 0.0
    %985 = vmatpush1.msra.mxu0 %v955
    %986 = vmatprep.subr.mxu0 0.0
    %987 = vmatpush1.msra.mxu0 %v956
    %988 = vmatprep.subr.mxu0 0.0
    %989 = vmatpush1.msra.mxu0 0.0
    %990 = vmatprep.subr.mxu0 0.0
    %991 = vmatpush1.msra.mxu0 0.0
    %992 = vmatprep.subr.mxu0 0.0
    %993 = vmatpush1.msra.mxu0 0.0
    %994 = vmatprep.subr.mxu0 0.0
    %995 = vmatpush1.msra.mxu0 0.0
    %996 = vmatprep.subr.mxu0 0.0
    %997 = vmatpush1.msra.mxu0 0.0
    %998 = vmatprep.subr.mxu0 0.0
    %999 = vmatpush1.msra.mxu0 0.0
    %1000 = vmatprep.subr.mxu0 0.0
    %1001 = vmatpush1.msra.mxu0 0.0
    %1002 = vmatprep.subr.mxu0 0.0
    %1003 = vmatpush1.msra.mxu0 0.0
    %1004 = vmatprep.subr.mxu0 0.0
    %1005 = vmatpush1.msra.mxu0 0.0
    %1006 = vmatprep.subr.mxu0 0.0
    %1007 = vmatpush1.msra.mxu0 0.0
    %1008 = vmatprep.subr.mxu0 0.0
    %1009 = vmatpush1.msra.mxu0 0.0
    %1010 = vmatprep.subr.mxu0 0.0
    %1011 = vmatpush1.msra.mxu0 0.0
    %1012 = vmatprep.subr.mxu0 0.0
    %1013 = vmatpush1.msra.mxu0 0.0
    %1014 = vmatprep.subr.mxu0 0.0
    %1015 = vmatpush1.msra.mxu0 0.0
    %1016 = vmatprep.subr.mxu0 0.0
    %1017 = vmatpush1.msra.mxu0 0.0
    %1018 = vmatprep.subr.mxu0 0.0
    %1019 = vmatpush1.msra.mxu0 0.0
    %1020 = vmatprep.subr.mxu0 0.0
    %1021 = vmatpush1.msra.mxu0 0.0
    %1022 = vmatprep.subr.mxu0 0.0
    %1023 = vmatpush1.msra.mxu0 0.0
    %1024 = vmatprep.subr.mxu0 0.0
    %1025 = vmatpush1.msra.mxu0 0.0
    %1026 = vmatprep.subr.mxu0 0.0
    %1027 = vmatpush1.msra.mxu0 0.0
    %1028 = vmatprep.subr.mxu0 0.0
    %1029 = vmatpush1.msra.mxu0 0.0
    %1030 = vmatprep.subr.mxu0 0.0
    %1031 = vmatpush1.msra.mxu0 0.0
    %1032 = vmatprep.subr.mxu0 0.0
    %1033 = vmatpush1.msra.mxu0 0.0
    %1034 = vmatprep.subr.mxu0 0.0
    %1035 = vmatpush1.msra.mxu0 0.0
    %1036 = vmatprep.subr.mxu0 0.0
    %1037 = vmatpush1.msra.mxu0 0.0
    %1038 = vmatprep.subr.mxu0 0.0
    %1039 = vmatpush1.msra.mxu0 0.0
    %1040 = vmatprep.subr.mxu0 0.0
    %1041 = vmatpush1.msra.mxu0 0.0
    %1042 = vmatprep.subr.mxu0 0.0
    %1043 = vmatpush1.msra.mxu0 0.0
    %1044 = vmatprep.subr.mxu0 0.0
    %1045 = vmatpush1.msra.mxu0 0.0
    %1046 = vmatprep.subr.mxu0 0.0
    %1047 = vmatpush1.msra.mxu0 0.0
    %1048 = vmatprep.mubr.f32.mxu0 0.0
    %1049 = vmatmul.mubr.f32.gmra.mrb[0].mxu0 %v979
    %v1050 = vpop.f32.mrb[0].mxu0
    %v1051 = vadd.f32 0.0, %v1050
    %v1052 = vpop.f32.mrb[0].mxu0
    %1053 = vmatprep.mubr.f32.mxu0 0.0
    %1054 = vmatmul.mubr.f32.gmra.mrb[0].mxu0 %v982
    %v1055 = vpop.f32.mrb[0].mxu0
    %v1056 = vadd.f32 0.0, %v1055
    %v1057 = vpop.f32.mrb[0].mxu0
    %1058 = vdwg.mxu0
    %v1060 = vsel %vm389, %v973, 0
    %v1063 = vsel %vm389, %v974, 0
    %1065 = vmatprep.subr.mxu0 0.0
    %1066 = vmatpush1.msra.mxu0 %v964
    %1067 = vmatprep.subr.mxu0 0.0
    %1068 = vmatpush1.msra.mxu0 %v965
    %1069 = vmatprep.subr.mxu0 0.0
    %1070 = vmatpush1.msra.mxu0 0.0
    %1071 = vmatprep.subr.mxu0 0.0
    %1072 = vmatpush1.msra.mxu0 0.0
    %1073 = vmatprep.subr.mxu0 0.0
    %1074 = vmatpush1.msra.mxu0 0.0
    %1075 = vmatprep.subr.mxu0 0.0
    %1076 = vmatpush1.msra.mxu0 0.0
    %1077 = vmatprep.subr.mxu0 0.0
    %1078 = vmatpush1.msra.mxu0 0.0
    %1079 = vmatprep.subr.mxu0 0.0
    %1080 = vmatpush1.msra.mxu0 0.0
    %1081 = vmatprep.subr.mxu0 0.0
    %1082 = vmatpush1.msra.mxu0 0.0
    %1083 = vmatprep.subr.mxu0 0.0
    %1084 = vmatpush1.msra.mxu0 0.0
    %1085 = vmatprep.subr.mxu0 0.0
    %1086 = vmatpush1.msra.mxu0 0.0
    %1087 = vmatprep.subr.mxu0 0.0
    %1088 = vmatpush1.msra.mxu0 0.0
    %1089 = vmatprep.subr.mxu0 0.0
    %1090 = vmatpush1.msra.mxu0 0.0
    %1091 = vmatprep.subr.mxu0 0.0
    %1092 = vmatpush1.msra.mxu0 0.0
    %1093 = vmatprep.subr.mxu0 0.0
    %1094 = vmatpush1.msra.mxu0 0.0
    %1095 = vmatprep.subr.mxu0 0.0
    %1096 = vmatpush1.msra.mxu0 0.0
    %1097 = vmatprep.subr.mxu0 0.0
    %1098 = vmatpush1.msra.mxu0 0.0
    %1099 = vmatprep.subr.mxu0 0.0
    %1100 = vmatpush1.msra.mxu0 0.0
    %1101 = vmatprep.subr.mxu0 0.0
    %1102 = vmatpush1.msra.mxu0 0.0
    %1103 = vmatprep.subr.mxu0 0.0
    %1104 = vmatpush1.msra.mxu0 0.0
    %1105 = vmatprep.subr.mxu0 0.0
    %1106 = vmatpush1.msra.mxu0 0.0
    %1107 = vmatprep.subr.mxu0 0.0
    %1108 = vmatpush1.msra.mxu0 0.0
    %1109 = vmatprep.subr.mxu0 0.0
    %1110 = vmatpush1.msra.mxu0 0.0
    %1111 = vmatprep.subr.mxu0 0.0
    %1112 = vmatpush1.msra.mxu0 0.0
    %1113 = vmatprep.subr.mxu0 0.0
    %1114 = vmatpush1.msra.mxu0 0.0
    %1115 = vmatprep.subr.mxu0 0.0
    %1116 = vmatpush1.msra.mxu0 0.0
    %1117 = vmatprep.subr.mxu0 0.0
    %1118 = vmatpush1.msra.mxu0 0.0
    %1119 = vmatprep.subr.mxu0 0.0
    %1120 = vmatpush1.msra.mxu0 0.0
    %1121 = vmatprep.subr.mxu0 0.0
    %1122 = vmatpush1.msra.mxu0 0.0
    %1123 = vmatprep.subr.mxu0 0.0
    %1124 = vmatpush1.msra.mxu0 0.0
    %1125 = vmatprep.subr.mxu0 0.0
    %1126 = vmatpush1.msra.mxu0 0.0
    %1127 = vmatprep.subr.mxu0 0.0
    %1128 = vmatpush1.msra.mxu0 0.0
    %1129 = vmatprep.mubr.f32.mxu0 0.0
    %1130 = vmatmul.mubr.f32.gmra.mrb[0].mxu0 %v1060
    %v1131 = vpop.f32.mrb[0].mxu0
    %v1132 = vadd.f32 %v1051, %v1131
    %v1133 = vpop.f32.mrb[0].mxu0
    %1134 = vmatprep.mubr.f32.mxu0 0.0
    %1135 = vmatmul.mubr.f32.gmra.mrb[0].mxu0 %v1063
    %v1136 = vpop.f32.mrb[0].mxu0
    %v1137 = vadd.f32 %v1056, %v1136
    %v1138 = vpop.f32.mrb[0].mxu0
    %1139 = vdwg.mxu0
    %s1140 = scalar_lea.vmem %s6, 128
    %v1141 = vld [vmem:[%s1140] sm:$0xff]
    %v1142 = vld [vmem:[%s1140 + $0x8] sm:$0xff]
    %v1144 = vsel %vm389, %v1141, 0
    %v1147 = vsel %vm389, %v1142, 0
    %1149 = vmatprep.subr.mxu0 0.0
    %1150 = vmatpush1.msra.mxu0 %v970
    %1151 = vmatprep.subr.mxu0 0.0
    %1152 = vmatpush1.msra.mxu0 %v971
    %1153 = vmatprep.subr.mxu0 0.0
    %1154 = vmatpush1.msra.mxu0 0.0
    %1155 = vmatprep.subr.mxu0 0.0
    %1156 = vmatpush1.msra.mxu0 0.0
    %1157 = vmatprep.subr.mxu0 0.0
    %1158 = vmatpush1.msra.mxu0 0.0
    %1159 = vmatprep.subr.mxu0 0.0
    %1160 = vmatpush1.msra.mxu0 0.0
    %1161 = vmatprep.subr.mxu0 0.0
    %1162 = vmatpush1.msra.mxu0 0.0
    %1163 = vmatprep.subr.mxu0 0.0
    %1164 = vmatpush1.msra.mxu0 0.0
    %1165 = vmatprep.subr.mxu0 0.0
    %1166 = vmatpush1.msra.mxu0 0.0
    %1167 = vmatprep.subr.mxu0 0.0
    %1168 = vmatpush1.msra.mxu0 0.0
    %1169 = vmatprep.subr.mxu0 0.0
    %1170 = vmatpush1.msra.mxu0 0.0
    %1171 = vmatprep.subr.mxu0 0.0
    %1172 = vmatpush1.msra.mxu0 0.0
    %1173 = vmatprep.subr.mxu0 0.0
    %1174 = vmatpush1.msra.mxu0 0.0
    %1175 = vmatprep.subr.mxu0 0.0
    %1176 = vmatpush1.msra.mxu0 0.0
    %1177 = vmatprep.subr.mxu0 0.0
    %1178 = vmatpush1.msra.mxu0 0.0
    %1179 = vmatprep.subr.mxu0 0.0
    %1180 = vmatpush1.msra.mxu0 0.0
    %1181 = vmatprep.subr.mxu0 0.0
    %1182 = vmatpush1.msra.mxu0 0.0
    %1183 = vmatprep.subr.mxu0 0.0
    %1184 = vmatpush1.msra.mxu0 0.0
    %1185 = vmatprep.subr.mxu0 0.0
    %1186 = vmatpush1.msra.mxu0 0.0
    %1187 = vmatprep.subr.mxu0 0.0
    %1188 = vmatpush1.msra.mxu0 0.0
    %1189 = vmatprep.subr.mxu0 0.0
    %1190 = vmatpush1.msra.mxu0 0.0
    %1191 = vmatprep.subr.mxu0 0.0
    %1192 = vmatpush1.msra.mxu0 0.0
    %1193 = vmatprep.subr.mxu0 0.0
    %1194 = vmatpush1.msra.mxu0 0.0
    %1195 = vmatprep.subr.mxu0 0.0
    %1196 = vmatpush1.msra.mxu0 0.0
    %1197 = vmatprep.subr.mxu0 0.0
    %1198 = vmatpush1.msra.mxu0 0.0
    %1199 = vmatprep.subr.mxu0 0.0
    %1200 = vmatpush1.msra.mxu0 0.0
    %1201 = vmatprep.subr.mxu0 0.0
    %1202 = vmatpush1.msra.mxu0 0.0
    %1203 = vmatprep.subr.mxu0 0.0
    %1204 = vmatpush1.msra.mxu0 0.0
    %1205 = vmatprep.subr.mxu0 0.0
    %1206 = vmatpush1.msra.mxu0 0.0
    %1207 = vmatprep.subr.mxu0 0.0
    %1208 = vmatpush1.msra.mxu0 0.0
    %1209 = vmatprep.subr.mxu0 0.0
    %1210 = vmatpush1.msra.mxu0 0.0
    %1211 = vmatprep.subr.mxu0 0.0
    %1212 = vmatpush1.msra.mxu0 0.0
    %1213 = vmatprep.mubr.f32.mxu0 0.0
    %1214 = vmatmul.mubr.f32.gmra.mrb[0].mxu0 %v1144
    %v1215 = vpop.f32.mrb[0].mxu0
    %v1216 = vadd.f32 0.0, %v1215
    %v1217 = vpop.f32.mrb[0].mxu0
    %1218 = vmatprep.mubr.f32.mxu0 0.0
    %1219 = vmatmul.mubr.f32.gmra.mrb[0].mxu0 %v1147
    %v1220 = vpop.f32.mrb[0].mxu0
    %v1221 = vadd.f32 0.0, %v1220
    %v1222 = vpop.f32.mrb[0].mxu0
    %1223 = vdwg.mxu0
    %v1224 = vadd.f32 %v1132, %v1216
    %v1225 = vadd.f32 %v1137, %v1221
    %1227 = vset.pattern.permute.xlu0 0
    %1228 = vperm.xlu0 %1227, %v958
    %v1229 = vpop.permute.xlu0 %1228
    %1232 = vset.pattern.permute.xlu0 0
    %1233 = vperm.xlu0 %1232, %v959
    %v1234 = vpop.permute.xlu0 %1233
    %v1236 = vmul.f32 %v1224, %v1229
    %v1237 = vmul.f32 %v1225, %v1234
    %s1238 = scalar_lea.vmem %s8, 32
    %v1239 = vld [vmem:[%s1238] sm:$0xff]
    %v1240 = vld [vmem:[%s1238 + $0x8] sm:$0xff]
    %1242 = vset.pattern.permute.xlu0 0
    %1243 = vperm.xlu0 %1242, %v1239
    %v1244 = vpop.permute.xlu0 %1243
    %1247 = vset.pattern.permute.xlu0 0
    %1248 = vperm.xlu0 %1247, %v1240
    %v1249 = vpop.permute.xlu0 %1248
    %v1251 = vadd.f32 %v1236, %v1244
    %v1252 = vadd.f32 %v1237, %v1249
    %s1253 = sld [smem:[#allocation2 + $0x3]]
    %vm1254 = vcmp.ge.f32.partialorder %v1251, 0.0
    %vm1255 = vcmp.ge.f32.partialorder %v1252, 0.0
    %v1256 = vstv %s1253
    %v1257 = vmul.f32 %v1256, %v1251
    %v1258 = vmul.f32 %v1256, %v1252
    %v1259 = vsel %vm1254, %v1251, %v1257
    %v1260 = vsel %vm1255, %v1252, %v1258
    %1261 = vrot.lane.b32.xlu0 %v1259, 1
    %v1262 = vpop.permute.xlu0 %1261
    %1263 = vrot.lane.b32.xlu0 %v1260, 1
    %v1264 = vpop.permute.xlu0 %1263
    %v1265 = vmul.f32 %v1262, %v371
    %v1266 = vmul.f32 %v1264, %v371
    %1267 = vrot.lane.b32.xlu0 %v1259, 127
    %v1268 = vpop.permute.xlu0 %1267
    %1269 = vrot.lane.b32.xlu0 %v1260, 127
    %v1270 = vpop.permute.xlu0 %1269
    %v1271 = vmul.f32 %v1268, %v381
    %v1272 = vmul.f32 %v1270, %v381
    %s1273 = scalar_lea.vmem %s6, 144
    %v1274 = vld [vmem:[%s1273] sm:$0xff]
    %v1275 = vld [vmem:[%s1273 + $0x8] sm:$0xff]
    %s1276 = scalar_lea.vmem %s6, 160
    %v1277 = vld [vmem:[%s1276] sm:$0xff]
    %v1278 = vld [vmem:[%s1276 + $0x8] sm:$0xff]
    %v1280 = vsel %vm389, %v1277, 0
    %v1283 = vsel %vm389, %v1278, 0
    %1285 = vmatprep.subr.mxu0 0.0
    %1286 = vmatpush1.msra.mxu0 %v1259
    %1287 = vmatprep.subr.mxu0 0.0
    %1288 = vmatpush1.msra.mxu0 %v1260
    %1289 = vmatprep.subr.mxu0 0.0
    %1290 = vmatpush1.msra.mxu0 0.0
    %1291 = vmatprep.subr.mxu0 0.0
    %1292 = vmatpush1.msra.mxu0 0.0
    %1293 = vmatprep.subr.mxu0 0.0
    %1294 = vmatpush1.msra.mxu0 0.0
    %1295 = vmatprep.subr.mxu0 0.0
    %1296 = vmatpush1.msra.mxu0 0.0
    %1297 = vmatprep.subr.mxu0 0.0
    %1298 = vmatpush1.msra.mxu0 0.0
    %1299 = vmatprep.subr.mxu0 0.0
    %1300 = vmatpush1.msra.mxu0 0.0
    %1301 = vmatprep.subr.mxu0 0.0
    %1302 = vmatpush1.msra.mxu0 0.0
    %1303 = vmatprep.subr.mxu0 0.0
    %1304 = vmatpush1.msra.mxu0 0.0
    %1305 = vmatprep.subr.mxu0 0.0
    %1306 = vmatpush1.msra.mxu0 0.0
    %1307 = vmatprep.subr.mxu0 0.0
    %1308 = vmatpush1.msra.mxu0 0.0
    %1309 = vmatprep.subr.mxu0 0.0
    %1310 = vmatpush1.msra.mxu0 0.0
    %1311 = vmatprep.subr.mxu0 0.0
    %1312 = vmatpush1.msra.mxu0 0.0
    %1313 = vmatprep.subr.mxu0 0.0
    %1314 = vmatpush1.msra.mxu0 0.0
    %1315 = vmatprep.subr.mxu0 0.0
    %1316 = vmatpush1.msra.mxu0 0.0
    %1317 = vmatprep.subr.mxu0 0.0
    %1318 = vmatpush1.msra.mxu0 0.0
    %1319 = vmatprep.subr.mxu0 0.0
    %1320 = vmatpush1.msra.mxu0 0.0
    %1321 = vmatprep.subr.mxu0 0.0
    %1322 = vmatpush1.msra.mxu0 0.0
    %1323 = vmatprep.subr.mxu0 0.0
    %1324 = vmatpush1.msra.mxu0 0.0
    %1325 = vmatprep.subr.mxu0 0.0
    %1326 = vmatpush1.msra.mxu0 0.0
    %1327 = vmatprep.subr.mxu0 0.0
    %1328 = vmatpush1.msra.mxu0 0.0
    %1329 = vmatprep.subr.mxu0 0.0
    %1330 = vmatpush1.msra.mxu0 0.0
    %1331 = vmatprep.subr.mxu0 0.0
    %1332 = vmatpush1.msra.mxu0 0.0
    %1333 = vmatprep.subr.mxu0 0.0
    %1334 = vmatpush1.msra.mxu0 0.0
    %1335 = vmatprep.subr.mxu0 0.0
    %1336 = vmatpush1.msra.mxu0 0.0
    %1337 = vmatprep.subr.mxu0 0.0
    %1338 = vmatpush1.msra.mxu0 0.0
    %1339 = vmatprep.subr.mxu0 0.0
    %1340 = vmatpush1.msra.mxu0 0.0
    %1341 = vmatprep.subr.mxu0 0.0
    %1342 = vmatpush1.msra.mxu0 0.0
    %1343 = vmatprep.subr.mxu0 0.0
    %1344 = vmatpush1.msra.mxu0 0.0
    %1345 = vmatprep.subr.mxu0 0.0
    %1346 = vmatpush1.msra.mxu0 0.0
    %1347 = vmatprep.subr.mxu0 0.0
    %1348 = vmatpush1.msra.mxu0 0.0
    %1349 = vmatprep.mubr.f32.mxu0 0.0
    %1350 = vmatmul.mubr.f32.gmra.mrb[0].mxu0 %v1280
    %v1351 = vpop.f32.mrb[0].mxu0
    %v1352 = vadd.f32 0.0, %v1351
    %v1353 = vpop.f32.mrb[0].mxu0
    %1354 = vmatprep.mubr.f32.mxu0 0.0
    %1355 = vmatmul.mubr.f32.gmra.mrb[0].mxu0 %v1283
    %v1356 = vpop.f32.mrb[0].mxu0
    %v1357 = vadd.f32 0.0, %v1356
    %v1358 = vpop.f32.mrb[0].mxu0
    %1359 = vdwg.mxu0
    %v1361 = vsel %vm389, %v1274, 0
    %v1364 = vsel %vm389, %v1275, 0
    %1366 = vmatprep.subr.mxu0 0.0
    %1367 = vmatpush1.msra.mxu0 %v1265
    %1368 = vmatprep.subr.mxu0 0.0
    %1369 = vmatpush1.msra.mxu0 %v1266
    %1370 = vmatprep.subr.mxu0 0.0
    %1371 = vmatpush1.msra.mxu0 0.0
    %1372 = vmatprep.subr.mxu0 0.0
    %1373 = vmatpush1.msra.mxu0 0.0
    %1374 = vmatprep.subr.mxu0 0.0
    %1375 = vmatpush1.msra.mxu0 0.0
    %1376 = vmatprep.subr.mxu0 0.0
    %1377 = vmatpush1.msra.mxu0 0.0
    %1378 = vmatprep.subr.mxu0 0.0
    %1379 = vmatpush1.msra.mxu0 0.0
    %1380 = vmatprep.subr.mxu0 0.0
    %1381 = vmatpush1.msra.mxu0 0.0
    %1382 = vmatprep.subr.mxu0 0.0
    %1383 = vmatpush1.msra.mxu0 0.0
    %1384 = vmatprep.subr.mxu0 0.0
    %1385 = vmatpush1.msra.mxu0 0.0
    %1386 = vmatprep.subr.mxu0 0.0
    %1387 = vmatpush1.msra.mxu0 0.0
    %1388 = vmatprep.subr.mxu0 0.0
    %1389 = vmatpush1.msra.mxu0 0.0
    %1390 = vmatprep.subr.mxu0 0.0
    %1391 = vmatpush1.msra.mxu0 0.0
    %1392 = vmatprep.subr.mxu0 0.0
    %1393 = vmatpush1.msra.mxu0 0.0
    %1394 = vmatprep.subr.mxu0 0.0
    %1395 = vmatpush1.msra.mxu0 0.0
    %1396 = vmatprep.subr.mxu0 0.0
    %1397 = vmatpush1.msra.mxu0 0.0
    %1398 = vmatprep.subr.mxu0 0.0
    %1399 = vmatpush1.msra.mxu0 0.0
    %1400 = vmatprep.subr.mxu0 0.0
    %1401 = vmatpush1.msra.mxu0 0.0
    %1402 = vmatprep.subr.mxu0 0.0
    %1403 = vmatpush1.msra.mxu0 0.0
    %1404 = vmatprep.subr.mxu0 0.0
    %1405 = vmatpush1.msra.mxu0 0.0
    %1406 = vmatprep.subr.mxu0 0.0
    %1407 = vmatpush1.msra.mxu0 0.0
    %1408 = vmatprep.subr.mxu0 0.0
    %1409 = vmatpush1.msra.mxu0 0.0
    %1410 = vmatprep.subr.mxu0 0.0
    %1411 = vmatpush1.msra.mxu0 0.0
    %1412 = vmatprep.subr.mxu0 0.0
    %1413 = vmatpush1.msra.mxu0 0.0
    %1414 = vmatprep.subr.mxu0 0.0
    %1415 = vmatpush1.msra.mxu0 0.0
    %1416 = vmatprep.subr.mxu0 0.0
    %1417 = vmatpush1.msra.mxu0 0.0
    %1418 = vmatprep.subr.mxu0 0.0
    %1419 = vmatpush1.msra.mxu0 0.0
    %1420 = vmatprep.subr.mxu0 0.0
    %1421 = vmatpush1.msra.mxu0 0.0
    %1422 = vmatprep.subr.mxu0 0.0
    %1423 = vmatpush1.msra.mxu0 0.0
    %1424 = vmatprep.subr.mxu0 0.0
    %1425 = vmatpush1.msra.mxu0 0.0
    %1426 = vmatprep.subr.mxu0 0.0
    %1427 = vmatpush1.msra.mxu0 0.0
    %1428 = vmatprep.subr.mxu0 0.0
    %1429 = vmatpush1.msra.mxu0 0.0
    %1430 = vmatprep.mubr.f32.mxu0 0.0
    %1431 = vmatmul.mubr.f32.gmra.mrb[0].mxu0 %v1361
    %v1432 = vpop.f32.mrb[0].mxu0
    %v1433 = vadd.f32 %v1352, %v1432
    %v1434 = vpop.f32.mrb[0].mxu0
    %1435 = vmatprep.mubr.f32.mxu0 0.0
    %1436 = vmatmul.mubr.f32.gmra.mrb[0].mxu0 %v1364
    %v1437 = vpop.f32.mrb[0].mxu0
    %v1438 = vadd.f32 %v1357, %v1437
    %v1439 = vpop.f32.mrb[0].mxu0
    %1440 = vdwg.mxu0
    %s1441 = scalar_lea.vmem %s6, 176
    %v1442 = vld [vmem:[%s1441] sm:$0xff]
    %v1443 = vld [vmem:[%s1441 + $0x8] sm:$0xff]
    %v1445 = vsel %vm389, %v1442, 0
    %v1448 = vsel %vm389, %v1443, 0
    %1450 = vmatprep.subr.mxu0 0.0
    %1451 = vmatpush1.msra.mxu0 %v1271
    %1452 = vmatprep.subr.mxu0 0.0
    %1453 = vmatpush1.msra.mxu0 %v1272
    %1454 = vmatprep.subr.mxu0 0.0
    %1455 = vmatpush1.msra.mxu0 0.0
    %1456 = vmatprep.subr.mxu0 0.0
    %1457 = vmatpush1.msra.mxu0 0.0
    %1458 = vmatprep.subr.mxu0 0.0
    %1459 = vmatpush1.msra.mxu0 0.0
    %1460 = vmatprep.subr.mxu0 0.0
    %1461 = vmatpush1.msra.mxu0 0.0
    %1462 = vmatprep.subr.mxu0 0.0
    %1463 = vmatpush1.msra.mxu0 0.0
    %1464 = vmatprep.subr.mxu0 0.0
    %1465 = vmatpush1.msra.mxu0 0.0
    %1466 = vmatprep.subr.mxu0 0.0
    %1467 = vmatpush1.msra.mxu0 0.0
    %1468 = vmatprep.subr.mxu0 0.0
    %1469 = vmatpush1.msra.mxu0 0.0
    %1470 = vmatprep.subr.mxu0 0.0
    %1471 = vmatpush1.msra.mxu0 0.0
    %1472 = vmatprep.subr.mxu0 0.0
    %1473 = vmatpush1.msra.mxu0 0.0
    %1474 = vmatprep.subr.mxu0 0.0
    %1475 = vmatpush1.msra.mxu0 0.0
    %1476 = vmatprep.subr.mxu0 0.0
    %1477 = vmatpush1.msra.mxu0 0.0
    %1478 = vmatprep.subr.mxu0 0.0
    %1479 = vmatpush1.msra.mxu0 0.0
    %1480 = vmatprep.subr.mxu0 0.0
    %1481 = vmatpush1.msra.mxu0 0.0
    %1482 = vmatprep.subr.mxu0 0.0
    %1483 = vmatpush1.msra.mxu0 0.0
    %1484 = vmatprep.subr.mxu0 0.0
    %1485 = vmatpush1.msra.mxu0 0.0
    %1486 = vmatprep.subr.mxu0 0.0
    %1487 = vmatpush1.msra.mxu0 0.0
    %1488 = vmatprep.subr.mxu0 0.0
    %1489 = vmatpush1.msra.mxu0 0.0
    %1490 = vmatprep.subr.mxu0 0.0
    %1491 = vmatpush1.msra.mxu0 0.0
    %1492 = vmatprep.subr.mxu0 0.0
    %1493 = vmatpush1.msra.mxu0 0.0
    %1494 = vmatprep.subr.mxu0 0.0
    %1495 = vmatpush1.msra.mxu0 0.0
    %1496 = vmatprep.subr.mxu0 0.0
    %1497 = vmatpush1.msra.mxu0 0.0
    %1498 = vmatprep.subr.mxu0 0.0
    %1499 = vmatpush1.msra.mxu0 0.0
    %1500 = vmatprep.subr.mxu0 0.0
    %1501 = vmatpush1.msra.mxu0 0.0
    %1502 = vmatprep.subr.mxu0 0.0
    %1503 = vmatpush1.msra.mxu0 0.0
    %1504 = vmatprep.subr.mxu0 0.0
    %1505 = vmatpush1.msra.mxu0 0.0
    %1506 = vmatprep.subr.mxu0 0.0
    %1507 = vmatpush1.msra.mxu0 0.0
    %1508 = vmatprep.subr.mxu0 0.0
    %1509 = vmatpush1.msra.mxu0 0.0
    %1510 = vmatprep.subr.mxu0 0.0
    %1511 = vmatpush1.msra.mxu0 0.0
    %1512 = vmatprep.subr.mxu0 0.0
    %1513 = vmatpush1.msra.mxu0 0.0
    %1514 = vmatprep.mubr.f32.mxu0 0.0
    %1515 = vmatmul.mubr.f32.gmra.mrb[0].mxu0 %v1445
    %v1516 = vpop.f32.mrb[0].mxu0
    %v1517 = vadd.f32 0.0, %v1516
    %v1518 = vpop.f32.mrb[0].mxu0
    %1519 = vmatprep.mubr.f32.mxu0 0.0
    %1520 = vmatmul.mubr.f32.gmra.mrb[0].mxu0 %v1448
    %v1521 = vpop.f32.mrb[0].mxu0
    %v1522 = vadd.f32 0.0, %v1521
    %v1523 = vpop.f32.mrb[0].mxu0
    %1524 = vdwg.mxu0
    %v1525 = vadd.f32 %v1433, %v1517
    %v1526 = vadd.f32 %v1438, %v1522
    %v1527 = vmul.f32 %v1525, %v1229
    %v1528 = vmul.f32 %v1526, %v1234
    %s1529 = scalar_lea.vmem %s8, 48
    %v1530 = vld [vmem:[%s1529] sm:$0xff]
    %v1531 = vld [vmem:[%s1529 + $0x8] sm:$0xff]
    %1533 = vset.pattern.permute.xlu0 0
    %1534 = vperm.xlu0 %1533, %v1530
    %v1535 = vpop.permute.xlu0 %1534
    %1538 = vset.pattern.permute.xlu0 0
    %1539 = vperm.xlu0 %1538, %v1531
    %v1540 = vpop.permute.xlu0 %1539
    %v1542 = vadd.f32 %v1527, %v1535
    %v1543 = vadd.f32 %v1528, %v1540
    %v1544 = vadd.f32 %v1542, %v955
    %v1545 = vadd.f32 %v1543, %v956
    %s1546 = scalar_lea.vmem %s7, 32
    %v1547 = vld [vmem:[%s1546] sm:$0xff]
    %v1548 = vld [vmem:[%s1546 + $0x8] sm:$0xff]
    %1549 = vrot.lane.b32.xlu0 %v1544, 1
    %v1550 = vpop.permute.xlu0 %1549
    %1551 = vrot.lane.b32.xlu0 %v1545, 1
    %v1552 = vpop.permute.xlu0 %1551
    %v1553 = vmul.f32 %v1550, %v371
    %v1554 = vmul.f32 %v1552, %v371
    %1555 = vrot.lane.b32.xlu0 %v1544, 127
    %v1556 = vpop.permute.xlu0 %1555
    %1557 = vrot.lane.b32.xlu0 %v1545, 127
    %v1558 = vpop.permute.xlu0 %1557
    %v1559 = vmul.f32 %v1556, %v381
    %v1560 = vmul.f32 %v1558, %v381
    %s1561 = scalar_lea.vmem %s6, 192
    %v1562 = vld [vmem:[%s1561] sm:$0xff]
    %v1563 = vld [vmem:[%s1561 + $0x8] sm:$0xff]
    %s1564 = scalar_lea.vmem %s6, 208
    %v1565 = vld [vmem:[%s1564] sm:$0xff]
    %v1566 = vld [vmem:[%s1564 + $0x8] sm:$0xff]
    %v1568 = vsel %vm389, %v1565, 0
    %v1571 = vsel %vm389, %v1566, 0
    %1573 = vmatprep.subr.mxu0 0.0
    %1574 = vmatpush1.msra.mxu0 %v1544
    %1575 = vmatprep.subr.mxu0 0.0
    %1576 = vmatpush1.msra.mxu0 %v1545
    %1577 = vmatprep.subr.mxu0 0.0
    %1578 = vmatpush1.msra.mxu0 0.0
    %1579 = vmatprep.subr.mxu0 0.0
    %1580 = vmatpush1.msra.mxu0 0.0
    %1581 = vmatprep.subr.mxu0 0.0
    %1582 = vmatpush1.msra.mxu0 0.0
    %1583 = vmatprep.subr.mxu0 0.0
    %1584 = vmatpush1.msra.mxu0 0.0
    %1585 = vmatprep.subr.mxu0 0.0
    %1586 = vmatpush1.msra.mxu0 0.0
    %1587 = vmatprep.subr.mxu0 0.0
    %1588 = vmatpush1.msra.mxu0 0.0
    %1589 = vmatprep.subr.mxu0 0.0
    %1590 = vmatpush1.msra.mxu0 0.0
    %1591 = vmatprep.subr.mxu0 0.0
    %1592 = vmatpush1.msra.mxu0 0.0
    %1593 = vmatprep.subr.mxu0 0.0
    %1594 = vmatpush1.msra.mxu0 0.0
    %1595 = vmatprep.subr.mxu0 0.0
    %1596 = vmatpush1.msra.mxu0 0.0
    %1597 = vmatprep.subr.mxu0 0.0
    %1598 = vmatpush1.msra.mxu0 0.0
    %1599 = vmatprep.subr.mxu0 0.0
    %1600 = vmatpush1.msra.mxu0 0.0
    %1601 = vmatprep.subr.mxu0 0.0
    %1602 = vmatpush1.msra.mxu0 0.0
    %1603 = vmatprep.subr.mxu0 0.0
    %1604 = vmatpush1.msra.mxu0 0.0
    %1605 = vmatprep.subr.mxu0 0.0
    %1606 = vmatpush1.msra.mxu0 0.0
    %1607 = vmatprep.subr.mxu0 0.0
    %1608 = vmatpush1.msra.mxu0 0.0
    %1609 = vmatprep.subr.mxu0 0.0
    %1610 = vmatpush1.msra.mxu0 0.0
    %1611 = vmatprep.subr.mxu0 0.0
    %1612 = vmatpush1.msra.mxu0 0.0
    %1613 = vmatprep.subr.mxu0 0.0
    %1614 = vmatpush1.msra.mxu0 0.0
    %1615 = vmatprep.subr.mxu0 0.0
    %1616 = vmatpush1.msra.mxu0 0.0
    %1617 = vmatprep.subr.mxu0 0.0
    %1618 = vmatpush1.msra.mxu0 0.0
    %1619 = vmatprep.subr.mxu0 0.0
    %1620 = vmatpush1.msra.mxu0 0.0
    %1621 = vmatprep.subr.mxu0 0.0
    %1622 = vmatpush1.msra.mxu0 0.0
    %1623 = vmatprep.subr.mxu0 0.0
    %1624 = vmatpush1.msra.mxu0 0.0
    %1625 = vmatprep.subr.mxu0 0.0
    %1626 = vmatpush1.msra.mxu0 0.0
    %1627 = vmatprep.subr.mxu0 0.0
    %1628 = vmatpush1.msra.mxu0 0.0
    %1629 = vmatprep.subr.mxu0 0.0
    %1630 = vmatpush1.msra.mxu0 0.0
    %1631 = vmatprep.subr.mxu0 0.0
    %1632 = vmatpush1.msra.mxu0 0.0
    %1633 = vmatprep.subr.mxu0 0.0
    %1634 = vmatpush1.msra.mxu0 0.0
    %1635 = vmatprep.subr.mxu0 0.0
    %1636 = vmatpush1.msra.mxu0 0.0
    %1637 = vmatprep.mubr.f32.mxu0 0.0
    %1638 = vmatmul.mubr.f32.gmra.mrb[0].mxu0 %v1568
    %v1639 = vpop.f32.mrb[0].mxu0
    %v1640 = vadd.f32 0.0, %v1639
    %v1641 = vpop.f32.mrb[0].mxu0
    %1642 = vmatprep.mubr.f32.mxu0 0.0
    %1643 = vmatmul.mubr.f32.gmra.mrb[0].mxu0 %v1571
    %v1644 = vpop.f32.mrb[0].mxu0
    %v1645 = vadd.f32 0.0, %v1644
    %v1646 = vpop.f32.mrb[0].mxu0
    %1647 = vdwg.mxu0
    %v1649 = vsel %vm389, %v1562, 0
    %v1652 = vsel %vm389, %v1563, 0
    %1654 = vmatprep.subr.mxu0 0.0
    %1655 = vmatpush1.msra.mxu0 %v1553
    %1656 = vmatprep.subr.mxu0 0.0
    %1657 = vmatpush1.msra.mxu0 %v1554
    %1658 = vmatprep.subr.mxu0 0.0
    %1659 = vmatpush1.msra.mxu0 0.0
    %1660 = vmatprep.subr.mxu0 0.0
    %1661 = vmatpush1.msra.mxu0 0.0
    %1662 = vmatprep.subr.mxu0 0.0
    %1663 = vmatpush1.msra.mxu0 0.0
    %1664 = vmatprep.subr.mxu0 0.0
    %1665 = vmatpush1.msra.mxu0 0.0
    %1666 = vmatprep.subr.mxu0 0.0
    %1667 = vmatpush1.msra.mxu0 0.0
    %1668 = vmatprep.subr.mxu0 0.0
    %1669 = vmatpush1.msra.mxu0 0.0
    %1670 = vmatprep.subr.mxu0 0.0
    %1671 = vmatpush1.msra.mxu0 0.0
    %1672 = vmatprep.subr.mxu0 0.0
    %1673 = vmatpush1.msra.mxu0 0.0
    %1674 = vmatprep.subr.mxu0 0.0
    %1675 = vmatpush1.msra.mxu0 0.0
    %1676 = vmatprep.subr.mxu0 0.0
    %1677 = vmatpush1.msra.mxu0 0.0
    %1678 = vmatprep.subr.mxu0 0.0
    %1679 = vmatpush1.msra.mxu0 0.0
    %1680 = vmatprep.subr.mxu0 0.0
    %1681 = vmatpush1.msra.mxu0 0.0
    %1682 = vmatprep.subr.mxu0 0.0
    %1683 = vmatpush1.msra.mxu0 0.0
    %1684 = vmatprep.subr.mxu0 0.0
    %1685 = vmatpush1.msra.mxu0 0.0
    %1686 = vmatprep.subr.mxu0 0.0
    %1687 = vmatpush1.msra.mxu0 0.0
    %1688 = vmatprep.subr.mxu0 0.0
    %1689 = vmatpush1.msra.mxu0 0.0
    %1690 = vmatprep.subr.mxu0 0.0
    %1691 = vmatpush1.msra.mxu0 0.0
    %1692 = vmatprep.subr.mxu0 0.0
    %1693 = vmatpush1.msra.mxu0 0.0
    %1694 = vmatprep.subr.mxu0 0.0
    %1695 = vmatpush1.msra.mxu0 0.0
    %1696 = vmatprep.subr.mxu0 0.0
    %1697 = vmatpush1.msra.mxu0 0.0
    %1698 = vmatprep.subr.mxu0 0.0
    %1699 = vmatpush1.msra.mxu0 0.0
    %1700 = vmatprep.subr.mxu0 0.0
    %1701 = vmatpush1.msra.mxu0 0.0
    %1702 = vmatprep.subr.mxu0 0.0
    %1703 = vmatpush1.msra.mxu0 0.0
    %1704 = vmatprep.subr.mxu0 0.0
    %1705 = vmatpush1.msra.mxu0 0.0
    %1706 = vmatprep.subr.mxu0 0.0
    %1707 = vmatpush1.msra.mxu0 0.0
    %1708 = vmatprep.subr.mxu0 0.0
    %1709 = vmatpush1.msra.mxu0 0.0
    %1710 = vmatprep.subr.mxu0 0.0
    %1711 = vmatpush1.msra.mxu0 0.0
    %1712 = vmatprep.subr.mxu0 0.0
    %1713 = vmatpush1.msra.mxu0 0.0
    %1714 = vmatprep.subr.mxu0 0.0
    %1715 = vmatpush1.msra.mxu0 0.0
    %1716 = vmatprep.subr.mxu0 0.0
    %1717 = vmatpush1.msra.mxu0 0.0
    %1718 = vmatprep.mubr.f32.mxu0 0.0
    %1719 = vmatmul.mubr.f32.gmra.mrb[0].mxu0 %v1649
    %v1720 = vpop.f32.mrb[0].mxu0
    %v1721 = vadd.f32 %v1640, %v1720
    %v1722 = vpop.f32.mrb[0].mxu0
    %1723 = vmatprep.mubr.f32.mxu0 0.0
    %1724 = vmatmul.mubr.f32.gmra.mrb[0].mxu0 %v1652
    %v1725 = vpop.f32.mrb[0].mxu0
    %v1726 = vadd.f32 %v1645, %v1725
    %v1727 = vpop.f32.mrb[0].mxu0
    %1728 = vdwg.mxu0
    %s1729 = scalar_lea.vmem %s6, 224
    %v1730 = vld [vmem:[%s1729] sm:$0xff]
    %v1731 = vld [vmem:[%s1729 + $0x8] sm:$0xff]
    %v1733 = vsel %vm389, %v1730, 0
    %v1736 = vsel %vm389, %v1731, 0
    %1738 = vmatprep.subr.mxu0 0.0
    %1739 = vmatpush1.msra.mxu0 %v1559
    %1740 = vmatprep.subr.mxu0 0.0
    %1741 = vmatpush1.msra.mxu0 %v1560
    %1742 = vmatprep.subr.mxu0 0.0
    %1743 = vmatpush1.msra.mxu0 0.0
    %1744 = vmatprep.subr.mxu0 0.0
    %1745 = vmatpush1.msra.mxu0 0.0
    %1746 = vmatprep.subr.mxu0 0.0
    %1747 = vmatpush1.msra.mxu0 0.0
    %1748 = vmatprep.subr.mxu0 0.0
    %1749 = vmatpush1.msra.mxu0 0.0
    %1750 = vmatprep.subr.mxu0 0.0
    %1751 = vmatpush1.msra.mxu0 0.0
    %1752 = vmatprep.subr.mxu0 0.0
    %1753 = vmatpush1.msra.mxu0 0.0
    %1754 = vmatprep.subr.mxu0 0.0
    %1755 = vmatpush1.msra.mxu0 0.0
    %1756 = vmatprep.subr.mxu0 0.0
    %1757 = vmatpush1.msra.mxu0 0.0
    %1758 = vmatprep.subr.mxu0 0.0
    %1759 = vmatpush1.msra.mxu0 0.0
    %1760 = vmatprep.subr.mxu0 0.0
    %1761 = vmatpush1.msra.mxu0 0.0
    %1762 = vmatprep.subr.mxu0 0.0
    %1763 = vmatpush1.msra.mxu0 0.0
    %1764 = vmatprep.subr.mxu0 0.0
    %1765 = vmatpush1.msra.mxu0 0.0
    %1766 = vmatprep.subr.mxu0 0.0
    %1767 = vmatpush1.msra.mxu0 0.0
    %1768 = vmatprep.subr.mxu0 0.0
    %1769 = vmatpush1.msra.mxu0 0.0
    %1770 = vmatprep.subr.mxu0 0.0
    %1771 = vmatpush1.msra.mxu0 0.0
    %1772 = vmatprep.subr.mxu0 0.0
    %1773 = vmatpush1.msra.mxu0 0.0
    %1774 = vmatprep.subr.mxu0 0.0
    %1775 = vmatpush1.msra.mxu0 0.0
    %1776 = vmatprep.subr.mxu0 0.0
    %1777 = vmatpush1.msra.mxu0 0.0
    %1778 = vmatprep.subr.mxu0 0.0
    %1779 = vmatpush1.msra.mxu0 0.0
    %1780 = vmatprep.subr.mxu0 0.0
    %1781 = vmatpush1.msra.mxu0 0.0
    %1782 = vmatprep.subr.mxu0 0.0
    %1783 = vmatpush1.msra.mxu0 0.0
    %1784 = vmatprep.subr.mxu0 0.0
    %1785 = vmatpush1.msra.mxu0 0.0
    %1786 = vmatprep.subr.mxu0 0.0
    %1787 = vmatpush1.msra.mxu0 0.0
    %1788 = vmatprep.subr.mxu0 0.0
    %1789 = vmatpush1.msra.mxu0 0.0
    %1790 = vmatprep.subr.mxu0 0.0
    %1791 = vmatpush1.msra.mxu0 0.0
    %1792 = vmatprep.subr.mxu0 0.0
    %1793 = vmatpush1.msra.mxu0 0.0
    %1794 = vmatprep.subr.mxu0 0.0
    %1795 = vmatpush1.msra.mxu0 0.0
    %1796 = vmatprep.subr.mxu0 0.0
    %1797 = vmatpush1.msra.mxu0 0.0
    %1798 = vmatprep.subr.mxu0 0.0
    %1799 = vmatpush1.msra.mxu0 0.0
    %1800 = vmatprep.subr.mxu0 0.0
    %1801 = vmatpush1.msra.mxu0 0.0
    %1802 = vmatprep.mubr.f32.mxu0 0.0
    %1803 = vmatmul.mubr.f32.gmra.mrb[0].mxu0 %v1733
    %v1804 = vpop.f32.mrb[0].mxu0
    %v1805 = vadd.f32 0.0, %v1804
    %v1806 = vpop.f32.mrb[0].mxu0
    %1807 = vmatprep.mubr.f32.mxu0 0.0
    %1808 = vmatmul.mubr.f32.gmra.mrb[0].mxu0 %v1736
    %v1809 = vpop.f32.mrb[0].mxu0
    %v1810 = vadd.f32 0.0, %v1809
    %v1811 = vpop.f32.mrb[0].mxu0
    %1812 = vdwg.mxu0
    %v1813 = vadd.f32 %v1721, %v1805
    %v1814 = vadd.f32 %v1726, %v1810
    %1816 = vset.pattern.permute.xlu0 0
    %1817 = vperm.xlu0 %1816, %v1547
    %v1818 = vpop.permute.xlu0 %1817
    %1821 = vset.pattern.permute.xlu0 0
    %1822 = vperm.xlu0 %1821, %v1548
    %v1823 = vpop.permute.xlu0 %1822
    %v1825 = vmul.f32 %v1813, %v1818
    %v1826 = vmul.f32 %v1814, %v1823
    %s1827 = scalar_lea.vmem %s8, 64
    %v1828 = vld [vmem:[%s1827] sm:$0xff]
    %v1829 = vld [vmem:[%s1827 + $0x8] sm:$0xff]
    %1831 = vset.pattern.permute.xlu0 0
    %1832 = vperm.xlu0 %1831, %v1828
    %v1833 = vpop.permute.xlu0 %1832
    %1836 = vset.pattern.permute.xlu0 0
    %1837 = vperm.xlu0 %1836, %v1829
    %v1838 = vpop.permute.xlu0 %1837
    %v1840 = vadd.f32 %v1825, %v1833
    %v1841 = vadd.f32 %v1826, %v1838
    %s1842 = sld [smem:[#allocation2 + $0x4]]
    %vm1843 = vcmp.ge.f32.partialorder %v1840, 0.0
    %vm1844 = vcmp.ge.f32.partialorder %v1841, 0.0
    %v1845 = vstv %s1842
    %v1846 = vmul.f32 %v1845, %v1840
    %v1847 = vmul.f32 %v1845, %v1841
    %v1848 = vsel %vm1843, %v1840, %v1846
    %v1849 = vsel %vm1844, %v1841, %v1847
    %1850 = vrot.lane.b32.xlu0 %v1848, 1
    %v1851 = vpop.permute.xlu0 %1850
    %1852 = vrot.lane.b32.xlu0 %v1849, 1
    %v1853 = vpop.permute.xlu0 %1852
    %v1854 = vmul.f32 %v1851, %v371
    %v1855 = vmul.f32 %v1853, %v371
    %1856 = vrot.lane.b32.xlu0 %v1848, 127
    %v1857 = vpop.permute.xlu0 %1856
    %1858 = vrot.lane.b32.xlu0 %v1849, 127
    %v1859 = vpop.permute.xlu0 %1858
    %v1860 = vmul.f32 %v1857, %v381
    %v1861 = vmul.f32 %v1859, %v381
    %s1862 = scalar_lea.vmem %s6, 240
    %v1863 = vld [vmem:[%s1862] sm:$0xff]
    %v1864 = vld [vmem:[%s1862 + $0x8] sm:$0xff]
    %s1865 = scalar_lea.vmem %s6, 256
    %v1866 = vld [vmem:[%s1865] sm:$0xff]
    %v1867 = vld [vmem:[%s1865 + $0x8] sm:$0xff]
    %v1869 = vsel %vm389, %v1866, 0
    %v1872 = vsel %vm389, %v1867, 0
    %1874 = vmatprep.subr.mxu0 0.0
    %1875 = vmatpush1.msra.mxu0 %v1848
    %1876 = vmatprep.subr.mxu0 0.0
    %1877 = vmatpush1.msra.mxu0 %v1849
    %1878 = vmatprep.subr.mxu0 0.0
    %1879 = vmatpush1.msra.mxu0 0.0
    %1880 = vmatprep.subr.mxu0 0.0
    %1881 = vmatpush1.msra.mxu0 0.0
    %1882 = vmatprep.subr.mxu0 0.0
    %1883 = vmatpush1.msra.mxu0 0.0
    %1884 = vmatprep.subr.mxu0 0.0
    %1885 = vmatpush1.msra.mxu0 0.0
    %1886 = vmatprep.subr.mxu0 0.0
    %1887 = vmatpush1.msra.mxu0 0.0
    %1888 = vmatprep.subr.mxu0 0.0
    %1889 = vmatpush1.msra.mxu0 0.0
    %1890 = vmatprep.subr.mxu0 0.0
    %1891 = vmatpush1.msra.mxu0 0.0
    %1892 = vmatprep.subr.mxu0 0.0
    %1893 = vmatpush1.msra.mxu0 0.0
    %1894 = vmatprep.subr.mxu0 0.0
    %1895 = vmatpush1.msra.mxu0 0.0
    %1896 = vmatprep.subr.mxu0 0.0
    %1897 = vmatpush1.msra.mxu0 0.0
    %1898 = vmatprep.subr.mxu0 0.0
    %1899 = vmatpush1.msra.mxu0 0.0
    %1900 = vmatprep.subr.mxu0 0.0
    %1901 = vmatpush1.msra.mxu0 0.0
    %1902 = vmatprep.subr.mxu0 0.0
    %1903 = vmatpush1.msra.mxu0 0.0
    %1904 = vmatprep.subr.mxu0 0.0
    %1905 = vmatpush1.msra.mxu0 0.0
    %1906 = vmatprep.subr.mxu0 0.0
    %1907 = vmatpush1.msra.mxu0 0.0
    %1908 = vmatprep.subr.mxu0 0.0
    %1909 = vmatpush1.msra.mxu0 0.0
    %1910 = vmatprep.subr.mxu0 0.0
    %1911 = vmatpush1.msra.mxu0 0.0
    %1912 = vmatprep.subr.mxu0 0.0
    %1913 = vmatpush1.msra.mxu0 0.0
    %1914 = vmatprep.subr.mxu0 0.0
    %1915 = vmatpush1.msra.mxu0 0.0
    %1916 = vmatprep.subr.mxu0 0.0
    %1917 = vmatpush1.msra.mxu0 0.0
    %1918 = vmatprep.subr.mxu0 0.0
    %1919 = vmatpush1.msra.mxu0 0.0
    %1920 = vmatprep.subr.mxu0 0.0
    %1921 = vmatpush1.msra.mxu0 0.0
    %1922 = vmatprep.subr.mxu0 0.0
    %1923 = vmatpush1.msra.mxu0 0.0
    %1924 = vmatprep.subr.mxu0 0.0
    %1925 = vmatpush1.msra.mxu0 0.0
    %1926 = vmatprep.subr.mxu0 0.0
    %1927 = vmatpush1.msra.mxu0 0.0
    %1928 = vmatprep.subr.mxu0 0.0
    %1929 = vmatpush1.msra.mxu0 0.0
    %1930 = vmatprep.subr.mxu0 0.0
    %1931 = vmatpush1.msra.mxu0 0.0
    %1932 = vmatprep.subr.mxu0 0.0
    %1933 = vmatpush1.msra.mxu0 0.0
    %1934 = vmatprep.subr.mxu0 0.0
    %1935 = vmatpush1.msra.mxu0 0.0
    %1936 = vmatprep.subr.mxu0 0.0
    %1937 = vmatpush1.msra.mxu0 0.0
    %1938 = vmatprep.mubr.f32.mxu0 0.0
    %1939 = vmatmul.mubr.f32.gmra.mrb[0].mxu0 %v1869
    %v1940 = vpop.f32.mrb[0].mxu0
    %v1941 = vadd.f32 0.0, %v1940
    %v1942 = vpop.f32.mrb[0].mxu0
    %1943 = vmatprep.mubr.f32.mxu0 0.0
    %1944 = vmatmul.mubr.f32.gmra.mrb[0].mxu0 %v1872
    %v1945 = vpop.f32.mrb[0].mxu0
    %v1946 = vadd.f32 0.0, %v1945
    %v1947 = vpop.f32.mrb[0].mxu0
    %1948 = vdwg.mxu0
    %v1950 = vsel %vm389, %v1863, 0
    %v1953 = vsel %vm389, %v1864, 0
    %1955 = vmatprep.subr.mxu0 0.0
    %1956 = vmatpush1.msra.mxu0 %v1854
    %1957 = vmatprep.subr.mxu0 0.0
    %1958 = vmatpush1.msra.mxu0 %v1855
    %1959 = vmatprep.subr.mxu0 0.0
    %1960 = vmatpush1.msra.mxu0 0.0
    %1961 = vmatprep.subr.mxu0 0.0
    %1962 = vmatpush1.msra.mxu0 0.0
    %1963 = vmatprep.subr.mxu0 0.0
    %1964 = vmatpush1.msra.mxu0 0.0
    %1965 = vmatprep.subr.mxu0 0.0
    %1966 = vmatpush1.msra.mxu0 0.0
    %1967 = vmatprep.subr.mxu0 0.0
    %1968 = vmatpush1.msra.mxu0 0.0
    %1969 = vmatprep.subr.mxu0 0.0
    %1970 = vmatpush1.msra.mxu0 0.0
    %1971 = vmatprep.subr.mxu0 0.0
    %1972 = vmatpush1.msra.mxu0 0.0
    %1973 = vmatprep.subr.mxu0 0.0
    %1974 = vmatpush1.msra.mxu0 0.0
    %1975 = vmatprep.subr.mxu0 0.0
    %1976 = vmatpush1.msra.mxu0 0.0
    %1977 = vmatprep.subr.mxu0 0.0
    %1978 = vmatpush1.msra.mxu0 0.0
    %1979 = vmatprep.subr.mxu0 0.0
    %1980 = vmatpush1.msra.mxu0 0.0
    %1981 = vmatprep.subr.mxu0 0.0
    %1982 = vmatpush1.msra.mxu0 0.0
    %1983 = vmatprep.subr.mxu0 0.0
    %1984 = vmatpush1.msra.mxu0 0.0
    %1985 = vmatprep.subr.mxu0 0.0
    %1986 = vmatpush1.msra.mxu0 0.0
    %1987 = vmatprep.subr.mxu0 0.0
    %1988 = vmatpush1.msra.mxu0 0.0
    %1989 = vmatprep.subr.mxu0 0.0
    %1990 = vmatpush1.msra.mxu0 0.0
    %1991 = vmatprep.subr.mxu0 0.0
    %1992 = vmatpush1.msra.mxu0 0.0
    %1993 = vmatprep.subr.mxu0 0.0
    %1994 = vmatpush1.msra.mxu0 0.0
    %1995 = vmatprep.subr.mxu0 0.0
    %1996 = vmatpush1.msra.mxu0 0.0
    %1997 = vmatprep.subr.mxu0 0.0
    %1998 = vmatpush1.msra.mxu0 0.0
    %1999 = vmatprep.subr.mxu0 0.0
    %2000 = vmatpush1.msra.mxu0 0.0
    %2001 = vmatprep.subr.mxu0 0.0
    %2002 = vmatpush1.msra.mxu0 0.0
    %2003 = vmatprep.subr.mxu0 0.0
    %2004 = vmatpush1.msra.mxu0 0.0
    %2005 = vmatprep.subr.mxu0 0.0
    %2006 = vmatpush1.msra.mxu0 0.0
    %2007 = vmatprep.subr.mxu0 0.0
    %2008 = vmatpush1.msra.mxu0 0.0
    %2009 = vmatprep.subr.mxu0 0.0
    %2010 = vmatpush1.msra.mxu0 0.0
    %2011 = vmatprep.subr.mxu0 0.0
    %2012 = vmatpush1.msra.mxu0 0.0
    %2013 = vmatprep.subr.mxu0 0.0
    %2014 = vmatpush1.msra.mxu0 0.0
    %2015 = vmatprep.subr.mxu0 0.0
    %2016 = vmatpush1.msra.mxu0 0.0
    %2017 = vmatprep.subr.mxu0 0.0
    %2018 = vmatpush1.msra.mxu0 0.0
    %2019 = vmatprep.mubr.f32.mxu0 0.0
    %2020 = vmatmul.mubr.f32.gmra.mrb[0].mxu0 %v1950
    %v2021 = vpop.f32.mrb[0].mxu0
    %v2022 = vadd.f32 %v1941, %v2021
    %v2023 = vpop.f32.mrb[0].mxu0
    %2024 = vmatprep.mubr.f32.mxu0 0.0
    %2025 = vmatmul.mubr.f32.gmra.mrb[0].mxu0 %v1953
    %v2026 = vpop.f32.mrb[0].mxu0
    %v2027 = vadd.f32 %v1946, %v2026
    %v2028 = vpop.f32.mrb[0].mxu0
    %2029 = vdwg.mxu0
    %s2030 = scalar_lea.vmem %s6, 272
    %v2031 = vld [vmem:[%s2030] sm:$0xff]
    %v2032 = vld [vmem:[%s2030 + $0x8] sm:$0xff]
    %v2034 = vsel %vm389, %v2031, 0
    %v2037 = vsel %vm389, %v2032, 0
    %2039 = vmatprep.subr.mxu0 0.0
    %2040 = vmatpush1.msra.mxu0 %v1860
    %2041 = vmatprep.subr.mxu0 0.0
    %2042 = vmatpush1.msra.mxu0 %v1861
    %2043 = vmatprep.subr.mxu0 0.0
    %2044 = vmatpush1.msra.mxu0 0.0
    %2045 = vmatprep.subr.mxu0 0.0
    %2046 = vmatpush1.msra.mxu0 0.0
    %2047 = vmatprep.subr.mxu0 0.0
    %2048 = vmatpush1.msra.mxu0 0.0
    %2049 = vmatprep.subr.mxu0 0.0
    %2050 = vmatpush1.msra.mxu0 0.0
    %2051 = vmatprep.subr.mxu0 0.0
    %2052 = vmatpush1.msra.mxu0 0.0
    %2053 = vmatprep.subr.mxu0 0.0
    %2054 = vmatpush1.msra.mxu0 0.0
    %2055 = vmatprep.subr.mxu0 0.0
    %2056 = vmatpush1.msra.mxu0 0.0
    %2057 = vmatprep.subr.mxu0 0.0
    %2058 = vmatpush1.msra.mxu0 0.0
    %2059 = vmatprep.subr.mxu0 0.0
    %2060 = vmatpush1.msra.mxu0 0.0
    %2061 = vmatprep.subr.mxu0 0.0
    %2062 = vmatpush1.msra.mxu0 0.0
    %2063 = vmatprep.subr.mxu0 0.0
    %2064 = vmatpush1.msra.mxu0 0.0
    %2065 = vmatprep.subr.mxu0 0.0
    %2066 = vmatpush1.msra.mxu0 0.0
    %2067 = vmatprep.subr.mxu0 0.0
    %2068 = vmatpush1.msra.mxu0 0.0
    %2069 = vmatprep.subr.mxu0 0.0
    %2070 = vmatpush1.msra.mxu0 0.0
    %2071 = vmatprep.subr.mxu0 0.0
    %2072 = vmatpush1.msra.mxu0 0.0
    %2073 = vmatprep.subr.mxu0 0.0
    %2074 = vmatpush1.msra.mxu0 0.0
    %2075 = vmatprep.subr.mxu0 0.0
    %2076 = vmatpush1.msra.mxu0 0.0
    %2077 = vmatprep.subr.mxu0 0.0
    %2078 = vmatpush1.msra.mxu0 0.0
    %2079 = vmatprep.subr.mxu0 0.0
    %2080 = vmatpush1.msra.mxu0 0.0
    %2081 = vmatprep.subr.mxu0 0.0
    %2082 = vmatpush1.msra.mxu0 0.0
    %2083 = vmatprep.subr.mxu0 0.0
    %2084 = vmatpush1.msra.mxu0 0.0
    %2085 = vmatprep.subr.mxu0 0.0
    %2086 = vmatpush1.msra.mxu0 0.0
    %2087 = vmatprep.subr.mxu0 0.0
    %2088 = vmatpush1.msra.mxu0 0.0
    %2089 = vmatprep.subr.mxu0 0.0
    %2090 = vmatpush1.msra.mxu0 0.0
    %2091 = vmatprep.subr.mxu0 0.0
    %2092 = vmatpush1.msra.mxu0 0.0
    %2093 = vmatprep.subr.mxu0 0.0
    %2094 = vmatpush1.msra.mxu0 0.0
    %2095 = vmatprep.subr.mxu0 0.0
    %2096 = vmatpush1.msra.mxu0 0.0
    %2097 = vmatprep.subr.mxu0 0.0
    %2098 = vmatpush1.msra.mxu0 0.0
    %2099 = vmatprep.subr.mxu0 0.0
    %2100 = vmatpush1.msra.mxu0 0.0
    %2101 = vmatprep.subr.mxu0 0.0
    %2102 = vmatpush1.msra.mxu0 0.0
    %2103 = vmatprep.mubr.f32.mxu0 0.0
    %2104 = vmatmul.mubr.f32.gmra.mrb[0].mxu0 %v2034
    %v2105 = vpop.f32.mrb[0].mxu0
    %v2106 = vadd.f32 0.0, %v2105
    %v2107 = vpop.f32.mrb[0].mxu0
    %2108 = vmatprep.mubr.f32.mxu0 0.0
    %2109 = vmatmul.mubr.f32.gmra.mrb[0].mxu0 %v2037
    %v2110 = vpop.f32.mrb[0].mxu0
    %v2111 = vadd.f32 0.0, %v2110
    %v2112 = vpop.f32.mrb[0].mxu0
    %2113 = vdwg.mxu0
    %v2114 = vadd.f32 %v2022, %v2106
    %v2115 = vadd.f32 %v2027, %v2111
    %v2116 = vmul.f32 %v2114, %v1818
    %v2117 = vmul.f32 %v2115, %v1823
    %s2118 = scalar_lea.vmem %s8, 80
    %v2119 = vld [vmem:[%s2118] sm:$0xff]
    %v2120 = vld [vmem:[%s2118 + $0x8] sm:$0xff]
    %2122 = vset.pattern.permute.xlu0 0
    %2123 = vperm.xlu0 %2122, %v2119
    %v2124 = vpop.permute.xlu0 %2123
    %2127 = vset.pattern.permute.xlu0 0
    %2128 = vperm.xlu0 %2127, %v2120
    %v2129 = vpop.permute.xlu0 %2128
    %v2131 = vadd.f32 %v2116, %v2124
    %v2132 = vadd.f32 %v2117, %v2129
    %v2133 = vadd.f32 %v2131, %v1544
    %v2134 = vadd.f32 %v2132, %v1545
    %s2135 = scalar_lea.vmem %s7, 48
    %v2136 = vld [vmem:[%s2135] sm:$0xff]
    %v2137 = vld [vmem:[%s2135 + $0x8] sm:$0xff]
    %2138 = vrot.lane.b32.xlu0 %v2133, 1
    %v2139 = vpop.permute.xlu0 %2138
    %2140 = vrot.lane.b32.xlu0 %v2134, 1
    %v2141 = vpop.permute.xlu0 %2140
    %v2142 = vmul.f32 %v2139, %v371
    %v2143 = vmul.f32 %v2141, %v371
    %2144 = vrot.lane.b32.xlu0 %v2133, 127
    %v2145 = vpop.permute.xlu0 %2144
    %2146 = vrot.lane.b32.xlu0 %v2134, 127
    %v2147 = vpop.permute.xlu0 %2146
    %v2148 = vmul.f32 %v2145, %v381
    %v2149 = vmul.f32 %v2147, %v381
    %s2150 = scalar_lea.vmem %s6, 288
    %v2151 = vld [vmem:[%s2150] sm:$0xff]
    %v2152 = vld [vmem:[%s2150 + $0x8] sm:$0xff]
    %s2153 = scalar_lea.vmem %s6, 304
    %v2154 = vld [vmem:[%s2153] sm:$0xff]
    %v2155 = vld [vmem:[%s2153 + $0x8] sm:$0xff]
    %v2157 = vsel %vm389, %v2154, 0
    %v2160 = vsel %vm389, %v2155, 0
    %2162 = vmatprep.subr.mxu0 0.0
    %2163 = vmatpush1.msra.mxu0 %v2133
    %2164 = vmatprep.subr.mxu0 0.0
    %2165 = vmatpush1.msra.mxu0 %v2134
    %2166 = vmatprep.subr.mxu0 0.0
    %2167 = vmatpush1.msra.mxu0 0.0
    %2168 = vmatprep.subr.mxu0 0.0
    %2169 = vmatpush1.msra.mxu0 0.0
    %2170 = vmatprep.subr.mxu0 0.0
    %2171 = vmatpush1.msra.mxu0 0.0
    %2172 = vmatprep.subr.mxu0 0.0
    %2173 = vmatpush1.msra.mxu0 0.0
    %2174 = vmatprep.subr.mxu0 0.0
    %2175 = vmatpush1.msra.mxu0 0.0
    %2176 = vmatprep.subr.mxu0 0.0
    %2177 = vmatpush1.msra.mxu0 0.0
    %2178 = vmatprep.subr.mxu0 0.0
    %2179 = vmatpush1.msra.mxu0 0.0
    %2180 = vmatprep.subr.mxu0 0.0
    %2181 = vmatpush1.msra.mxu0 0.0
    %2182 = vmatprep.subr.mxu0 0.0
    %2183 = vmatpush1.msra.mxu0 0.0
    %2184 = vmatprep.subr.mxu0 0.0
    %2185 = vmatpush1.msra.mxu0 0.0
    %2186 = vmatprep.subr.mxu0 0.0
    %2187 = vmatpush1.msra.mxu0 0.0
    %2188 = vmatprep.subr.mxu0 0.0
    %2189 = vmatpush1.msra.mxu0 0.0
    %2190 = vmatprep.subr.mxu0 0.0
    %2191 = vmatpush1.msra.mxu0 0.0
    %2192 = vmatprep.subr.mxu0 0.0
    %2193 = vmatpush1.msra.mxu0 0.0
    %2194 = vmatprep.subr.mxu0 0.0
    %2195 = vmatpush1.msra.mxu0 0.0
    %2196 = vmatprep.subr.mxu0 0.0
    %2197 = vmatpush1.msra.mxu0 0.0
    %2198 = vmatprep.subr.mxu0 0.0
    %2199 = vmatpush1.msra.mxu0 0.0
    %2200 = vmatprep.subr.mxu0 0.0
    %2201 = vmatpush1.msra.mxu0 0.0
    %2202 = vmatprep.subr.mxu0 0.0
    %2203 = vmatpush1.msra.mxu0 0.0
    %2204 = vmatprep.subr.mxu0 0.0
    %2205 = vmatpush1.msra.mxu0 0.0
    %2206 = vmatprep.subr.mxu0 0.0
    %2207 = vmatpush1.msra.mxu0 0.0
    %2208 = vmatprep.subr.mxu0 0.0
    %2209 = vmatpush1.msra.mxu0 0.0
    %2210 = vmatprep.subr.mxu0 0.0
    %2211 = vmatpush1.msra.mxu0 0.0
    %2212 = vmatprep.subr.mxu0 0.0
    %2213 = vmatpush1.msra.mxu0 0.0
    %2214 = vmatprep.subr.mxu0 0.0
    %2215 = vmatpush1.msra.mxu0 0.0
    %2216 = vmatprep.subr.mxu0 0.0
    %2217 = vmatpush1.msra.mxu0 0.0
    %2218 = vmatprep.subr.mxu0 0.0
    %2219 = vmatpush1.msra.mxu0 0.0
    %2220 = vmatprep.subr.mxu0 0.0
    %2221 = vmatpush1.msra.mxu0 0.0
    %2222 = vmatprep.subr.mxu0 0.0
    %2223 = vmatpush1.msra.mxu0 0.0
    %2224 = vmatprep.subr.mxu0 0.0
    %2225 = vmatpush1.msra.mxu0 0.0
    %2226 = vmatprep.mubr.f32.mxu0 0.0
    %2227 = vmatmul.mubr.f32.gmra.mrb[0].mxu0 %v2157
    %v2228 = vpop.f32.mrb[0].mxu0
    %v2229 = vadd.f32 0.0, %v2228
    %v2230 = vpop.f32.mrb[0].mxu0
    %2231 = vmatprep.mubr.f32.mxu0 0.0
    %2232 = vmatmul.mubr.f32.gmra.mrb[0].mxu0 %v2160
    %v2233 = vpop.f32.mrb[0].mxu0
    %v2234 = vadd.f32 0.0, %v2233
    %v2235 = vpop.f32.mrb[0].mxu0
    %2236 = vdwg.mxu0
    %v2238 = vsel %vm389, %v2151, 0
    %v2241 = vsel %vm389, %v2152, 0
    %2243 = vmatprep.subr.mxu0 0.0
    %2244 = vmatpush1.msra.mxu0 %v2142
    %2245 = vmatprep.subr.mxu0 0.0
    %2246 = vmatpush1.msra.mxu0 %v2143
    %2247 = vmatprep.subr.mxu0 0.0
    %2248 = vmatpush1.msra.mxu0 0.0
    %2249 = vmatprep.subr.mxu0 0.0
    %2250 = vmatpush1.msra.mxu0 0.0
    %2251 = vmatprep.subr.mxu0 0.0
    %2252 = vmatpush1.msra.mxu0 0.0
    %2253 = vmatprep.subr.mxu0 0.0
    %2254 = vmatpush1.msra.mxu0 0.0
    %2255 = vmatprep.subr.mxu0 0.0
    %2256 = vmatpush1.msra.mxu0 0.0
    %2257 = vmatprep.subr.mxu0 0.0
    %2258 = vmatpush1.msra.mxu0 0.0
    %2259 = vmatprep.subr.mxu0 0.0
    %2260 = vmatpush1.msra.mxu0 0.0
    %2261 = vmatprep.subr.mxu0 0.0
    %2262 = vmatpush1.msra.mxu0 0.0
    %2263 = vmatprep.subr.mxu0 0.0
    %2264 = vmatpush1.msra.mxu0 0.0
    %2265 = vmatprep.subr.mxu0 0.0
    %2266 = vmatpush1.msra.mxu0 0.0
    %2267 = vmatprep.subr.mxu0 0.0
    %2268 = vmatpush1.msra.mxu0 0.0
    %2269 = vmatprep.subr.mxu0 0.0
    %2270 = vmatpush1.msra.mxu0 0.0
    %2271 = vmatprep.subr.mxu0 0.0
    %2272 = vmatpush1.msra.mxu0 0.0
    %2273 = vmatprep.subr.mxu0 0.0
    %2274 = vmatpush1.msra.mxu0 0.0
    %2275 = vmatprep.subr.mxu0 0.0
    %2276 = vmatpush1.msra.mxu0 0.0
    %2277 = vmatprep.subr.mxu0 0.0
    %2278 = vmatpush1.msra.mxu0 0.0
    %2279 = vmatprep.subr.mxu0 0.0
    %2280 = vmatpush1.msra.mxu0 0.0
    %2281 = vmatprep.subr.mxu0 0.0
    %2282 = vmatpush1.msra.mxu0 0.0
    %2283 = vmatprep.subr.mxu0 0.0
    %2284 = vmatpush1.msra.mxu0 0.0
    %2285 = vmatprep.subr.mxu0 0.0
    %2286 = vmatpush1.msra.mxu0 0.0
    %2287 = vmatprep.subr.mxu0 0.0
    %2288 = vmatpush1.msra.mxu0 0.0
    %2289 = vmatprep.subr.mxu0 0.0
    %2290 = vmatpush1.msra.mxu0 0.0
    %2291 = vmatprep.subr.mxu0 0.0
    %2292 = vmatpush1.msra.mxu0 0.0
    %2293 = vmatprep.subr.mxu0 0.0
    %2294 = vmatpush1.msra.mxu0 0.0
    %2295 = vmatprep.subr.mxu0 0.0
    %2296 = vmatpush1.msra.mxu0 0.0
    %2297 = vmatprep.subr.mxu0 0.0
    %2298 = vmatpush1.msra.mxu0 0.0
    %2299 = vmatprep.subr.mxu0 0.0
    %2300 = vmatpush1.msra.mxu0 0.0
    %2301 = vmatprep.subr.mxu0 0.0
    %2302 = vmatpush1.msra.mxu0 0.0
    %2303 = vmatprep.subr.mxu0 0.0
    %2304 = vmatpush1.msra.mxu0 0.0
    %2305 = vmatprep.subr.mxu0 0.0
    %2306 = vmatpush1.msra.mxu0 0.0
    %2307 = vmatprep.mubr.f32.mxu0 0.0
    %2308 = vmatmul.mubr.f32.gmra.mrb[0].mxu0 %v2238
    %v2309 = vpop.f32.mrb[0].mxu0
    %v2310 = vadd.f32 %v2229, %v2309
    %v2311 = vpop.f32.mrb[0].mxu0
    %2312 = vmatprep.mubr.f32.mxu0 0.0
    %2313 = vmatmul.mubr.f32.gmra.mrb[0].mxu0 %v2241
    %v2314 = vpop.f32.mrb[0].mxu0
    %v2315 = vadd.f32 %v2234, %v2314
    %v2316 = vpop.f32.mrb[0].mxu0
    %2317 = vdwg.mxu0
    %s2318 = scalar_lea.vmem %s6, 320
    %v2319 = vld [vmem:[%s2318] sm:$0xff]
    %v2320 = vld [vmem:[%s2318 + $0x8] sm:$0xff]
    %v2322 = vsel %vm389, %v2319, 0
    %v2325 = vsel %vm389, %v2320, 0
    %2327 = vmatprep.subr.mxu0 0.0
    %2328 = vmatpush1.msra.mxu0 %v2148
    %2329 = vmatprep.subr.mxu0 0.0
    %2330 = vmatpush1.msra.mxu0 %v2149
    %2331 = vmatprep.subr.mxu0 0.0
    %2332 = vmatpush1.msra.mxu0 0.0
    %2333 = vmatprep.subr.mxu0 0.0
    %2334 = vmatpush1.msra.mxu0 0.0
    %2335 = vmatprep.subr.mxu0 0.0
    %2336 = vmatpush1.msra.mxu0 0.0
    %2337 = vmatprep.subr.mxu0 0.0
    %2338 = vmatpush1.msra.mxu0 0.0
    %2339 = vmatprep.subr.mxu0 0.0
    %2340 = vmatpush1.msra.mxu0 0.0
    %2341 = vmatprep.subr.mxu0 0.0
    %2342 = vmatpush1.msra.mxu0 0.0
    %2343 = vmatprep.subr.mxu0 0.0
    %2344 = vmatpush1.msra.mxu0 0.0
    %2345 = vmatprep.subr.mxu0 0.0
    %2346 = vmatpush1.msra.mxu0 0.0
    %2347 = vmatprep.subr.mxu0 0.0
    %2348 = vmatpush1.msra.mxu0 0.0
    %2349 = vmatprep.subr.mxu0 0.0
    %2350 = vmatpush1.msra.mxu0 0.0
    %2351 = vmatprep.subr.mxu0 0.0
    %2352 = vmatpush1.msra.mxu0 0.0
    %2353 = vmatprep.subr.mxu0 0.0
    %2354 = vmatpush1.msra.mxu0 0.0
    %2355 = vmatprep.subr.mxu0 0.0
    %2356 = vmatpush1.msra.mxu0 0.0
    %2357 = vmatprep.subr.mxu0 0.0
    %2358 = vmatpush1.msra.mxu0 0.0
    %2359 = vmatprep.subr.mxu0 0.0
    %2360 = vmatpush1.msra.mxu0 0.0
    %2361 = vmatprep.subr.mxu0 0.0
    %2362 = vmatpush1.msra.mxu0 0.0
    %2363 = vmatprep.subr.mxu0 0.0
    %2364 = vmatpush1.msra.mxu0 0.0
    %2365 = vmatprep.subr.mxu0 0.0
    %2366 = vmatpush1.msra.mxu0 0.0
    %2367 = vmatprep.subr.mxu0 0.0
    %2368 = vmatpush1.msra.mxu0 0.0
    %2369 = vmatprep.subr.mxu0 0.0
    %2370 = vmatpush1.msra.mxu0 0.0
    %2371 = vmatprep.subr.mxu0 0.0
    %2372 = vmatpush1.msra.mxu0 0.0
    %2373 = vmatprep.subr.mxu0 0.0
    %2374 = vmatpush1.msra.mxu0 0.0
    %2375 = vmatprep.subr.mxu0 0.0
    %2376 = vmatpush1.msra.mxu0 0.0
    %2377 = vmatprep.subr.mxu0 0.0
    %2378 = vmatpush1.msra.mxu0 0.0
    %2379 = vmatprep.subr.mxu0 0.0
    %2380 = vmatpush1.msra.mxu0 0.0
    %2381 = vmatprep.subr.mxu0 0.0
    %2382 = vmatpush1.msra.mxu0 0.0
    %2383 = vmatprep.subr.mxu0 0.0
    %2384 = vmatpush1.msra.mxu0 0.0
    %2385 = vmatprep.subr.mxu0 0.0
    %2386 = vmatpush1.msra.mxu0 0.0
    %2387 = vmatprep.subr.mxu0 0.0
    %2388 = vmatpush1.msra.mxu0 0.0
    %2389 = vmatprep.subr.mxu0 0.0
    %2390 = vmatpush1.msra.mxu0 0.0
    %2391 = vmatprep.mubr.f32.mxu0 0.0
    %2392 = vmatmul.mubr.f32.gmra.mrb[0].mxu0 %v2322
    %v2393 = vpop.f32.mrb[0].mxu0
    %v2394 = vadd.f32 0.0, %v2393
    %v2395 = vpop.f32.mrb[0].mxu0
    %2396 = vmatprep.mubr.f32.mxu0 0.0
    %2397 = vmatmul.mubr.f32.gmra.mrb[0].mxu0 %v2325
    %v2398 = vpop.f32.mrb[0].mxu0
    %v2399 = vadd.f32 0.0, %v2398
    %v2400 = vpop.f32.mrb[0].mxu0
    %2401 = vdwg.mxu0
    %v2402 = vadd.f32 %v2310, %v2394
    %v2403 = vadd.f32 %v2315, %v2399
    %2405 = vset.pattern.permute.xlu0 0
    %2406 = vperm.xlu0 %2405, %v2136
    %v2407 = vpop.permute.xlu0 %2406
    %2410 = vset.pattern.permute.xlu0 0
    %2411 = vperm.xlu0 %2410, %v2137
    %v2412 = vpop.permute.xlu0 %2411
    %v2414 = vmul.f32 %v2402, %v2407
    %v2415 = vmul.f32 %v2403, %v2412
    %s2416 = scalar_lea.vmem %s8, 96
    %v2417 = vld [vmem:[%s2416] sm:$0xff]
    %v2418 = vld [vmem:[%s2416 + $0x8] sm:$0xff]
    %2420 = vset.pattern.permute.xlu0 0
    %2421 = vperm.xlu0 %2420, %v2417
    %v2422 = vpop.permute.xlu0 %2421
    %2425 = vset.pattern.permute.xlu0 0
    %2426 = vperm.xlu0 %2425, %v2418
    %v2427 = vpop.permute.xlu0 %2426
    %v2429 = vadd.f32 %v2414, %v2422
    %v2430 = vadd.f32 %v2415, %v2427
    %s2431 = sld [smem:[#allocation2 + $0x5]]
    %vm2432 = vcmp.ge.f32.partialorder %v2429, 0.0
    %vm2433 = vcmp.ge.f32.partialorder %v2430, 0.0
    %v2434 = vstv %s2431
    %v2435 = vmul.f32 %v2434, %v2429
    %v2436 = vmul.f32 %v2434, %v2430
    %v2437 = vsel %vm2432, %v2429, %v2435
    %v2438 = vsel %vm2433, %v2430, %v2436
    %2439 = vrot.lane.b32.xlu0 %v2437, 1
    %v2440 = vpop.permute.xlu0 %2439
    %2441 = vrot.lane.b32.xlu0 %v2438, 1
    %v2442 = vpop.permute.xlu0 %2441
    %v2443 = vmul.f32 %v2440, %v371
    %v2444 = vmul.f32 %v2442, %v371
    %2445 = vrot.lane.b32.xlu0 %v2437, 127
    %v2446 = vpop.permute.xlu0 %2445
    %2447 = vrot.lane.b32.xlu0 %v2438, 127
    %v2448 = vpop.permute.xlu0 %2447
    %v2449 = vmul.f32 %v2446, %v381
    %v2450 = vmul.f32 %v2448, %v381
    %s2451 = scalar_lea.vmem %s6, 336
    %v2452 = vld [vmem:[%s2451] sm:$0xff]
    %v2453 = vld [vmem:[%s2451 + $0x8] sm:$0xff]
    %s2454 = scalar_lea.vmem %s6, 352
    %v2455 = vld [vmem:[%s2454] sm:$0xff]
    %v2456 = vld [vmem:[%s2454 + $0x8] sm:$0xff]
    %v2458 = vsel %vm389, %v2455, 0
    %v2461 = vsel %vm389, %v2456, 0
    %2463 = vmatprep.subr.mxu0 0.0
    %2464 = vmatpush1.msra.mxu0 %v2437
    %2465 = vmatprep.subr.mxu0 0.0
    %2466 = vmatpush1.msra.mxu0 %v2438
    %2467 = vmatprep.subr.mxu0 0.0
    %2468 = vmatpush1.msra.mxu0 0.0
    %2469 = vmatprep.subr.mxu0 0.0
    %2470 = vmatpush1.msra.mxu0 0.0
    %2471 = vmatprep.subr.mxu0 0.0
    %2472 = vmatpush1.msra.mxu0 0.0
    %2473 = vmatprep.subr.mxu0 0.0
    %2474 = vmatpush1.msra.mxu0 0.0
    %2475 = vmatprep.subr.mxu0 0.0
    %2476 = vmatpush1.msra.mxu0 0.0
    %2477 = vmatprep.subr.mxu0 0.0
    %2478 = vmatpush1.msra.mxu0 0.0
    %2479 = vmatprep.subr.mxu0 0.0
    %2480 = vmatpush1.msra.mxu0 0.0
    %2481 = vmatprep.subr.mxu0 0.0
    %2482 = vmatpush1.msra.mxu0 0.0
    %2483 = vmatprep.subr.mxu0 0.0
    %2484 = vmatpush1.msra.mxu0 0.0
    %2485 = vmatprep.subr.mxu0 0.0
    %2486 = vmatpush1.msra.mxu0 0.0
    %2487 = vmatprep.subr.mxu0 0.0
    %2488 = vmatpush1.msra.mxu0 0.0
    %2489 = vmatprep.subr.mxu0 0.0
    %2490 = vmatpush1.msra.mxu0 0.0
    %2491 = vmatprep.subr.mxu0 0.0
    %2492 = vmatpush1.msra.mxu0 0.0
    %2493 = vmatprep.subr.mxu0 0.0
    %2494 = vmatpush1.msra.mxu0 0.0
    %2495 = vmatprep.subr.mxu0 0.0
    %2496 = vmatpush1.msra.mxu0 0.0
    %2497 = vmatprep.subr.mxu0 0.0
    %2498 = vmatpush1.msra.mxu0 0.0
    %2499 = vmatprep.subr.mxu0 0.0
    %2500 = vmatpush1.msra.mxu0 0.0
    %2501 = vmatprep.subr.mxu0 0.0
    %2502 = vmatpush1.msra.mxu0 0.0
    %2503 = vmatprep.subr.mxu0 0.0
    %2504 = vmatpush1.msra.mxu0 0.0
    %2505 = vmatprep.subr.mxu0 0.0
    %2506 = vmatpush1.msra.mxu0 0.0
    %2507 = vmatprep.subr.mxu0 0.0
    %2508 = vmatpush1.msra.mxu0 0.0
    %2509 = vmatprep.subr.mxu0 0.0
    %2510 = vmatpush1.msra.mxu0 0.0
    %2511 = vmatprep.subr.mxu0 0.0
    %2512 = vmatpush1.msra.mxu0 0.0
    %2513 = vmatprep.subr.mxu0 0.0
    %2514 = vmatpush1.msra.mxu0 0.0
    %2515 = vmatprep.subr.mxu0 0.0
    %2516 = vmatpush1.msra.mxu0 0.0
    %2517 = vmatprep.subr.mxu0 0.0
    %2518 = vmatpush1.msra.mxu0 0.0
    %2519 = vmatprep.subr.mxu0 0.0
    %2520 = vmatpush1.msra.mxu0 0.0
    %2521 = vmatprep.subr.mxu0 0.0
    %2522 = vmatpush1.msra.mxu0 0.0
    %2523 = vmatprep.subr.mxu0 0.0
    %2524 = vmatpush1.msra.mxu0 0.0
    %2525 = vmatprep.subr.mxu0 0.0
    %2526 = vmatpush1.msra.mxu0 0.0
    %2527 = vmatprep.mubr.f32.mxu0 0.0
    %2528 = vmatmul.mubr.f32.gmra.mrb[0].mxu0 %v2458
    %v2529 = vpop.f32.mrb[0].mxu0
    %v2530 = vadd.f32 0.0, %v2529
    %v2531 = vpop.f32.mrb[0].mxu0
    %2532 = vmatprep.mubr.f32.mxu0 0.0
    %2533 = vmatmul.mubr.f32.gmra.mrb[0].mxu0 %v2461
    %v2534 = vpop.f32.mrb[0].mxu0
    %v2535 = vadd.f32 0.0, %v2534
    %v2536 = vpop.f32.mrb[0].mxu0
    %2537 = vdwg.mxu0
    %v2539 = vsel %vm389, %v2452, 0
    %v2542 = vsel %vm389, %v2453, 0
    %2544 = vmatprep.subr.mxu0 0.0
    %2545 = vmatpush1.msra.mxu0 %v2443
    %2546 = vmatprep.subr.mxu0 0.0
    %2547 = vmatpush1.msra.mxu0 %v2444
    %2548 = vmatprep.subr.mxu0 0.0
    %2549 = vmatpush1.msra.mxu0 0.0
    %2550 = vmatprep.subr.mxu0 0.0
    %2551 = vmatpush1.msra.mxu0 0.0
    %2552 = vmatprep.subr.mxu0 0.0
    %2553 = vmatpush1.msra.mxu0 0.0
    %2554 = vmatprep.subr.mxu0 0.0
    %2555 = vmatpush1.msra.mxu0 0.0
    %2556 = vmatprep.subr.mxu0 0.0
    %2557 = vmatpush1.msra.mxu0 0.0
    %2558 = vmatprep.subr.mxu0 0.0
    %2559 = vmatpush1.msra.mxu0 0.0
    %2560 = vmatprep.subr.mxu0 0.0
    %2561 = vmatpush1.msra.mxu0 0.0
    %2562 = vmatprep.subr.mxu0 0.0
    %2563 = vmatpush1.msra.mxu0 0.0
    %2564 = vmatprep.subr.mxu0 0.0
    %2565 = vmatpush1.msra.mxu0 0.0
    %2566 = vmatprep.subr.mxu0 0.0
    %2567 = vmatpush1.msra.mxu0 0.0
    %2568 = vmatprep.subr.mxu0 0.0
    %2569 = vmatpush1.msra.mxu0 0.0
    %2570 = vmatprep.subr.mxu0 0.0
    %2571 = vmatpush1.msra.mxu0 0.0
    %2572 = vmatprep.subr.mxu0 0.0
    %2573 = vmatpush1.msra.mxu0 0.0
    %2574 = vmatprep.subr.mxu0 0.0
    %2575 = vmatpush1.msra.mxu0 0.0
    %2576 = vmatprep.subr.mxu0 0.0
    %2577 = vmatpush1.msra.mxu0 0.0
    %2578 = vmatprep.subr.mxu0 0.0
    %2579 = vmatpush1.msra.mxu0 0.0
    %2580 = vmatprep.subr.mxu0 0.0
    %2581 = vmatpush1.msra.mxu0 0.0
    %2582 = vmatprep.subr.mxu0 0.0
    %2583 = vmatpush1.msra.mxu0 0.0
    %2584 = vmatprep.subr.mxu0 0.0
    %2585 = vmatpush1.msra.mxu0 0.0
    %2586 = vmatprep.subr.mxu0 0.0
    %2587 = vmatpush1.msra.mxu0 0.0
    %2588 = vmatprep.subr.mxu0 0.0
    %2589 = vmatpush1.msra.mxu0 0.0
    %2590 = vmatprep.subr.mxu0 0.0
    %2591 = vmatpush1.msra.mxu0 0.0
    %2592 = vmatprep.subr.mxu0 0.0
    %2593 = vmatpush1.msra.mxu0 0.0
    %2594 = vmatprep.subr.mxu0 0.0
    %2595 = vmatpush1.msra.mxu0 0.0
    %2596 = vmatprep.subr.mxu0 0.0
    %2597 = vmatpush1.msra.mxu0 0.0
    %2598 = vmatprep.subr.mxu0 0.0
    %2599 = vmatpush1.msra.mxu0 0.0
    %2600 = vmatprep.subr.mxu0 0.0
    %2601 = vmatpush1.msra.mxu0 0.0
    %2602 = vmatprep.subr.mxu0 0.0
    %2603 = vmatpush1.msra.mxu0 0.0
    %2604 = vmatprep.subr.mxu0 0.0
    %2605 = vmatpush1.msra.mxu0 0.0
    %2606 = vmatprep.subr.mxu0 0.0
    %2607 = vmatpush1.msra.mxu0 0.0
    %2608 = vmatprep.mubr.f32.mxu0 0.0
    %2609 = vmatmul.mubr.f32.gmra.mrb[0].mxu0 %v2539
    %v2610 = vpop.f32.mrb[0].mxu0
    %v2611 = vadd.f32 %v2530, %v2610
    %v2612 = vpop.f32.mrb[0].mxu0
    %2613 = vmatprep.mubr.f32.mxu0 0.0
    %2614 = vmatmul.mubr.f32.gmra.mrb[0].mxu0 %v2542
    %v2615 = vpop.f32.mrb[0].mxu0
    %v2616 = vadd.f32 %v2535, %v2615
    %v2617 = vpop.f32.mrb[0].mxu0
    %2618 = vdwg.mxu0
    %s2619 = scalar_lea.vmem %s6, 368
    %v2620 = vld [vmem:[%s2619] sm:$0xff]
    %v2621 = vld [vmem:[%s2619 + $0x8] sm:$0xff]
    %v2623 = vsel %vm389, %v2620, 0
    %v2626 = vsel %vm389, %v2621, 0
    %2628 = vmatprep.subr.mxu0 0.0
    %2629 = vmatpush1.msra.mxu0 %v2449
    %2630 = vmatprep.subr.mxu0 0.0
    %2631 = vmatpush1.msra.mxu0 %v2450
    %2632 = vmatprep.subr.mxu0 0.0
    %2633 = vmatpush1.msra.mxu0 0.0
    %2634 = vmatprep.subr.mxu0 0.0
    %2635 = vmatpush1.msra.mxu0 0.0
    %2636 = vmatprep.subr.mxu0 0.0
    %2637 = vmatpush1.msra.mxu0 0.0
    %2638 = vmatprep.subr.mxu0 0.0
    %2639 = vmatpush1.msra.mxu0 0.0
    %2640 = vmatprep.subr.mxu0 0.0
    %2641 = vmatpush1.msra.mxu0 0.0
    %2642 = vmatprep.subr.mxu0 0.0
    %2643 = vmatpush1.msra.mxu0 0.0
    %2644 = vmatprep.subr.mxu0 0.0
    %2645 = vmatpush1.msra.mxu0 0.0
    %2646 = vmatprep.subr.mxu0 0.0
    %2647 = vmatpush1.msra.mxu0 0.0
    %2648 = vmatprep.subr.mxu0 0.0
    %2649 = vmatpush1.msra.mxu0 0.0
    %2650 = vmatprep.subr.mxu0 0.0
    %2651 = vmatpush1.msra.mxu0 0.0
    %2652 = vmatprep.subr.mxu0 0.0
    %2653 = vmatpush1.msra.mxu0 0.0
    %2654 = vmatprep.subr.mxu0 0.0
    %2655 = vmatpush1.msra.mxu0 0.0
    %2656 = vmatprep.subr.mxu0 0.0
    %2657 = vmatpush1.msra.mxu0 0.0
    %2658 = vmatprep.subr.mxu0 0.0
    %2659 = vmatpush1.msra.mxu0 0.0
    %2660 = vmatprep.subr.mxu0 0.0
    %2661 = vmatpush1.msra.mxu0 0.0
    %2662 = vmatprep.subr.mxu0 0.0
    %2663 = vmatpush1.msra.mxu0 0.0
    %2664 = vmatprep.subr.mxu0 0.0
    %2665 = vmatpush1.msra.mxu0 0.0
    %2666 = vmatprep.subr.mxu0 0.0
    %2667 = vmatpush1.msra.mxu0 0.0
    %2668 = vmatprep.subr.mxu0 0.0
    %2669 = vmatpush1.msra.mxu0 0.0
    %2670 = vmatprep.subr.mxu0 0.0
    %2671 = vmatpush1.msra.mxu0 0.0
    %2672 = vmatprep.subr.mxu0 0.0
    %2673 = vmatpush1.msra.mxu0 0.0
    %2674 = vmatprep.subr.mxu0 0.0
    %2675 = vmatpush1.msra.mxu0 0.0
    %2676 = vmatprep.subr.mxu0 0.0
    %2677 = vmatpush1.msra.mxu0 0.0
    %2678 = vmatprep.subr.mxu0 0.0
    %2679 = vmatpush1.msra.mxu0 0.0
    %2680 = vmatprep.subr.mxu0 0.0
    %2681 = vmatpush1.msra.mxu0 0.0
    %2682 = vmatprep.subr.mxu0 0.0
    %2683 = vmatpush1.msra.mxu0 0.0
    %2684 = vmatprep.subr.mxu0 0.0
    %2685 = vmatpush1.msra.mxu0 0.0
    %2686 = vmatprep.subr.mxu0 0.0
    %2687 = vmatpush1.msra.mxu0 0.0
    %2688 = vmatprep.subr.mxu0 0.0
    %2689 = vmatpush1.msra.mxu0 0.0
    %2690 = vmatprep.subr.mxu0 0.0
    %2691 = vmatpush1.msra.mxu0 0.0
    %2692 = vmatprep.mubr.f32.mxu0 0.0
    %2693 = vmatmul.mubr.f32.gmra.mrb[0].mxu0 %v2623
    %v2694 = vpop.f32.mrb[0].mxu0
    %v2695 = vadd.f32 0.0, %v2694
    %v2696 = vpop.f32.mrb[0].mxu0
    %2697 = vmatprep.mubr.f32.mxu0 0.0
    %2698 = vmatmul.mubr.f32.gmra.mrb[0].mxu0 %v2626
    %v2699 = vpop.f32.mrb[0].mxu0
    %v2700 = vadd.f32 0.0, %v2699
    %v2701 = vpop.f32.mrb[0].mxu0
    %2702 = vdwg.mxu0
    %v2703 = vadd.f32 %v2611, %v2695
    %v2704 = vadd.f32 %v2616, %v2700
    %v2705 = vmul.f32 %v2703, %v2407
    %v2706 = vmul.f32 %v2704, %v2412
    %s2707 = scalar_lea.vmem %s8, 112
    %v2708 = vld [vmem:[%s2707] sm:$0xff]
    %v2709 = vld [vmem:[%s2707 + $0x8] sm:$0xff]
    %2711 = vset.pattern.permute.xlu0 0
    %2712 = vperm.xlu0 %2711, %v2708
    %v2713 = vpop.permute.xlu0 %2712
    %2716 = vset.pattern.permute.xlu0 0
    %2717 = vperm.xlu0 %2716, %v2709
    %v2718 = vpop.permute.xlu0 %2717
    %v2720 = vadd.f32 %v2705, %v2713
    %v2721 = vadd.f32 %v2706, %v2718
    %v2722 = vadd.f32 %v2720, %v2133
    %v2723 = vadd.f32 %v2721, %v2134
    %s2724 = sld [smem:[#allocation2 + $0x6]]
    %vm2725 = vcmp.ge.f32.partialorder %v2722, 0.0
    %vm2726 = vcmp.ge.f32.partialorder %v2723, 0.0
    %v2727 = vstv %s2724
    %v2728 = vmul.f32 %v2727, %v2722
    %v2729 = vmul.f32 %v2727, %v2723
    %v2730 = vsel %vm2725, %v2722, %v2728
    %v2731 = vsel %vm2726, %v2723, %v2729
    %v2732 = vld [vmem:[%s9] sm:$0xff]
    %v2733 = vld [vmem:[%s9 + $0x8] sm:$0xff]
    %v2734 = vld [vmem:[%s9 + $0x10] sm:$0xff]
    %v2735 = vld [vmem:[%s9 + $0x18] sm:$0xff]
    %v2736 = vld [vmem:[%s9 + $0x20] sm:$0xff]
    %v2737 = vld [vmem:[%s9 + $0x28] sm:$0xff]
    %v2738 = vld [vmem:[%s9 + $0x30] sm:$0xff]
    %v2739 = vld [vmem:[%s10] sm:$0xff]
    %v2740 = vld [vmem:[%s10 + $0x8] sm:$0xff]
    %v2741 = vld [vmem:[%s10 + $0x10] sm:$0xff]
    %v2742 = vld [vmem:[%s10 + $0x18] sm:$0xff]
    %v2743 = vld [vmem:[%s10 + $0x20] sm:$0xff]
    %v2744 = vld [vmem:[%s10 + $0x28] sm:$0xff]
    %v2745 = vld [vmem:[%s10 + $0x30] sm:$0xff]
    %2747 = vset.pattern.permute.xlu0 0
    %2748 = vperm.xlu0 %2747, %v2739
    %v2749 = vpop.permute.xlu0 %2748
    %2752 = vset.pattern.permute.xlu0 0
    %2753 = vperm.xlu0 %2752, %v2740
    %v2754 = vpop.permute.xlu0 %2753
    %2757 = vset.pattern.permute.xlu0 0
    %2758 = vperm.xlu0 %2757, %v2741
    %v2759 = vpop.permute.xlu0 %2758
    %2762 = vset.pattern.permute.xlu0 0
    %2763 = vperm.xlu0 %2762, %v2742
    %v2764 = vpop.permute.xlu0 %2763
    %2767 = vset.pattern.permute.xlu0 0
    %2768 = vperm.xlu0 %2767, %v2743
    %v2769 = vpop.permute.xlu0 %2768
    %2772 = vset.pattern.permute.xlu0 0
    %2773 = vperm.xlu0 %2772, %v2744
    %v2774 = vpop.permute.xlu0 %2773
    %2777 = vset.pattern.permute.xlu0 0
    %2778 = vperm.xlu0 %2777, %v2745
    %v2779 = vpop.permute.xlu0 %2778
    %v2782 = vsel %vm389, %v2732, 0
    %v2785 = vsel %vm389, %v2733, 0
    %v2788 = vsel %vm389, %v2734, 0
    %v2791 = vsel %vm389, %v2735, 0
    %v2794 = vsel %vm389, %v2736, 0
    %v2797 = vsel %vm389, %v2737, 0
    %v2800 = vsel %vm389, %v2738, 0
    %2802 = vmatprep.subr.mxu0 0.0
    %2803 = vmatpush1.msra.mxu0 %v2730
    %2804 = vmatprep.subr.mxu0 0.0
    %2805 = vmatpush1.msra.mxu0 %v2731
    %2806 = vmatprep.subr.mxu0 0.0
    %2807 = vmatpush1.msra.mxu0 0.0
    %2808 = vmatprep.subr.mxu0 0.0
    %2809 = vmatpush1.msra.mxu0 0.0
    %2810 = vmatprep.subr.mxu0 0.0
    %2811 = vmatpush1.msra.mxu0 0.0
    %2812 = vmatprep.subr.mxu0 0.0
    %2813 = vmatpush1.msra.mxu0 0.0
    %2814 = vmatprep.subr.mxu0 0.0
    %2815 = vmatpush1.msra.mxu0 0.0
    %2816 = vmatprep.subr.mxu0 0.0
    %2817 = vmatpush1.msra.mxu0 0.0
    %2818 = vmatprep.subr.mxu0 0.0
    %2819 = vmatpush1.msra.mxu0 0.0
    %2820 = vmatprep.subr.mxu0 0.0
    %2821 = vmatpush1.msra.mxu0 0.0
    %2822 = vmatprep.subr.mxu0 0.0
    %2823 = vmatpush1.msra.mxu0 0.0
    %2824 = vmatprep.subr.mxu0 0.0
    %2825 = vmatpush1.msra.mxu0 0.0
    %2826 = vmatprep.subr.mxu0 0.0
    %2827 = vmatpush1.msra.mxu0 0.0
    %2828 = vmatprep.subr.mxu0 0.0
    %2829 = vmatpush1.msra.mxu0 0.0
    %2830 = vmatprep.subr.mxu0 0.0
    %2831 = vmatpush1.msra.mxu0 0.0
    %2832 = vmatprep.subr.mxu0 0.0
    %2833 = vmatpush1.msra.mxu0 0.0
    %2834 = vmatprep.subr.mxu0 0.0
    %2835 = vmatpush1.msra.mxu0 0.0
    %2836 = vmatprep.subr.mxu0 0.0
    %2837 = vmatpush1.msra.mxu0 0.0
    %2838 = vmatprep.subr.mxu0 0.0
    %2839 = vmatpush1.msra.mxu0 0.0
    %2840 = vmatprep.subr.mxu0 0.0
    %2841 = vmatpush1.msra.mxu0 0.0
    %2842 = vmatprep.subr.mxu0 0.0
    %2843 = vmatpush1.msra.mxu0 0.0
    %2844 = vmatprep.subr.mxu0 0.0
    %2845 = vmatpush1.msra.mxu0 0.0
    %2846 = vmatprep.subr.mxu0 0.0
    %2847 = vmatpush1.msra.mxu0 0.0
    %2848 = vmatprep.subr.mxu0 0.0
    %2849 = vmatpush1.msra.mxu0 0.0
    %2850 = vmatprep.subr.mxu0 0.0
    %2851 = vmatpush1.msra.mxu0 0.0
    %2852 = vmatprep.subr.mxu0 0.0
    %2853 = vmatpush1.msra.mxu0 0.0
    %2854 = vmatprep.subr.mxu0 0.0
    %2855 = vmatpush1.msra.mxu0 0.0
    %2856 = vmatprep.subr.mxu0 0.0
    %2857 = vmatpush1.msra.mxu0 0.0
    %2858 = vmatprep.subr.mxu0 0.0
    %2859 = vmatpush1.msra.mxu0 0.0
    %2860 = vmatprep.subr.mxu0 0.0
    %2861 = vmatpush1.msra.mxu0 0.0
    %2862 = vmatprep.subr.mxu0 0.0
    %2863 = vmatpush1.msra.mxu0 0.0
    %2864 = vmatprep.subr.mxu0 0.0
    %2865 = vmatpush1.msra.mxu0 0.0
    %2866 = vmatprep.mubr.f32.mxu0 0.0
    %2867 = vmatmul.mubr.f32.gmra.mrb[0].mxu0 %v2782
    %v2868 = vpop.f32.mrb[0].mxu0
    %v2869 = vadd.f32 %v2749, %v2868
    %v2870 = vpop.f32.mrb[0].mxu0
    %2871 = vmatprep.mubr.f32.mxu0 0.0
    %2872 = vmatmul.mubr.f32.gmra.mrb[0].mxu0 %v2785
    %v2873 = vpop.f32.mrb[0].mxu0
    %v2874 = vadd.f32 %v2754, %v2873
    %v2875 = vpop.f32.mrb[0].mxu0
    %2876 = vmatprep.mubr.f32.mxu0 0.0
    %2877 = vmatmul.mubr.f32.gmra.mrb[0].mxu0 %v2788
    %v2878 = vpop.f32.mrb[0].mxu0
    %v2879 = vadd.f32 %v2759, %v2878
    %v2880 = vpop.f32.mrb[0].mxu0
    %2881 = vmatprep.mubr.f32.mxu0 0.0
    %2882 = vmatmul.mubr.f32.gmra.mrb[0].mxu0 %v2791
    %v2883 = vpop.f32.mrb[0].mxu0
    %v2884 = vadd.f32 %v2764, %v2883
    %v2885 = vpop.f32.mrb[0].mxu0
    %2886 = vmatprep.mubr.f32.mxu0 0.0
    %2887 = vmatmul.mubr.f32.gmra.mrb[0].mxu0 %v2794
    %v2888 = vpop.f32.mrb[0].mxu0
    %v2889 = vadd.f32 %v2769, %v2888
    %v2890 = vpop.f32.mrb[0].mxu0
    %2891 = vmatprep.mubr.f32.mxu0 0.0
    %2892 = vmatmul.mubr.f32.gmra.mrb[0].mxu0 %v2797
    %v2893 = vpop.f32.mrb[0].mxu0
    %v2894 = vadd.f32 %v2774, %v2893
    %v2895 = vpop.f32.mrb[0].mxu0
    %2896 = vmatprep.mubr.f32.mxu0 0.0
    %2897 = vmatmul.mubr.f32.gmra.mrb[0].mxu0 %v2800
    %v2898 = vpop.f32.mrb[0].mxu0
    %v2899 = vadd.f32 %v2779, %v2898
    %v2900 = vpop.f32.mrb[0].mxu0
    %2901 = vdwg.mxu0
    %s2902 = sld [smem:[#allocation2 + $0x7]]
    %vm2903 = vcmp.ge.f32.partialorder %v2869, 0.0
    %vm2904 = vcmp.ge.f32.partialorder %v2874, 0.0
    %vm2905 = vcmp.ge.f32.partialorder %v2879, 0.0
    %vm2906 = vcmp.ge.f32.partialorder %v2884, 0.0
    %vm2907 = vcmp.ge.f32.partialorder %v2889, 0.0
    %vm2908 = vcmp.ge.f32.partialorder %v2894, 0.0
    %vm2909 = vcmp.ge.f32.partialorder %v2899, 0.0
    %v2910 = vstv %s2902
    %v2911 = vmul.f32 %v2910, %v2869
    %v2912 = vmul.f32 %v2910, %v2874
    %v2913 = vmul.f32 %v2910, %v2879
    %v2914 = vmul.f32 %v2910, %v2884
    %v2915 = vmul.f32 %v2910, %v2889
    %v2916 = vmul.f32 %v2910, %v2894
    %v2917 = vmul.f32 %v2910, %v2899
    %v2918 = vsel %vm2903, %v2869, %v2911
    %v2919 = vsel %vm2904, %v2874, %v2912
    %v2920 = vsel %vm2905, %v2879, %v2913
    %v2921 = vsel %vm2906, %v2884, %v2914
    %v2922 = vsel %vm2907, %v2889, %v2915
    %v2923 = vsel %vm2908, %v2894, %v2916
    %v2924 = vsel %vm2909, %v2899, %v2917
    %v2925 = vlaneseq
    %v2926 = vshrl.u32 %v2925, 7
    %v2927 = vsub.s32 0, %v2926
    %v2928 = vrot.slane %v62, %v2927
    %v2929 = vmul.f32 %v2918, %v2928
    %v2930 = vmul.f32 %v2919, %v2928
    %v2931 = vmul.f32 %v2920, %v2928
    %v2932 = vmul.f32 %v2921, %v2928
    %v2933 = vmul.f32 %v2922, %v2928
    %v2934 = vmul.f32 %v2923, %v2928
    %v2935 = vmul.f32 %v2924, %v2928
    %v2936 = vld [vmem:[%s11] sm:$0xff]
    %v2937 = vld [vmem:[%s12] sm:$0xff]
    %2939 = vset.pattern.permute.xlu0 0
    %2940 = vperm.xlu0 %2939, %v2937
    %v2941 = vpop.permute.xlu0 %2940
    %v2944 = vsel %vm272, %v2936, 0
    %2946 = vmatprep.subr.mxu0 0.0
    %2947 = vmatpush1.msra.mxu0 %v2929
    %2948 = vmatprep.subr.mxu0 0.0
    %2949 = vmatpush1.msra.mxu0 %v2930
    %2950 = vmatprep.subr.mxu0 0.0
    %2951 = vmatpush1.msra.mxu0 %v2931
    %2952 = vmatprep.subr.mxu0 0.0
    %2953 = vmatpush1.msra.mxu0 %v2932
    %2954 = vmatprep.subr.mxu0 0.0
    %2955 = vmatpush1.msra.mxu0 %v2933
    %2956 = vmatprep.subr.mxu0 0.0
    %2957 = vmatpush1.msra.mxu0 %v2934
    %2958 = vmatprep.subr.mxu0 0.0
    %2959 = vmatpush1.msra.mxu0 %v2935
    %2960 = vmatprep.subr.mxu0 0.0
    %2961 = vmatpush1.msra.mxu0 0.0
    %2962 = vmatprep.subr.mxu0 0.0
    %2963 = vmatpush1.msra.mxu0 0.0
    %2964 = vmatprep.subr.mxu0 0.0
    %2965 = vmatpush1.msra.mxu0 0.0
    %2966 = vmatprep.subr.mxu0 0.0
    %2967 = vmatpush1.msra.mxu0 0.0
    %2968 = vmatprep.subr.mxu0 0.0
    %2969 = vmatpush1.msra.mxu0 0.0
    %2970 = vmatprep.subr.mxu0 0.0
    %2971 = vmatpush1.msra.mxu0 0.0
    %2972 = vmatprep.subr.mxu0 0.0
    %2973 = vmatpush1.msra.mxu0 0.0
    %2974 = vmatprep.subr.mxu0 0.0
    %2975 = vmatpush1.msra.mxu0 0.0
    %2976 = vmatprep.subr.mxu0 0.0
    %2977 = vmatpush1.msra.mxu0 0.0
    %2978 = vmatprep.subr.mxu0 0.0
    %2979 = vmatpush1.msra.mxu0 0.0
    %2980 = vmatprep.subr.mxu0 0.0
    %2981 = vmatpush1.msra.mxu0 0.0
    %2982 = vmatprep.subr.mxu0 0.0
    %2983 = vmatpush1.msra.mxu0 0.0
    %2984 = vmatprep.subr.mxu0 0.0
    %2985 = vmatpush1.msra.mxu0 0.0
    %2986 = vmatprep.subr.mxu0 0.0
    %2987 = vmatpush1.msra.mxu0 0.0
    %2988 = vmatprep.subr.mxu0 0.0
    %2989 = vmatpush1.msra.mxu0 0.0
    %2990 = vmatprep.subr.mxu0 0.0
    %2991 = vmatpush1.msra.mxu0 0.0
    %2992 = vmatprep.subr.mxu0 0.0
    %2993 = vmatpush1.msra.mxu0 0.0
    %2994 = vmatprep.subr.mxu0 0.0
    %2995 = vmatpush1.msra.mxu0 0.0
    %2996 = vmatprep.subr.mxu0 0.0
    %2997 = vmatpush1.msra.mxu0 0.0
    %2998 = vmatprep.subr.mxu0 0.0
    %2999 = vmatpush1.msra.mxu0 0.0
    %3000 = vmatprep.subr.mxu0 0.0
    %3001 = vmatpush1.msra.mxu0 0.0
    %3002 = vmatprep.subr.mxu0 0.0
    %3003 = vmatpush1.msra.mxu0 0.0
    %3004 = vmatprep.subr.mxu0 0.0
    %3005 = vmatpush1.msra.mxu0 0.0
    %3006 = vmatprep.subr.mxu0 0.0
    %3007 = vmatpush1.msra.mxu0 0.0
    %3008 = vmatprep.subr.mxu0 0.0
    %3009 = vmatpush1.msra.mxu0 0.0
    %3010 = vmatprep.mubr.f32.mxu0 0.0
    %3011 = vmatmul.mubr.f32.gmra.mrb[0].mxu0 %v2944
    %v3012 = vpop.f32.mrb[0].mxu0
    %v3013 = vadd.f32 %v2941, %v3012
    %v3014 = vpop.f32.mrb[0].mxu0
    %3015 = vdwg.mxu0
    %s3016 = scalar_lea.vmem %s11, 8
    %v3017 = vld [vmem:[%s3016] sm:$0xff]
    %3018 = vrot.lane.b32.xlu0 %v2929, 1
    %v3019 = vpop.permute.xlu0 %3018
    %3020 = vrot.lane.b32.xlu0 %v2930, 1
    %v3021 = vpop.permute.xlu0 %3020
    %3022 = vrot.lane.b32.xlu0 %v2931, 1
    %v3023 = vpop.permute.xlu0 %3022
    %3024 = vrot.lane.b32.xlu0 %v2932, 1
    %v3025 = vpop.permute.xlu0 %3024
    %3026 = vrot.lane.b32.xlu0 %v2933, 1
    %v3027 = vpop.permute.xlu0 %3026
    %3028 = vrot.lane.b32.xlu0 %v2934, 1
    %v3029 = vpop.permute.xlu0 %3028
    %3030 = vrot.lane.b32.xlu0 %v2935, 1
    %v3031 = vpop.permute.xlu0 %3030
    %v3033 = vsel %vm272, %v3017, 0
    %3035 = vmatprep.subr.mxu0 0.0
    %3036 = vmatpush1.msra.mxu0 %v3019
    %3037 = vmatprep.subr.mxu0 0.0
    %3038 = vmatpush1.msra.mxu0 %v3021
    %3039 = vmatprep.subr.mxu0 0.0
    %3040 = vmatpush1.msra.mxu0 %v3023
    %3041 = vmatprep.subr.mxu0 0.0
    %3042 = vmatpush1.msra.mxu0 %v3025
    %3043 = vmatprep.subr.mxu0 0.0
    %3044 = vmatpush1.msra.mxu0 %v3027
    %3045 = vmatprep.subr.mxu0 0.0
    %3046 = vmatpush1.msra.mxu0 %v3029
    %3047 = vmatprep.subr.mxu0 0.0
    %3048 = vmatpush1.msra.mxu0 %v3031
    %3049 = vmatprep.subr.mxu0 0.0
    %3050 = vmatpush1.msra.mxu0 0.0
    %3051 = vmatprep.subr.mxu0 0.0
    %3052 = vmatpush1.msra.mxu0 0.0
    %3053 = vmatprep.subr.mxu0 0.0
    %3054 = vmatpush1.msra.mxu0 0.0
    %3055 = vmatprep.subr.mxu0 0.0
    %3056 = vmatpush1.msra.mxu0 0.0
    %3057 = vmatprep.subr.mxu0 0.0
    %3058 = vmatpush1.msra.mxu0 0.0
    %3059 = vmatprep.subr.mxu0 0.0
    %3060 = vmatpush1.msra.mxu0 0.0
    %3061 = vmatprep.subr.mxu0 0.0
    %3062 = vmatpush1.msra.mxu0 0.0
    %3063 = vmatprep.subr.mxu0 0.0
    %3064 = vmatpush1.msra.mxu0 0.0
    %3065 = vmatprep.subr.mxu0 0.0
    %3066 = vmatpush1.msra.mxu0 0.0
    %3067 = vmatprep.subr.mxu0 0.0
    %3068 = vmatpush1.msra.mxu0 0.0
    %3069 = vmatprep.subr.mxu0 0.0
    %3070 = vmatpush1.msra.mxu0 0.0
    %3071 = vmatprep.subr.mxu0 0.0
    %3072 = vmatpush1.msra.mxu0 0.0
    %3073 = vmatprep.subr.mxu0 0.0
    %3074 = vmatpush1.msra.mxu0 0.0
    %3075 = vmatprep.subr.mxu0 0.0
    %3076 = vmatpush1.msra.mxu0 0.0
    %3077 = vmatprep.subr.mxu0 0.0
    %3078 = vmatpush1.msra.mxu0 0.0
    %3079 = vmatprep.subr.mxu0 0.0
    %3080 = vmatpush1.msra.mxu0 0.0
    %3081 = vmatprep.subr.mxu0 0.0
    %3082 = vmatpush1.msra.mxu0 0.0
    %3083 = vmatprep.subr.mxu0 0.0
    %3084 = vmatpush1.msra.mxu0 0.0
    %3085 = vmatprep.subr.mxu0 0.0
    %3086 = vmatpush1.msra.mxu0 0.0
    %3087 = vmatprep.subr.mxu0 0.0
    %3088 = vmatpush1.msra.mxu0 0.0
    %3089 = vmatprep.subr.mxu0 0.0
    %3090 = vmatpush1.msra.mxu0 0.0
    %3091 = vmatprep.subr.mxu0 0.0
    %3092 = vmatpush1.msra.mxu0 0.0
    %3093 = vmatprep.subr.mxu0 0.0
    %3094 = vmatpush1.msra.mxu0 0.0
    %3095 = vmatprep.subr.mxu0 0.0
    %3096 = vmatpush1.msra.mxu0 0.0
    %3097 = vmatprep.subr.mxu0 0.0
    %3098 = vmatpush1.msra.mxu0 0.0
    %3099 = vmatprep.mubr.f32.mxu0 0.0
    %3100 = vmatmul.mubr.f32.gmra.mrb[0].mxu0 %v3033
    %v3101 = vpop.f32.mrb[0].mxu0
    %v3102 = vadd.f32 0.0, %v3101
    %v3103 = vpop.f32.mrb[0].mxu0
    %3104 = vdwg.mxu0
    %v3105 = vadd.f32 %v3013, %v3102
    %s3106 = scalar_lea.vmem %s11, 16
    %v3107 = vld [vmem:[%s3106] sm:$0xff]
    %3108 = vrot.lane.b32.xlu0 %v2929, 2
    %v3109 = vpop.permute.xlu0 %3108
    %3110 = vrot.lane.b32.xlu0 %v2930, 2
    %v3111 = vpop.permute.xlu0 %3110
    %3112 = vrot.lane.b32.xlu0 %v2931, 2
    %v3113 = vpop.permute.xlu0 %3112
    %3114 = vrot.lane.b32.xlu0 %v2932, 2
    %v3115 = vpop.permute.xlu0 %3114
    %3116 = vrot.lane.b32.xlu0 %v2933, 2
    %v3117 = vpop.permute.xlu0 %3116
    %3118 = vrot.lane.b32.xlu0 %v2934, 2
    %v3119 = vpop.permute.xlu0 %3118
    %3120 = vrot.lane.b32.xlu0 %v2935, 2
    %v3121 = vpop.permute.xlu0 %3120
    %v3123 = vsel %vm272, %v3107, 0
    %3125 = vmatprep.subr.mxu0 0.0
    %3126 = vmatpush1.msra.mxu0 %v3109
    %3127 = vmatprep.subr.mxu0 0.0
    %3128 = vmatpush1.msra.mxu0 %v3111
    %3129 = vmatprep.subr.mxu0 0.0
    %3130 = vmatpush1.msra.mxu0 %v3113
    %3131 = vmatprep.subr.mxu0 0.0
    %3132 = vmatpush1.msra.mxu0 %v3115
    %3133 = vmatprep.subr.mxu0 0.0
    %3134 = vmatpush1.msra.mxu0 %v3117
    %3135 = vmatprep.subr.mxu0 0.0
    %3136 = vmatpush1.msra.mxu0 %v3119
    %3137 = vmatprep.subr.mxu0 0.0
    %3138 = vmatpush1.msra.mxu0 %v3121
    %3139 = vmatprep.subr.mxu0 0.0
    %3140 = vmatpush1.msra.mxu0 0.0
    %3141 = vmatprep.subr.mxu0 0.0
    %3142 = vmatpush1.msra.mxu0 0.0
    %3143 = vmatprep.subr.mxu0 0.0
    %3144 = vmatpush1.msra.mxu0 0.0
    %3145 = vmatprep.subr.mxu0 0.0
    %3146 = vmatpush1.msra.mxu0 0.0
    %3147 = vmatprep.subr.mxu0 0.0
    %3148 = vmatpush1.msra.mxu0 0.0
    %3149 = vmatprep.subr.mxu0 0.0
    %3150 = vmatpush1.msra.mxu0 0.0
    %3151 = vmatprep.subr.mxu0 0.0
    %3152 = vmatpush1.msra.mxu0 0.0
    %3153 = vmatprep.subr.mxu0 0.0
    %3154 = vmatpush1.msra.mxu0 0.0
    %3155 = vmatprep.subr.mxu0 0.0
    %3156 = vmatpush1.msra.mxu0 0.0
    %3157 = vmatprep.subr.mxu0 0.0
    %3158 = vmatpush1.msra.mxu0 0.0
    %3159 = vmatprep.subr.mxu0 0.0
    %3160 = vmatpush1.msra.mxu0 0.0
    %3161 = vmatprep.subr.mxu0 0.0
    %3162 = vmatpush1.msra.mxu0 0.0
    %3163 = vmatprep.subr.mxu0 0.0
    %3164 = vmatpush1.msra.mxu0 0.0
    %3165 = vmatprep.subr.mxu0 0.0
    %3166 = vmatpush1.msra.mxu0 0.0
    %3167 = vmatprep.subr.mxu0 0.0
    %3168 = vmatpush1.msra.mxu0 0.0
    %3169 = vmatprep.subr.mxu0 0.0
    %3170 = vmatpush1.msra.mxu0 0.0
    %3171 = vmatprep.subr.mxu0 0.0
    %3172 = vmatpush1.msra.mxu0 0.0
    %3173 = vmatprep.subr.mxu0 0.0
    %3174 = vmatpush1.msra.mxu0 0.0
    %3175 = vmatprep.subr.mxu0 0.0
    %3176 = vmatpush1.msra.mxu0 0.0
    %3177 = vmatprep.subr.mxu0 0.0
    %3178 = vmatpush1.msra.mxu0 0.0
    %3179 = vmatprep.subr.mxu0 0.0
    %3180 = vmatpush1.msra.mxu0 0.0
    %3181 = vmatprep.subr.mxu0 0.0
    %3182 = vmatpush1.msra.mxu0 0.0
    %3183 = vmatprep.subr.mxu0 0.0
    %3184 = vmatpush1.msra.mxu0 0.0
    %3185 = vmatprep.subr.mxu0 0.0
    %3186 = vmatpush1.msra.mxu0 0.0
    %3187 = vmatprep.subr.mxu0 0.0
    %3188 = vmatpush1.msra.mxu0 0.0
    %3189 = vmatprep.mubr.f32.mxu0 0.0
    %3190 = vmatmul.mubr.f32.gmra.mrb[0].mxu0 %v3123
    %v3191 = vpop.f32.mrb[0].mxu0
    %v3192 = vadd.f32 0.0, %v3191
    %v3193 = vpop.f32.mrb[0].mxu0
    %3194 = vdwg.mxu0
    %v3195 = vadd.f32 %v3105, %v3192
    %s3196 = scalar_lea.vmem %s11, 24
    %v3197 = vld [vmem:[%s3196] sm:$0xff]
    %3198 = vrot.lane.b32.xlu0 %v2929, 3
    %v3199 = vpop.permute.xlu0 %3198
    %3200 = vrot.lane.b32.xlu0 %v2930, 3
    %v3201 = vpop.permute.xlu0 %3200
    %3202 = vrot.lane.b32.xlu0 %v2931, 3
    %v3203 = vpop.permute.xlu0 %3202
    %3204 = vrot.lane.b32.xlu0 %v2932, 3
    %v3205 = vpop.permute.xlu0 %3204
    %3206 = vrot.lane.b32.xlu0 %v2933, 3
    %v3207 = vpop.permute.xlu0 %3206
    %3208 = vrot.lane.b32.xlu0 %v2934, 3
    %v3209 = vpop.permute.xlu0 %3208
    %3210 = vrot.lane.b32.xlu0 %v2935, 3
    %v3211 = vpop.permute.xlu0 %3210
    %v3213 = vsel %vm272, %v3197, 0
    %3215 = vmatprep.subr.mxu0 0.0
    %3216 = vmatpush1.msra.mxu0 %v3199
    %3217 = vmatprep.subr.mxu0 0.0
    %3218 = vmatpush1.msra.mxu0 %v3201
    %3219 = vmatprep.subr.mxu0 0.0
    %3220 = vmatpush1.msra.mxu0 %v3203
    %3221 = vmatprep.subr.mxu0 0.0
    %3222 = vmatpush1.msra.mxu0 %v3205
    %3223 = vmatprep.subr.mxu0 0.0
    %3224 = vmatpush1.msra.mxu0 %v3207
    %3225 = vmatprep.subr.mxu0 0.0
    %3226 = vmatpush1.msra.mxu0 %v3209
    %3227 = vmatprep.subr.mxu0 0.0
    %3228 = vmatpush1.msra.mxu0 %v3211
    %3229 = vmatprep.subr.mxu0 0.0
    %3230 = vmatpush1.msra.mxu0 0.0
    %3231 = vmatprep.subr.mxu0 0.0
    %3232 = vmatpush1.msra.mxu0 0.0
    %3233 = vmatprep.subr.mxu0 0.0
    %3234 = vmatpush1.msra.mxu0 0.0
    %3235 = vmatprep.subr.mxu0 0.0
    %3236 = vmatpush1.msra.mxu0 0.0
    %3237 = vmatprep.subr.mxu0 0.0
    %3238 = vmatpush1.msra.mxu0 0.0
    %3239 = vmatprep.subr.mxu0 0.0
    %3240 = vmatpush1.msra.mxu0 0.0
    %3241 = vmatprep.subr.mxu0 0.0
    %3242 = vmatpush1.msra.mxu0 0.0
    %3243 = vmatprep.subr.mxu0 0.0
    %3244 = vmatpush1.msra.mxu0 0.0
    %3245 = vmatprep.subr.mxu0 0.0
    %3246 = vmatpush1.msra.mxu0 0.0
    %3247 = vmatprep.subr.mxu0 0.0
    %3248 = vmatpush1.msra.mxu0 0.0
    %3249 = vmatprep.subr.mxu0 0.0
    %3250 = vmatpush1.msra.mxu0 0.0
    %3251 = vmatprep.subr.mxu0 0.0
    %3252 = vmatpush1.msra.mxu0 0.0
    %3253 = vmatprep.subr.mxu0 0.0
    %3254 = vmatpush1.msra.mxu0 0.0
    %3255 = vmatprep.subr.mxu0 0.0
    %3256 = vmatpush1.msra.mxu0 0.0
    %3257 = vmatprep.subr.mxu0 0.0
    %3258 = vmatpush1.msra.mxu0 0.0
    %3259 = vmatprep.subr.mxu0 0.0
    %3260 = vmatpush1.msra.mxu0 0.0
    %3261 = vmatprep.subr.mxu0 0.0
    %3262 = vmatpush1.msra.mxu0 0.0
    %3263 = vmatprep.subr.mxu0 0.0
    %3264 = vmatpush1.msra.mxu0 0.0
    %3265 = vmatprep.subr.mxu0 0.0
    %3266 = vmatpush1.msra.mxu0 0.0
    %3267 = vmatprep.subr.mxu0 0.0
    %3268 = vmatpush1.msra.mxu0 0.0
    %3269 = vmatprep.subr.mxu0 0.0
    %3270 = vmatpush1.msra.mxu0 0.0
    %3271 = vmatprep.subr.mxu0 0.0
    %3272 = vmatpush1.msra.mxu0 0.0
    %3273 = vmatprep.subr.mxu0 0.0
    %3274 = vmatpush1.msra.mxu0 0.0
    %3275 = vmatprep.subr.mxu0 0.0
    %3276 = vmatpush1.msra.mxu0 0.0
    %3277 = vmatprep.subr.mxu0 0.0
    %3278 = vmatpush1.msra.mxu0 0.0
    %3279 = vmatprep.mubr.f32.mxu0 0.0
    %3280 = vmatmul.mubr.f32.gmra.mrb[0].mxu0 %v3213
    %v3281 = vpop.f32.mrb[0].mxu0
    %v3282 = vadd.f32 0.0, %v3281
    %v3283 = vpop.f32.mrb[0].mxu0
    %3284 = vdwg.mxu0
    %v3285 = vadd.f32 %v3195, %v3282
    %s3286 = scalar_lea.vmem %s11, 32
    %v3287 = vld [vmem:[%s3286] sm:$0xff]
    %3288 = vrot.lane.b32.xlu0 %v2929, 4
    %v3289 = vpop.permute.xlu0 %3288
    %3290 = vrot.lane.b32.xlu0 %v2930, 4
    %v3291 = vpop.permute.xlu0 %3290
    %3292 = vrot.lane.b32.xlu0 %v2931, 4
    %v3293 = vpop.permute.xlu0 %3292
    %3294 = vrot.lane.b32.xlu0 %v2932, 4
    %v3295 = vpop.permute.xlu0 %3294
    %3296 = vrot.lane.b32.xlu0 %v2933, 4
    %v3297 = vpop.permute.xlu0 %3296
    %3298 = vrot.lane.b32.xlu0 %v2934, 4
    %v3299 = vpop.permute.xlu0 %3298
    %3300 = vrot.lane.b32.xlu0 %v2935, 4
    %v3301 = vpop.permute.xlu0 %3300
    %v3303 = vsel %vm272, %v3287, 0
    %3305 = vmatprep.subr.mxu0 0.0
    %3306 = vmatpush1.msra.mxu0 %v3289
    %3307 = vmatprep.subr.mxu0 0.0
    %3308 = vmatpush1.msra.mxu0 %v3291
    %3309 = vmatprep.subr.mxu0 0.0
    %3310 = vmatpush1.msra.mxu0 %v3293
    %3311 = vmatprep.subr.mxu0 0.0
    %3312 = vmatpush1.msra.mxu0 %v3295
    %3313 = vmatprep.subr.mxu0 0.0
    %3314 = vmatpush1.msra.mxu0 %v3297
    %3315 = vmatprep.subr.mxu0 0.0
    %3316 = vmatpush1.msra.mxu0 %v3299
    %3317 = vmatprep.subr.mxu0 0.0
    %3318 = vmatpush1.msra.mxu0 %v3301
    %3319 = vmatprep.subr.mxu0 0.0
    %3320 = vmatpush1.msra.mxu0 0.0
    %3321 = vmatprep.subr.mxu0 0.0
    %3322 = vmatpush1.msra.mxu0 0.0
    %3323 = vmatprep.subr.mxu0 0.0
    %3324 = vmatpush1.msra.mxu0 0.0
    %3325 = vmatprep.subr.mxu0 0.0
    %3326 = vmatpush1.msra.mxu0 0.0
    %3327 = vmatprep.subr.mxu0 0.0
    %3328 = vmatpush1.msra.mxu0 0.0
    %3329 = vmatprep.subr.mxu0 0.0
    %3330 = vmatpush1.msra.mxu0 0.0
    %3331 = vmatprep.subr.mxu0 0.0
    %3332 = vmatpush1.msra.mxu0 0.0
    %3333 = vmatprep.subr.mxu0 0.0
    %3334 = vmatpush1.msra.mxu0 0.0
    %3335 = vmatprep.subr.mxu0 0.0
    %3336 = vmatpush1.msra.mxu0 0.0
    %3337 = vmatprep.subr.mxu0 0.0
    %3338 = vmatpush1.msra.mxu0 0.0
    %3339 = vmatprep.subr.mxu0 0.0
    %3340 = vmatpush1.msra.mxu0 0.0
    %3341 = vmatprep.subr.mxu0 0.0
    %3342 = vmatpush1.msra.mxu0 0.0
    %3343 = vmatprep.subr.mxu0 0.0
    %3344 = vmatpush1.msra.mxu0 0.0
    %3345 = vmatprep.subr.mxu0 0.0
    %3346 = vmatpush1.msra.mxu0 0.0
    %3347 = vmatprep.subr.mxu0 0.0
    %3348 = vmatpush1.msra.mxu0 0.0
    %3349 = vmatprep.subr.mxu0 0.0
    %3350 = vmatpush1.msra.mxu0 0.0
    %3351 = vmatprep.subr.mxu0 0.0
    %3352 = vmatpush1.msra.mxu0 0.0
    %3353 = vmatprep.subr.mxu0 0.0
    %3354 = vmatpush1.msra.mxu0 0.0
    %3355 = vmatprep.subr.mxu0 0.0
    %3356 = vmatpush1.msra.mxu0 0.0
    %3357 = vmatprep.subr.mxu0 0.0
    %3358 = vmatpush1.msra.mxu0 0.0
    %3359 = vmatprep.subr.mxu0 0.0
    %3360 = vmatpush1.msra.mxu0 0.0
    %3361 = vmatprep.subr.mxu0 0.0
    %3362 = vmatpush1.msra.mxu0 0.0
    %3363 = vmatprep.subr.mxu0 0.0
    %3364 = vmatpush1.msra.mxu0 0.0
    %3365 = vmatprep.subr.mxu0 0.0
    %3366 = vmatpush1.msra.mxu0 0.0
    %3367 = vmatprep.subr.mxu0 0.0
    %3368 = vmatpush1.msra.mxu0 0.0
    %3369 = vmatprep.mubr.f32.mxu0 0.0
    %3370 = vmatmul.mubr.f32.gmra.mrb[0].mxu0 %v3303
    %v3371 = vpop.f32.mrb[0].mxu0
    %v3372 = vadd.f32 0.0, %v3371
    %v3373 = vpop.f32.mrb[0].mxu0
    %3374 = vdwg.mxu0
    %v3375 = vadd.f32 %v3285, %v3372
    %s3376 = scalar_lea.vmem %s11, 40
    %v3377 = vld [vmem:[%s3376] sm:$0xff]
    %3378 = vrot.lane.b32.xlu0 %v2929, 5
    %v3379 = vpop.permute.xlu0 %3378
    %3380 = vrot.lane.b32.xlu0 %v2930, 5
    %v3381 = vpop.permute.xlu0 %3380
    %3382 = vrot.lane.b32.xlu0 %v2931, 5
    %v3383 = vpop.permute.xlu0 %3382
    %3384 = vrot.lane.b32.xlu0 %v2932, 5
    %v3385 = vpop.permute.xlu0 %3384
    %3386 = vrot.lane.b32.xlu0 %v2933, 5
    %v3387 = vpop.permute.xlu0 %3386
    %3388 = vrot.lane.b32.xlu0 %v2934, 5
    %v3389 = vpop.permute.xlu0 %3388
    %3390 = vrot.lane.b32.xlu0 %v2935, 5
    %v3391 = vpop.permute.xlu0 %3390
    %v3393 = vsel %vm272, %v3377, 0
    %3395 = vmatprep.subr.mxu0 0.0
    %3396 = vmatpush1.msra.mxu0 %v3379
    %3397 = vmatprep.subr.mxu0 0.0
    %3398 = vmatpush1.msra.mxu0 %v3381
    %3399 = vmatprep.subr.mxu0 0.0
    %3400 = vmatpush1.msra.mxu0 %v3383
    %3401 = vmatprep.subr.mxu0 0.0
    %3402 = vmatpush1.msra.mxu0 %v3385
    %3403 = vmatprep.subr.mxu0 0.0
    %3404 = vmatpush1.msra.mxu0 %v3387
    %3405 = vmatprep.subr.mxu0 0.0
    %3406 = vmatpush1.msra.mxu0 %v3389
    %3407 = vmatprep.subr.mxu0 0.0
    %3408 = vmatpush1.msra.mxu0 %v3391
    %3409 = vmatprep.subr.mxu0 0.0
    %3410 = vmatpush1.msra.mxu0 0.0
    %3411 = vmatprep.subr.mxu0 0.0
    %3412 = vmatpush1.msra.mxu0 0.0
    %3413 = vmatprep.subr.mxu0 0.0
    %3414 = vmatpush1.msra.mxu0 0.0
    %3415 = vmatprep.subr.mxu0 0.0
    %3416 = vmatpush1.msra.mxu0 0.0
    %3417 = vmatprep.subr.mxu0 0.0
    %3418 = vmatpush1.msra.mxu0 0.0
    %3419 = vmatprep.subr.mxu0 0.0
    %3420 = vmatpush1.msra.mxu0 0.0
    %3421 = vmatprep.subr.mxu0 0.0
    %3422 = vmatpush1.msra.mxu0 0.0
    %3423 = vmatprep.subr.mxu0 0.0
    %3424 = vmatpush1.msra.mxu0 0.0
    %3425 = vmatprep.subr.mxu0 0.0
    %3426 = vmatpush1.msra.mxu0 0.0
    %3427 = vmatprep.subr.mxu0 0.0
    %3428 = vmatpush1.msra.mxu0 0.0
    %3429 = vmatprep.subr.mxu0 0.0
    %3430 = vmatpush1.msra.mxu0 0.0
    %3431 = vmatprep.subr.mxu0 0.0
    %3432 = vmatpush1.msra.mxu0 0.0
    %3433 = vmatprep.subr.mxu0 0.0
    %3434 = vmatpush1.msra.mxu0 0.0
    %3435 = vmatprep.subr.mxu0 0.0
    %3436 = vmatpush1.msra.mxu0 0.0
    %3437 = vmatprep.subr.mxu0 0.0
    %3438 = vmatpush1.msra.mxu0 0.0
    %3439 = vmatprep.subr.mxu0 0.0
    %3440 = vmatpush1.msra.mxu0 0.0
    %3441 = vmatprep.subr.mxu0 0.0
    %3442 = vmatpush1.msra.mxu0 0.0
    %3443 = vmatprep.subr.mxu0 0.0
    %3444 = vmatpush1.msra.mxu0 0.0
    %3445 = vmatprep.subr.mxu0 0.0
    %3446 = vmatpush1.msra.mxu0 0.0
    %3447 = vmatprep.subr.mxu0 0.0
    %3448 = vmatpush1.msra.mxu0 0.0
    %3449 = vmatprep.subr.mxu0 0.0
    %3450 = vmatpush1.msra.mxu0 0.0
    %3451 = vmatprep.subr.mxu0 0.0
    %3452 = vmatpush1.msra.mxu0 0.0
    %3453 = vmatprep.subr.mxu0 0.0
    %3454 = vmatpush1.msra.mxu0 0.0
    %3455 = vmatprep.subr.mxu0 0.0
    %3456 = vmatpush1.msra.mxu0 0.0
    %3457 = vmatprep.subr.mxu0 0.0
    %3458 = vmatpush1.msra.mxu0 0.0
    %3459 = vmatprep.mubr.f32.mxu0 0.0
    %3460 = vmatmul.mubr.f32.gmra.mrb[0].mxu0 %v3393
    %v3461 = vpop.f32.mrb[0].mxu0
    %v3462 = vadd.f32 0.0, %v3461
    %v3463 = vpop.f32.mrb[0].mxu0
    %3464 = vdwg.mxu0
    %v3465 = vadd.f32 %v3375, %v3462
    %s3466 = scalar_lea.vmem %s11, 48
    %v3467 = vld [vmem:[%s3466] sm:$0xff]
    %3468 = vrot.lane.b32.xlu0 %v2929, 6
    %v3469 = vpop.permute.xlu0 %3468
    %3470 = vrot.lane.b32.xlu0 %v2930, 6
    %v3471 = vpop.permute.xlu0 %3470
    %3472 = vrot.lane.b32.xlu0 %v2931, 6
    %v3473 = vpop.permute.xlu0 %3472
    %3474 = vrot.lane.b32.xlu0 %v2932, 6
    %v3475 = vpop.permute.xlu0 %3474
    %3476 = vrot.lane.b32.xlu0 %v2933, 6
    %v3477 = vpop.permute.xlu0 %3476
    %3478 = vrot.lane.b32.xlu0 %v2934, 6
    %v3479 = vpop.permute.xlu0 %3478
    %3480 = vrot.lane.b32.xlu0 %v2935, 6
    %v3481 = vpop.permute.xlu0 %3480
    %v3483 = vsel %vm272, %v3467, 0
    %3485 = vmatprep.subr.mxu0 0.0
    %3486 = vmatpush1.msra.mxu0 %v3469
    %3487 = vmatprep.subr.mxu0 0.0
    %3488 = vmatpush1.msra.mxu0 %v3471
    %3489 = vmatprep.subr.mxu0 0.0
    %3490 = vmatpush1.msra.mxu0 %v3473
    %3491 = vmatprep.subr.mxu0 0.0
    %3492 = vmatpush1.msra.mxu0 %v3475
    %3493 = vmatprep.subr.mxu0 0.0
    %3494 = vmatpush1.msra.mxu0 %v3477
    %3495 = vmatprep.subr.mxu0 0.0
    %3496 = vmatpush1.msra.mxu0 %v3479
    %3497 = vmatprep.subr.mxu0 0.0
    %3498 = vmatpush1.msra.mxu0 %v3481
    %3499 = vmatprep.subr.mxu0 0.0
    %3500 = vmatpush1.msra.mxu0 0.0
    %3501 = vmatprep.subr.mxu0 0.0
    %3502 = vmatpush1.msra.mxu0 0.0
    %3503 = vmatprep.subr.mxu0 0.0
    %3504 = vmatpush1.msra.mxu0 0.0
    %3505 = vmatprep.subr.mxu0 0.0
    %3506 = vmatpush1.msra.mxu0 0.0
    %3507 = vmatprep.subr.mxu0 0.0
    %3508 = vmatpush1.msra.mxu0 0.0
    %3509 = vmatprep.subr.mxu0 0.0
    %3510 = vmatpush1.msra.mxu0 0.0
    %3511 = vmatprep.subr.mxu0 0.0
    %3512 = vmatpush1.msra.mxu0 0.0
    %3513 = vmatprep.subr.mxu0 0.0
    %3514 = vmatpush1.msra.mxu0 0.0
    %3515 = vmatprep.subr.mxu0 0.0
    %3516 = vmatpush1.msra.mxu0 0.0
    %3517 = vmatprep.subr.mxu0 0.0
    %3518 = vmatpush1.msra.mxu0 0.0
    %3519 = vmatprep.subr.mxu0 0.0
    %3520 = vmatpush1.msra.mxu0 0.0
    %3521 = vmatprep.subr.mxu0 0.0
    %3522 = vmatpush1.msra.mxu0 0.0
    %3523 = vmatprep.subr.mxu0 0.0
    %3524 = vmatpush1.msra.mxu0 0.0
    %3525 = vmatprep.subr.mxu0 0.0
    %3526 = vmatpush1.msra.mxu0 0.0
    %3527 = vmatprep.subr.mxu0 0.0
    %3528 = vmatpush1.msra.mxu0 0.0
    %3529 = vmatprep.subr.mxu0 0.0
    %3530 = vmatpush1.msra.mxu0 0.0
    %3531 = vmatprep.subr.mxu0 0.0
    %3532 = vmatpush1.msra.mxu0 0.0
    %3533 = vmatprep.subr.mxu0 0.0
    %3534 = vmatpush1.msra.mxu0 0.0
    %3535 = vmatprep.subr.mxu0 0.0
    %3536 = vmatpush1.msra.mxu0 0.0
    %3537 = vmatprep.subr.mxu0 0.0
    %3538 = vmatpush1.msra.mxu0 0.0
    %3539 = vmatprep.subr.mxu0 0.0
    %3540 = vmatpush1.msra.mxu0 0.0
    %3541 = vmatprep.subr.mxu0 0.0
    %3542 = vmatpush1.msra.mxu0 0.0
    %3543 = vmatprep.subr.mxu0 0.0
    %3544 = vmatpush1.msra.mxu0 0.0
    %3545 = vmatprep.subr.mxu0 0.0
    %3546 = vmatpush1.msra.mxu0 0.0
    %3547 = vmatprep.subr.mxu0 0.0
    %3548 = vmatpush1.msra.mxu0 0.0
    %3549 = vmatprep.mubr.f32.mxu0 0.0
    %3550 = vmatmul.mubr.f32.gmra.mrb[0].mxu0 %v3483
    %v3551 = vpop.f32.mrb[0].mxu0
    %v3552 = vadd.f32 0.0, %v3551
    %v3553 = vpop.f32.mrb[0].mxu0
    %3554 = vdwg.mxu0
    %v3555 = vadd.f32 %v3465, %v3552
    %s3556 = scalar_lea.vmem %s11, 56
    %v3557 = vld [vmem:[%s3556] sm:$0xff]
    %3558 = vrot.lane.b32.xlu0 %v2929, 7
    %v3559 = vpop.permute.xlu0 %3558
    %3560 = vrot.lane.b32.xlu0 %v2930, 7
    %v3561 = vpop.permute.xlu0 %3560
    %3562 = vrot.lane.b32.xlu0 %v2931, 7
    %v3563 = vpop.permute.xlu0 %3562
    %3564 = vrot.lane.b32.xlu0 %v2932, 7
    %v3565 = vpop.permute.xlu0 %3564
    %3566 = vrot.lane.b32.xlu0 %v2933, 7
    %v3567 = vpop.permute.xlu0 %3566
    %3568 = vrot.lane.b32.xlu0 %v2934, 7
    %v3569 = vpop.permute.xlu0 %3568
    %3570 = vrot.lane.b32.xlu0 %v2935, 7
    %v3571 = vpop.permute.xlu0 %3570
    %v3573 = vsel %vm272, %v3557, 0
    %3575 = vmatprep.subr.mxu0 0.0
    %3576 = vmatpush1.msra.mxu0 %v3559
    %3577 = vmatprep.subr.mxu0 0.0
    %3578 = vmatpush1.msra.mxu0 %v3561
    %3579 = vmatprep.subr.mxu0 0.0
    %3580 = vmatpush1.msra.mxu0 %v3563
    %3581 = vmatprep.subr.mxu0 0.0
    %3582 = vmatpush1.msra.mxu0 %v3565
    %3583 = vmatprep.subr.mxu0 0.0
    %3584 = vmatpush1.msra.mxu0 %v3567
    %3585 = vmatprep.subr.mxu0 0.0
    %3586 = vmatpush1.msra.mxu0 %v3569
    %3587 = vmatprep.subr.mxu0 0.0
    %3588 = vmatpush1.msra.mxu0 %v3571
    %3589 = vmatprep.subr.mxu0 0.0
    %3590 = vmatpush1.msra.mxu0 0.0
    %3591 = vmatprep.subr.mxu0 0.0
    %3592 = vmatpush1.msra.mxu0 0.0
    %3593 = vmatprep.subr.mxu0 0.0
    %3594 = vmatpush1.msra.mxu0 0.0
    %3595 = vmatprep.subr.mxu0 0.0
    %3596 = vmatpush1.msra.mxu0 0.0
    %3597 = vmatprep.subr.mxu0 0.0
    %3598 = vmatpush1.msra.mxu0 0.0
    %3599 = vmatprep.subr.mxu0 0.0
    %3600 = vmatpush1.msra.mxu0 0.0
    %3601 = vmatprep.subr.mxu0 0.0
    %3602 = vmatpush1.msra.mxu0 0.0
    %3603 = vmatprep.subr.mxu0 0.0
    %3604 = vmatpush1.msra.mxu0 0.0
    %3605 = vmatprep.subr.mxu0 0.0
    %3606 = vmatpush1.msra.mxu0 0.0
    %3607 = vmatprep.subr.mxu0 0.0
    %3608 = vmatpush1.msra.mxu0 0.0
    %3609 = vmatprep.subr.mxu0 0.0
    %3610 = vmatpush1.msra.mxu0 0.0
    %3611 = vmatprep.subr.mxu0 0.0
    %3612 = vmatpush1.msra.mxu0 0.0
    %3613 = vmatprep.subr.mxu0 0.0
    %3614 = vmatpush1.msra.mxu0 0.0
    %3615 = vmatprep.subr.mxu0 0.0
    %3616 = vmatpush1.msra.mxu0 0.0
    %3617 = vmatprep.subr.mxu0 0.0
    %3618 = vmatpush1.msra.mxu0 0.0
    %3619 = vmatprep.subr.mxu0 0.0
    %3620 = vmatpush1.msra.mxu0 0.0
    %3621 = vmatprep.subr.mxu0 0.0
    %3622 = vmatpush1.msra.mxu0 0.0
    %3623 = vmatprep.subr.mxu0 0.0
    %3624 = vmatpush1.msra.mxu0 0.0
    %3625 = vmatprep.subr.mxu0 0.0
    %3626 = vmatpush1.msra.mxu0 0.0
    %3627 = vmatprep.subr.mxu0 0.0
    %3628 = vmatpush1.msra.mxu0 0.0
    %3629 = vmatprep.subr.mxu0 0.0
    %3630 = vmatpush1.msra.mxu0 0.0
    %3631 = vmatprep.subr.mxu0 0.0
    %3632 = vmatpush1.msra.mxu0 0.0
    %3633 = vmatprep.subr.mxu0 0.0
    %3634 = vmatpush1.msra.mxu0 0.0
    %3635 = vmatprep.subr.mxu0 0.0
    %3636 = vmatpush1.msra.mxu0 0.0
    %3637 = vmatprep.subr.mxu0 0.0
    %3638 = vmatpush1.msra.mxu0 0.0
    %3639 = vmatprep.mubr.f32.mxu0 0.0
    %3640 = vmatmul.mubr.f32.gmra.mrb[0].mxu0 %v3573
    %v3641 = vpop.f32.mrb[0].mxu0
    %v3642 = vadd.f32 0.0, %v3641
    %v3643 = vpop.f32.mrb[0].mxu0
    %3644 = vdwg.mxu0
    %v3645 = vadd.f32 %v3555, %v3642
    %s3646 = scalar_lea.vmem %s11, 64
    %v3647 = vld [vmem:[%s3646] sm:$0xff]
    %3648 = vrot.lane.b32.xlu0 %v2929, 8
    %v3649 = vpop.permute.xlu0 %3648
    %3650 = vrot.lane.b32.xlu0 %v2930, 8
    %v3651 = vpop.permute.xlu0 %3650
    %3652 = vrot.lane.b32.xlu0 %v2931, 8
    %v3653 = vpop.permute.xlu0 %3652
    %3654 = vrot.lane.b32.xlu0 %v2932, 8
    %v3655 = vpop.permute.xlu0 %3654
    %3656 = vrot.lane.b32.xlu0 %v2933, 8
    %v3657 = vpop.permute.xlu0 %3656
    %3658 = vrot.lane.b32.xlu0 %v2934, 8
    %v3659 = vpop.permute.xlu0 %3658
    %3660 = vrot.lane.b32.xlu0 %v2935, 8
    %v3661 = vpop.permute.xlu0 %3660
    %v3663 = vsel %vm272, %v3647, 0
    %3665 = vmatprep.subr.mxu0 0.0
    %3666 = vmatpush1.msra.mxu0 %v3649
    %3667 = vmatprep.subr.mxu0 0.0
    %3668 = vmatpush1.msra.mxu0 %v3651
    %3669 = vmatprep.subr.mxu0 0.0
    %3670 = vmatpush1.msra.mxu0 %v3653
    %3671 = vmatprep.subr.mxu0 0.0
    %3672 = vmatpush1.msra.mxu0 %v3655
    %3673 = vmatprep.subr.mxu0 0.0
    %3674 = vmatpush1.msra.mxu0 %v3657
    %3675 = vmatprep.subr.mxu0 0.0
    %3676 = vmatpush1.msra.mxu0 %v3659
    %3677 = vmatprep.subr.mxu0 0.0
    %3678 = vmatpush1.msra.mxu0 %v3661
    %3679 = vmatprep.subr.mxu0 0.0
    %3680 = vmatpush1.msra.mxu0 0.0
    %3681 = vmatprep.subr.mxu0 0.0
    %3682 = vmatpush1.msra.mxu0 0.0
    %3683 = vmatprep.subr.mxu0 0.0
    %3684 = vmatpush1.msra.mxu0 0.0
    %3685 = vmatprep.subr.mxu0 0.0
    %3686 = vmatpush1.msra.mxu0 0.0
    %3687 = vmatprep.subr.mxu0 0.0
    %3688 = vmatpush1.msra.mxu0 0.0
    %3689 = vmatprep.subr.mxu0 0.0
    %3690 = vmatpush1.msra.mxu0 0.0
    %3691 = vmatprep.subr.mxu0 0.0
    %3692 = vmatpush1.msra.mxu0 0.0
    %3693 = vmatprep.subr.mxu0 0.0
    %3694 = vmatpush1.msra.mxu0 0.0
    %3695 = vmatprep.subr.mxu0 0.0
    %3696 = vmatpush1.msra.mxu0 0.0
    %3697 = vmatprep.subr.mxu0 0.0
    %3698 = vmatpush1.msra.mxu0 0.0
    %3699 = vmatprep.subr.mxu0 0.0
    %3700 = vmatpush1.msra.mxu0 0.0
    %3701 = vmatprep.subr.mxu0 0.0
    %3702 = vmatpush1.msra.mxu0 0.0
    %3703 = vmatprep.subr.mxu0 0.0
    %3704 = vmatpush1.msra.mxu0 0.0
    %3705 = vmatprep.subr.mxu0 0.0
    %3706 = vmatpush1.msra.mxu0 0.0
    %3707 = vmatprep.subr.mxu0 0.0
    %3708 = vmatpush1.msra.mxu0 0.0
    %3709 = vmatprep.subr.mxu0 0.0
    %3710 = vmatpush1.msra.mxu0 0.0
    %3711 = vmatprep.subr.mxu0 0.0
    %3712 = vmatpush1.msra.mxu0 0.0
    %3713 = vmatprep.subr.mxu0 0.0
    %3714 = vmatpush1.msra.mxu0 0.0
    %3715 = vmatprep.subr.mxu0 0.0
    %3716 = vmatpush1.msra.mxu0 0.0
    %3717 = vmatprep.subr.mxu0 0.0
    %3718 = vmatpush1.msra.mxu0 0.0
    %3719 = vmatprep.subr.mxu0 0.0
    %3720 = vmatpush1.msra.mxu0 0.0
    %3721 = vmatprep.subr.mxu0 0.0
    %3722 = vmatpush1.msra.mxu0 0.0
    %3723 = vmatprep.subr.mxu0 0.0
    %3724 = vmatpush1.msra.mxu0 0.0
    %3725 = vmatprep.subr.mxu0 0.0
    %3726 = vmatpush1.msra.mxu0 0.0
    %3727 = vmatprep.subr.mxu0 0.0
    %3728 = vmatpush1.msra.mxu0 0.0
    %3729 = vmatprep.mubr.f32.mxu0 0.0
    %3730 = vmatmul.mubr.f32.gmra.mrb[0].mxu0 %v3663
    %v3731 = vpop.f32.mrb[0].mxu0
    %v3732 = vadd.f32 0.0, %v3731
    %v3733 = vpop.f32.mrb[0].mxu0
    %3734 = vdwg.mxu0
    %v3735 = vadd.f32 %v3645, %v3732
    %s3736 = scalar_lea.vmem %s11, 72
    %v3737 = vld [vmem:[%s3736] sm:$0xff]
    %3738 = vrot.lane.b32.xlu0 %v2929, 9
    %v3739 = vpop.permute.xlu0 %3738
    %3740 = vrot.lane.b32.xlu0 %v2930, 9
    %v3741 = vpop.permute.xlu0 %3740
    %3742 = vrot.lane.b32.xlu0 %v2931, 9
    %v3743 = vpop.permute.xlu0 %3742
    %3744 = vrot.lane.b32.xlu0 %v2932, 9
    %v3745 = vpop.permute.xlu0 %3744
    %3746 = vrot.lane.b32.xlu0 %v2933, 9
    %v3747 = vpop.permute.xlu0 %3746
    %3748 = vrot.lane.b32.xlu0 %v2934, 9
    %v3749 = vpop.permute.xlu0 %3748
    %3750 = vrot.lane.b32.xlu0 %v2935, 9
    %v3751 = vpop.permute.xlu0 %3750
    %v3753 = vsel %vm272, %v3737, 0
    %3755 = vmatprep.subr.mxu0 0.0
    %3756 = vmatpush1.msra.mxu0 %v3739
    %3757 = vmatprep.subr.mxu0 0.0
    %3758 = vmatpush1.msra.mxu0 %v3741
    %3759 = vmatprep.subr.mxu0 0.0
    %3760 = vmatpush1.msra.mxu0 %v3743
    %3761 = vmatprep.subr.mxu0 0.0
    %3762 = vmatpush1.msra.mxu0 %v3745
    %3763 = vmatprep.subr.mxu0 0.0
    %3764 = vmatpush1.msra.mxu0 %v3747
    %3765 = vmatprep.subr.mxu0 0.0
    %3766 = vmatpush1.msra.mxu0 %v3749
    %3767 = vmatprep.subr.mxu0 0.0
    %3768 = vmatpush1.msra.mxu0 %v3751
    %3769 = vmatprep.subr.mxu0 0.0
    %3770 = vmatpush1.msra.mxu0 0.0
    %3771 = vmatprep.subr.mxu0 0.0
    %3772 = vmatpush1.msra.mxu0 0.0
    %3773 = vmatprep.subr.mxu0 0.0
    %3774 = vmatpush1.msra.mxu0 0.0
    %3775 = vmatprep.subr.mxu0 0.0
    %3776 = vmatpush1.msra.mxu0 0.0
    %3777 = vmatprep.subr.mxu0 0.0
    %3778 = vmatpush1.msra.mxu0 0.0
    %3779 = vmatprep.subr.mxu0 0.0
    %3780 = vmatpush1.msra.mxu0 0.0
    %3781 = vmatprep.subr.mxu0 0.0
    %3782 = vmatpush1.msra.mxu0 0.0
    %3783 = vmatprep.subr.mxu0 0.0
    %3784 = vmatpush1.msra.mxu0 0.0
    %3785 = vmatprep.subr.mxu0 0.0
    %3786 = vmatpush1.msra.mxu0 0.0
    %3787 = vmatprep.subr.mxu0 0.0
    %3788 = vmatpush1.msra.mxu0 0.0
    %3789 = vmatprep.subr.mxu0 0.0
    %3790 = vmatpush1.msra.mxu0 0.0
    %3791 = vmatprep.subr.mxu0 0.0
    %3792 = vmatpush1.msra.mxu0 0.0
    %3793 = vmatprep.subr.mxu0 0.0
    %3794 = vmatpush1.msra.mxu0 0.0
    %3795 = vmatprep.subr.mxu0 0.0
    %3796 = vmatpush1.msra.mxu0 0.0
    %3797 = vmatprep.subr.mxu0 0.0
    %3798 = vmatpush1.msra.mxu0 0.0
    %3799 = vmatprep.subr.mxu0 0.0
    %3800 = vmatpush1.msra.mxu0 0.0
    %3801 = vmatprep.subr.mxu0 0.0
    %3802 = vmatpush1.msra.mxu0 0.0
    %3803 = vmatprep.subr.mxu0 0.0
    %3804 = vmatpush1.msra.mxu0 0.0
    %3805 = vmatprep.subr.mxu0 0.0
    %3806 = vmatpush1.msra.mxu0 0.0
    %3807 = vmatprep.subr.mxu0 0.0
    %3808 = vmatpush1.msra.mxu0 0.0
    %3809 = vmatprep.subr.mxu0 0.0
    %3810 = vmatpush1.msra.mxu0 0.0
    %3811 = vmatprep.subr.mxu0 0.0
    %3812 = vmatpush1.msra.mxu0 0.0
    %3813 = vmatprep.subr.mxu0 0.0
    %3814 = vmatpush1.msra.mxu0 0.0
    %3815 = vmatprep.subr.mxu0 0.0
    %3816 = vmatpush1.msra.mxu0 0.0
    %3817 = vmatprep.subr.mxu0 0.0
    %3818 = vmatpush1.msra.mxu0 0.0
    %3819 = vmatprep.mubr.f32.mxu0 0.0
    %3820 = vmatmul.mubr.f32.gmra.mrb[0].mxu0 %v3753
    %v3821 = vpop.f32.mrb[0].mxu0
    %v3822 = vadd.f32 0.0, %v3821
    %v3823 = vpop.f32.mrb[0].mxu0
    %3824 = vdwg.mxu0
    %v3825 = vadd.f32 %v3735, %v3822
    %s3826 = scalar_lea.vmem %s11, 80
    %v3827 = vld [vmem:[%s3826] sm:$0xff]
    %3828 = vrot.lane.b32.xlu0 %v2929, 10
    %v3829 = vpop.permute.xlu0 %3828
    %3830 = vrot.lane.b32.xlu0 %v2930, 10
    %v3831 = vpop.permute.xlu0 %3830
    %3832 = vrot.lane.b32.xlu0 %v2931, 10
    %v3833 = vpop.permute.xlu0 %3832
    %3834 = vrot.lane.b32.xlu0 %v2932, 10
    %v3835 = vpop.permute.xlu0 %3834
    %3836 = vrot.lane.b32.xlu0 %v2933, 10
    %v3837 = vpop.permute.xlu0 %3836
    %3838 = vrot.lane.b32.xlu0 %v2934, 10
    %v3839 = vpop.permute.xlu0 %3838
    %3840 = vrot.lane.b32.xlu0 %v2935, 10
    %v3841 = vpop.permute.xlu0 %3840
    %v3843 = vsel %vm272, %v3827, 0
    %3845 = vmatprep.subr.mxu0 0.0
    %3846 = vmatpush1.msra.mxu0 %v3829
    %3847 = vmatprep.subr.mxu0 0.0
    %3848 = vmatpush1.msra.mxu0 %v3831
    %3849 = vmatprep.subr.mxu0 0.0
    %3850 = vmatpush1.msra.mxu0 %v3833
    %3851 = vmatprep.subr.mxu0 0.0
    %3852 = vmatpush1.msra.mxu0 %v3835
    %3853 = vmatprep.subr.mxu0 0.0
    %3854 = vmatpush1.msra.mxu0 %v3837
    %3855 = vmatprep.subr.mxu0 0.0
    %3856 = vmatpush1.msra.mxu0 %v3839
    %3857 = vmatprep.subr.mxu0 0.0
    %3858 = vmatpush1.msra.mxu0 %v3841
    %3859 = vmatprep.subr.mxu0 0.0
    %3860 = vmatpush1.msra.mxu0 0.0
    %3861 = vmatprep.subr.mxu0 0.0
    %3862 = vmatpush1.msra.mxu0 0.0
    %3863 = vmatprep.subr.mxu0 0.0
    %3864 = vmatpush1.msra.mxu0 0.0
    %3865 = vmatprep.subr.mxu0 0.0
    %3866 = vmatpush1.msra.mxu0 0.0
    %3867 = vmatprep.subr.mxu0 0.0
    %3868 = vmatpush1.msra.mxu0 0.0
    %3869 = vmatprep.subr.mxu0 0.0
    %3870 = vmatpush1.msra.mxu0 0.0
    %3871 = vmatprep.subr.mxu0 0.0
    %3872 = vmatpush1.msra.mxu0 0.0
    %3873 = vmatprep.subr.mxu0 0.0
    %3874 = vmatpush1.msra.mxu0 0.0
    %3875 = vmatprep.subr.mxu0 0.0
    %3876 = vmatpush1.msra.mxu0 0.0
    %3877 = vmatprep.subr.mxu0 0.0
    %3878 = vmatpush1.msra.mxu0 0.0
    %3879 = vmatprep.subr.mxu0 0.0
    %3880 = vmatpush1.msra.mxu0 0.0
    %3881 = vmatprep.subr.mxu0 0.0
    %3882 = vmatpush1.msra.mxu0 0.0
    %3883 = vmatprep.subr.mxu0 0.0
    %3884 = vmatpush1.msra.mxu0 0.0
    %3885 = vmatprep.subr.mxu0 0.0
    %3886 = vmatpush1.msra.mxu0 0.0
    %3887 = vmatprep.subr.mxu0 0.0
    %3888 = vmatpush1.msra.mxu0 0.0
    %3889 = vmatprep.subr.mxu0 0.0
    %3890 = vmatpush1.msra.mxu0 0.0
    %3891 = vmatprep.subr.mxu0 0.0
    %3892 = vmatpush1.msra.mxu0 0.0
    %3893 = vmatprep.subr.mxu0 0.0
    %3894 = vmatpush1.msra.mxu0 0.0
    %3895 = vmatprep.subr.mxu0 0.0
    %3896 = vmatpush1.msra.mxu0 0.0
    %3897 = vmatprep.subr.mxu0 0.0
    %3898 = vmatpush1.msra.mxu0 0.0
    %3899 = vmatprep.subr.mxu0 0.0
    %3900 = vmatpush1.msra.mxu0 0.0
    %3901 = vmatprep.subr.mxu0 0.0
    %3902 = vmatpush1.msra.mxu0 0.0
    %3903 = vmatprep.subr.mxu0 0.0
    %3904 = vmatpush1.msra.mxu0 0.0
    %3905 = vmatprep.subr.mxu0 0.0
    %3906 = vmatpush1.msra.mxu0 0.0
    %3907 = vmatprep.subr.mxu0 0.0
    %3908 = vmatpush1.msra.mxu0 0.0
    %3909 = vmatprep.mubr.f32.mxu0 0.0
    %3910 = vmatmul.mubr.f32.gmra.mrb[0].mxu0 %v3843
    %v3911 = vpop.f32.mrb[0].mxu0
    %v3912 = vadd.f32 0.0, %v3911
    %v3913 = vpop.f32.mrb[0].mxu0
    %3914 = vdwg.mxu0
    %v3915 = vadd.f32 %v3825, %v3912
    %s3916 = scalar_lea.vmem %s11, 88
    %v3917 = vld [vmem:[%s3916] sm:$0xff]
    %3918 = vrot.lane.b32.xlu0 %v2929, 11
    %v3919 = vpop.permute.xlu0 %3918
    %3920 = vrot.lane.b32.xlu0 %v2930, 11
    %v3921 = vpop.permute.xlu0 %3920
    %3922 = vrot.lane.b32.xlu0 %v2931, 11
    %v3923 = vpop.permute.xlu0 %3922
    %3924 = vrot.lane.b32.xlu0 %v2932, 11
    %v3925 = vpop.permute.xlu0 %3924
    %3926 = vrot.lane.b32.xlu0 %v2933, 11
    %v3927 = vpop.permute.xlu0 %3926
    %3928 = vrot.lane.b32.xlu0 %v2934, 11
    %v3929 = vpop.permute.xlu0 %3928
    %3930 = vrot.lane.b32.xlu0 %v2935, 11
    %v3931 = vpop.permute.xlu0 %3930
    %v3933 = vsel %vm272, %v3917, 0
    %3935 = vmatprep.subr.mxu0 0.0
    %3936 = vmatpush1.msra.mxu0 %v3919
    %3937 = vmatprep.subr.mxu0 0.0
    %3938 = vmatpush1.msra.mxu0 %v3921
    %3939 = vmatprep.subr.mxu0 0.0
    %3940 = vmatpush1.msra.mxu0 %v3923
    %3941 = vmatprep.subr.mxu0 0.0
    %3942 = vmatpush1.msra.mxu0 %v3925
    %3943 = vmatprep.subr.mxu0 0.0
    %3944 = vmatpush1.msra.mxu0 %v3927
    %3945 = vmatprep.subr.mxu0 0.0
    %3946 = vmatpush1.msra.mxu0 %v3929
    %3947 = vmatprep.subr.mxu0 0.0
    %3948 = vmatpush1.msra.mxu0 %v3931
    %3949 = vmatprep.subr.mxu0 0.0
    %3950 = vmatpush1.msra.mxu0 0.0
    %3951 = vmatprep.subr.mxu0 0.0
    %3952 = vmatpush1.msra.mxu0 0.0
    %3953 = vmatprep.subr.mxu0 0.0
    %3954 = vmatpush1.msra.mxu0 0.0
    %3955 = vmatprep.subr.mxu0 0.0
    %3956 = vmatpush1.msra.mxu0 0.0
    %3957 = vmatprep.subr.mxu0 0.0
    %3958 = vmatpush1.msra.mxu0 0.0
    %3959 = vmatprep.subr.mxu0 0.0
    %3960 = vmatpush1.msra.mxu0 0.0
    %3961 = vmatprep.subr.mxu0 0.0
    %3962 = vmatpush1.msra.mxu0 0.0
    %3963 = vmatprep.subr.mxu0 0.0
    %3964 = vmatpush1.msra.mxu0 0.0
    %3965 = vmatprep.subr.mxu0 0.0
    %3966 = vmatpush1.msra.mxu0 0.0
    %3967 = vmatprep.subr.mxu0 0.0
    %3968 = vmatpush1.msra.mxu0 0.0
    %3969 = vmatprep.subr.mxu0 0.0
    %3970 = vmatpush1.msra.mxu0 0.0
    %3971 = vmatprep.subr.mxu0 0.0
    %3972 = vmatpush1.msra.mxu0 0.0
    %3973 = vmatprep.subr.mxu0 0.0
    %3974 = vmatpush1.msra.mxu0 0.0
    %3975 = vmatprep.subr.mxu0 0.0
    %3976 = vmatpush1.msra.mxu0 0.0
    %3977 = vmatprep.subr.mxu0 0.0
    %3978 = vmatpush1.msra.mxu0 0.0
    %3979 = vmatprep.subr.mxu0 0.0
    %3980 = vmatpush1.msra.mxu0 0.0
    %3981 = vmatprep.subr.mxu0 0.0
    %3982 = vmatpush1.msra.mxu0 0.0
    %3983 = vmatprep.subr.mxu0 0.0
    %3984 = vmatpush1.msra.mxu0 0.0
    %3985 = vmatprep.subr.mxu0 0.0
    %3986 = vmatpush1.msra.mxu0 0.0
    %3987 = vmatprep.subr.mxu0 0.0
    %3988 = vmatpush1.msra.mxu0 0.0
    %3989 = vmatprep.subr.mxu0 0.0
    %3990 = vmatpush1.msra.mxu0 0.0
    %3991 = vmatprep.subr.mxu0 0.0
    %3992 = vmatpush1.msra.mxu0 0.0
    %3993 = vmatprep.subr.mxu0 0.0
    %3994 = vmatpush1.msra.mxu0 0.0
    %3995 = vmatprep.subr.mxu0 0.0
    %3996 = vmatpush1.msra.mxu0 0.0
    %3997 = vmatprep.subr.mxu0 0.0
    %3998 = vmatpush1.msra.mxu0 0.0
    %3999 = vmatprep.mubr.f32.mxu0 0.0
    %4000 = vmatmul.mubr.f32.gmra.mrb[0].mxu0 %v3933
    %v4001 = vpop.f32.mrb[0].mxu0
    %v4002 = vadd.f32 0.0, %v4001
    %v4003 = vpop.f32.mrb[0].mxu0
    %4004 = vdwg.mxu0
    %v4005 = vadd.f32 %v3915, %v4002
    %s4006 = scalar_lea.vmem %s11, 96
    %v4007 = vld [vmem:[%s4006] sm:$0xff]
    %4008 = vrot.lane.b32.xlu0 %v2929, 12
    %v4009 = vpop.permute.xlu0 %4008
    %4010 = vrot.lane.b32.xlu0 %v2930, 12
    %v4011 = vpop.permute.xlu0 %4010
    %4012 = vrot.lane.b32.xlu0 %v2931, 12
    %v4013 = vpop.permute.xlu0 %4012
    %4014 = vrot.lane.b32.xlu0 %v2932, 12
    %v4015 = vpop.permute.xlu0 %4014
    %4016 = vrot.lane.b32.xlu0 %v2933, 12
    %v4017 = vpop.permute.xlu0 %4016
    %4018 = vrot.lane.b32.xlu0 %v2934, 12
    %v4019 = vpop.permute.xlu0 %4018
    %4020 = vrot.lane.b32.xlu0 %v2935, 12
    %v4021 = vpop.permute.xlu0 %4020
    %v4023 = vsel %vm272, %v4007, 0
    %4025 = vmatprep.subr.mxu0 0.0
    %4026 = vmatpush1.msra.mxu0 %v4009
    %4027 = vmatprep.subr.mxu0 0.0
    %4028 = vmatpush1.msra.mxu0 %v4011
    %4029 = vmatprep.subr.mxu0 0.0
    %4030 = vmatpush1.msra.mxu0 %v4013
    %4031 = vmatprep.subr.mxu0 0.0
    %4032 = vmatpush1.msra.mxu0 %v4015
    %4033 = vmatprep.subr.mxu0 0.0
    %4034 = vmatpush1.msra.mxu0 %v4017
    %4035 = vmatprep.subr.mxu0 0.0
    %4036 = vmatpush1.msra.mxu0 %v4019
    %4037 = vmatprep.subr.mxu0 0.0
    %4038 = vmatpush1.msra.mxu0 %v4021
    %4039 = vmatprep.subr.mxu0 0.0
    %4040 = vmatpush1.msra.mxu0 0.0
    %4041 = vmatprep.subr.mxu0 0.0
    %4042 = vmatpush1.msra.mxu0 0.0
    %4043 = vmatprep.subr.mxu0 0.0
    %4044 = vmatpush1.msra.mxu0 0.0
    %4045 = vmatprep.subr.mxu0 0.0
    %4046 = vmatpush1.msra.mxu0 0.0
    %4047 = vmatprep.subr.mxu0 0.0
    %4048 = vmatpush1.msra.mxu0 0.0
    %4049 = vmatprep.subr.mxu0 0.0
    %4050 = vmatpush1.msra.mxu0 0.0
    %4051 = vmatprep.subr.mxu0 0.0
    %4052 = vmatpush1.msra.mxu0 0.0
    %4053 = vmatprep.subr.mxu0 0.0
    %4054 = vmatpush1.msra.mxu0 0.0
    %4055 = vmatprep.subr.mxu0 0.0
    %4056 = vmatpush1.msra.mxu0 0.0
    %4057 = vmatprep.subr.mxu0 0.0
    %4058 = vmatpush1.msra.mxu0 0.0
    %4059 = vmatprep.subr.mxu0 0.0
    %4060 = vmatpush1.msra.mxu0 0.0
    %4061 = vmatprep.subr.mxu0 0.0
    %4062 = vmatpush1.msra.mxu0 0.0
    %4063 = vmatprep.subr.mxu0 0.0
    %4064 = vmatpush1.msra.mxu0 0.0
    %4065 = vmatprep.subr.mxu0 0.0
    %4066 = vmatpush1.msra.mxu0 0.0
    %4067 = vmatprep.subr.mxu0 0.0
    %4068 = vmatpush1.msra.mxu0 0.0
    %4069 = vmatprep.subr.mxu0 0.0
    %4070 = vmatpush1.msra.mxu0 0.0
    %4071 = vmatprep.subr.mxu0 0.0
    %4072 = vmatpush1.msra.mxu0 0.0
    %4073 = vmatprep.subr.mxu0 0.0
    %4074 = vmatpush1.msra.mxu0 0.0
    %4075 = vmatprep.subr.mxu0 0.0
    %4076 = vmatpush1.msra.mxu0 0.0
    %4077 = vmatprep.subr.mxu0 0.0
    %4078 = vmatpush1.msra.mxu0 0.0
    %4079 = vmatprep.subr.mxu0 0.0
    %4080 = vmatpush1.msra.mxu0 0.0
    %4081 = vmatprep.subr.mxu0 0.0
    %4082 = vmatpush1.msra.mxu0 0.0
    %4083 = vmatprep.subr.mxu0 0.0
    %4084 = vmatpush1.msra.mxu0 0.0
    %4085 = vmatprep.subr.mxu0 0.0
    %4086 = vmatpush1.msra.mxu0 0.0
    %4087 = vmatprep.subr.mxu0 0.0
    %4088 = vmatpush1.msra.mxu0 0.0
    %4089 = vmatprep.mubr.f32.mxu0 0.0
    %4090 = vmatmul.mubr.f32.gmra.mrb[0].mxu0 %v4023
    %v4091 = vpop.f32.mrb[0].mxu0
    %v4092 = vadd.f32 0.0, %v4091
    %v4093 = vpop.f32.mrb[0].mxu0
    %4094 = vdwg.mxu0
    %v4095 = vadd.f32 %v4005, %v4092
    %4096 = vst [vmem:[%s14] sm:$0xff] %v4095
    // Predicated region
    $region62: #{net_forward.1} parent=1 // pred_check
      _
    $region63: #{net_forward.1} parent=1 // pred_check_branch
      %4098 = sbr.rel (0) target = $region65
    $region64: #{net_forward.1} parent=1 // pred_region
      _
    $region65: #{net_forward.1} parent=1 // pred_fallthru
      _
    // Predicated region
    $region66: #{net_forward.1} parent=1 // pred_check
      _
    $region67: #{net_forward.1} parent=1 // pred_check_branch
      %4100 = sbr.rel (0) target = $region69
    $region68: #{net_forward.1} parent=1 // pred_region
      _
    $region69: #{net_forward.1} parent=1 // pred_fallthru
      _
    %4101 = vsyncpa [#allocation3], 1

</llo_original>
